<compile_context>
chip_gen: v5e
topology: v5e:2x2
jax: 0.10.0
libtpu: 0.0.40
codegen_flags: <defaults>
</compile_context>

<pallas_src>
import jax
import jax.numpy as jnp
from jax.experimental import pallas as pl
from jax.experimental.pallas import tpu as pltpu

jax.config.update("jax_default_matmul_precision", "highest")


# ----------------------------- Pallas kernel ------------------------------- #
def _dupn_kernel(x_ref, w_ih_ref, w_hh_ref, b_ref, u1_ref, u2_ref,
                 pooled_ref,
                 xg_sc, xl_sc):
    """LSTM + attention logit + prefix-softmax pooling for one batch tile.

      x_ref      : (T, Bt, D)  time-major inputs (zero past each length)
      w_ih_ref   : (D, 4H)     LSTM input weights   (gate order i, f, g, o)
      w_hh_ref   : (H, 4H)     LSTM recurrent weights
      b_ref      : (1, 4H)     b_ih + b_hh
      u1_ref     : (1, D)      v1 @ A1   (attention logit, x contribution)
      u2_ref     : (1, H)      v1 @ A2   (attention logit, h contribution)
      pooled_ref : (T, Bt, H)  pooled[t, b] = softmax(a1[0:t+1, b]) . h[0:t+1, b]
      xg_sc      : (T, Bt, 4H) scratch: hoisted gate x-projection
      xl_sc      : (T, Bt, 1)  scratch: hoisted logit x-projection
    """
    T, Bt, D = x_ref.shape
    H4 = w_ih_ref.shape[1]
    H = H4 // 4

    # --- preamble: hoist every x-projection out of the recurrence -----------
    x2 = x_ref[...].reshape(T * Bt, D).astype(jnp.float32)
    # fused 4-gate input projection: one lane-dense (T*Bt, 4H) MXU matmul
    xg = jnp.dot(x2, w_ih_ref[...].astype(jnp.float32),
                 preferred_element_type=jnp.float32) + b_ref[...].astype(jnp.float32)
    xg_sc[...] = xg.reshape(T, Bt, H4)
    # attention-logit x contribution  (x . u1 as a cross-lane reduce, XLU slot)
    xl = jnp.sum(x2 * u1_ref[...].astype(jnp.float32), axis=1, keepdims=True)
    xl_sc[...] = xl.reshape(T, Bt, 1)

    # loop-invariant weights, loaded once
    w_hh = w_hh_ref[...].astype(jnp.float32)
    u2 = u2_ref[...].astype(jnp.float32)

    # initial LSTM / running-softmax state, carried as loop values (vregs)
    zeros_bh = jnp.zeros((Bt, H), jnp.float32)
    zeros_b1 = jnp.zeros((Bt, 1), jnp.float32)

    def step(t, carry):
        h_prev, c_prev, num, den = carry
        gates = xg_sc[t] + jnp.dot(h_prev, w_hh,
                                   preferred_element_type=jnp.float32)
        i_g = jax.nn.sigmoid(gates[:, 0 * H:1 * H])
        f_g = jax.nn.sigmoid(gates[:, 1 * H:2 * H])
        g_g = jnp.tanh(gates[:, 2 * H:3 * H])
        o_g = jax.nn.sigmoid(gates[:, 3 * H:4 * H])
        c = f_g * c_prev + i_g * g_g
        h = o_g * jnp.tanh(c)

        # prefix softmax over a1 = sigmoid(logit), maintained as running sums.
        # a1 in (0,1) so exp(a1) in (1,e): no max-subtraction needed.
        logit = xl_sc[t] + jnp.sum(h * u2, axis=1, keepdims=True)     # (Bt, 1)
        e = jnp.exp(jax.nn.sigmoid(logit))                            # (Bt, 1)
        num = num + e * h
        den = den + e
        pooled_ref[t] = (num / den).astype(pooled_ref.dtype)
        return (h, c, num, den)

    jax.lax.fori_loop(0, T, step,
                      (zeros_bh, zeros_bh, zeros_bh, zeros_b1),
                      unroll=True)


def dupn_pooled_pallas(x, w_ih, w_hh, b, u1, u2, *, block_b=None,
                       vmem_limit_bytes=None):
    """pooled[t, b, :] = prefix-attention-pooled LSTM state for every position.

    Grid = batch tiles only ("parallel"); the whole time range is processed per
    grid step so per-step overhead is amortized and the gate matmul is one big
    lane-dense (T*block_b, 4H) MXU call.
    """
    T, B, D = x.shape
    H4 = w_ih.shape[1]
    H = H4 // 4
    # block_b must be a multiple of 8 (sublane tiling) or the full batch.
    if block_b is None or B % block_b != 0 or (block_b != B and block_b % 8 != 0):
        block_b = B

    grid = (B // block_b,)
    in_specs = [
        pl.BlockSpec((T, block_b, D), lambda i: (0, i, 0)),
        pl.BlockSpec(w_ih.shape, lambda i: (0, 0)),
        pl.BlockSpec(w_hh.shape, lambda i: (0, 0)),
        pl.BlockSpec(b.shape, lambda i: (0, 0)),
        pl.BlockSpec(u1.shape, lambda i: (0, 0)),
        pl.BlockSpec(u2.shape, lambda i: (0, 0)),
    ]
    # TODO(synk): for H < 128 the per-step (Bt, H) store is lane-masked; a
    # lane-dense repack would need a per-step sublane->lane relayout (XLU) that
    # costs more than it saves at these sizes, so the natural layout is kept.
    out_spec = pl.BlockSpec((T, block_b, H), lambda i: (0, i, 0))

    return pl.pallas_call(
        _dupn_kernel,
        out_shape=jax.ShapeDtypeStruct((T, B, H), jnp.float32),
        grid_spec=pltpu.PrefetchScalarGridSpec(
            num_scalar_prefetch=0,
            grid=grid,
            in_specs=in_specs,
            out_specs=out_spec,
            scratch_shapes=[
                pltpu.VMEM((T, block_b, H4), jnp.float32),   # gate x-projection
                pltpu.VMEM((T, block_b, 1), jnp.float32),    # logit x-projection
            ],
        ),
        compiler_params=pltpu.CompilerParams(
            dimension_semantics=("parallel",),
            vmem_limit_bytes=vmem_limit_bytes,
        ),
    )(x, w_ih, w_hh, b, u1, u2)


# ------------------- ragged label-slot gather (plain JAX) ------------------ #
def gather_label_positions(pooled, lengths, label_len):
    """out[b, j] = pooled[max(L_b - label_len, 0) + j, b] for j < min(L_b, label_len)."""
    # TODO(synk): the ragged packed-sequence slot bookkeeping (l1/l2/already_label
    # loop in the PyTorch module) has no clean BlockSpec equivalent; it is a tiny
    # data-dependent gather kept in plain (vectorized) JAX.
    T, B, H = pooled.shape
    start = jnp.maximum(lengths - label_len, 0)                       # (B,)
    j = jnp.arange(label_len)
    t_idx = start[:, None] + j[None, :]                               # (B, L)
    valid = j[None, :] < jnp.minimum(lengths, label_len)[:, None]     # (B, L)
    t_clip = jnp.clip(t_idx, 0, T - 1)
    g = pooled[t_clip, jnp.arange(B)[:, None]]                        # (B, L, H)
    return jnp.where(valid[:, :, None], g, 0.0)


# ------------------------------ full forward -------------------------------- #
def prep_kernel_params(p):
    w_ih_k = p["w_ih"].T                                  # (D, 4H)
    w_hh_k = p["w_hh"].T                                  # (H, 4H)
    b_k = (p["b_ih"] + p["b_hh"]).reshape(1, -1)          # (1, 4H)
    u1_row = p["v1_w"] @ p["A1_w"]                        # (1, D)   v1 . A1
    u2_row = p["v1_w"] @ p["A2_w"]                        # (1, H)   v1 . A2
    return w_ih_k, w_hh_k, b_k, u1_row, u2_row


def dupn_forward(x, lengths, label_len, params, *, block_b=None):
    """x: (T, B, D) time-major padded input (zero past lengths), lengths: (B,)."""
    w_ih_k, w_hh_k, b_k, u1_row, u2_row = prep_kernel_params(params)
    pooled = dupn_pooled_pallas(x, w_ih_k, w_hh_k, b_k, u1_row, u2_row,
                                block_b=block_b)
    return gather_label_positions(pooled, lengths, label_len)


# ---------------------------- parameter setup ------------------------------- #
def init_dupn_params(key, input_size, hidden_size):
    """PyTorch-style uniform init; weights kept in torch (out, in) layout here."""
    D, H = input_size, hidden_size
    k_lstm = 1.0 / (H ** 0.5)
    k_a1 = 1.0 / (D ** 0.5)
    k_h = 1.0 / (H ** 0.5)
    ks = jax.random.split(key, 7)
    return dict(
        w_ih=jax.random.uniform(ks[0], (4 * H, D), jnp.float32, -k_lstm, k_lstm),
        w_hh=jax.random.uniform(ks[1], (4 * H, H), jnp.float32, -k_lstm, k_lstm),
        b_ih=jax.random.uniform(ks[2], (4 * H,), jnp.float32, -k_lstm, k_lstm),
        b_hh=jax.random.uniform(ks[3], (4 * H,), jnp.float32, -k_lstm, k_lstm),
        A1_w=jax.random.uniform(ks[4], (H, D), jnp.float32, -k_a1, k_a1),
        A2_w=jax.random.uniform(ks[5], (H, H), jnp.float32, -k_h, k_h),
        v1_w=jax.random.uniform(ks[6], (1, H), jnp.float32, -k_h, k_h),
    )


# ----------------------- plain-JAX reference (check) ------------------------ #
def dupn_ref(x, lengths, label_len, p):
    T, B, D = x.shape
    H = p["w_hh"].shape[1]
    w_ih, w_hh = p["w_ih"], p["w_hh"]
    b = p["b_ih"] + p["b_hh"]

    def cell(carry, x_t):
        h, c = carry
        gates = x_t @ w_ih.T + h @ w_hh.T + b
        i, f, g, o = jnp.split(gates, 4, axis=1)
        c = jax.nn.sigmoid(f) * c + jax.nn.sigmoid(i) * jnp.tanh(g)
        h = jax.nn.sigmoid(o) * jnp.tanh(c)
        return (h, c), h

    init = (jnp.zeros((B, H), jnp.float32), jnp.zeros((B, H), jnp.float32))
    _, h_all = jax.lax.scan(cell, init, x)                            # (T, B, H)

    a1 = jax.nn.sigmoid((x @ p["A1_w"].T + h_all @ p["A2_w"].T) @ p["v1_w"].T)

    start = jnp.maximum(lengths - label_len, 0)
    j = jnp.arange(label_len)
    t_idx = start[:, None] + j[None, :]                               # (B, L)
    valid = j[None, :] < jnp.minimum(lengths, label_len)[:, None]
    tau = jnp.arange(T)
    mask = tau[None, None, :] <= t_idx[:, :, None]                    # (B, L, T)
    logits = jnp.where(mask, a1[:, :, 0].T[:, None, :], -jnp.inf)
    w = jax.nn.softmax(logits, axis=-1)                               # (B, L, T)
    out = jnp.einsum("blt,tbh->blh", w, h_all)
    return jnp.where(valid[:, :, None], out, 0.0)


if __name__ == "__main__":
    # Small shapes consistent with the module.
    B, T = 8, 8                   # batch, max sequence length
    D, H = 32, 32                 # input_size, hidden_size
    label_len = 4

    key = jax.random.PRNGKey(0)
    kx, kp = jax.random.split(key)

    # Packed-sequence-style input: time-major padded tensor + descending lengths.
    lengths = jnp.array([8, 7, 6, 6, 4, 3, 2, 1], dtype=jnp.int32)
    x = jax.random.normal(kx, (T, B, D), dtype=jnp.float32)
    x = x * (jnp.arange(T)[:, None] < lengths[None, :])[:, :, None]   # zero pad region

    params = init_dupn_params(kp, D, H)

    out = dupn_forward(x, lengths, label_len, params)
    out = jax.block_until_ready(out)
    assert out.shape == (B, label_len, H)

    ref = dupn_ref(x, lengths, label_len, params)
    assert jnp.allclose(out, ref, atol=1e-3, rtol=1e-3), "mismatch vs reference"

    print("KERNEL_OK")
</pallas_src>

<mosaic_0001>
module attributes {stable_mosaic.version = 11 : i64} {
  func.func @_dupn_kernel(%arg0: i32, %arg1: memref<8x8x32xf32, #tpu.memory_space<vmem>>, %arg2: memref<32x128xf32, #tpu.memory_space<vmem>>, %arg3: memref<32x128xf32, #tpu.memory_space<vmem>>, %arg4: memref<1x128xf32, #tpu.memory_space<vmem>>, %arg5: memref<1x32xf32, #tpu.memory_space<vmem>>, %arg6: memref<1x32xf32, #tpu.memory_space<vmem>>, %arg7: memref<8x8x32xf32, #tpu.memory_space<vmem>>, %arg8: memref<8x8x128xf32, #tpu.memory_space<vmem>>, %arg9: memref<8x8x1xf32, #tpu.memory_space<vmem>>) attributes {dimension_semantics = [#tpu.dimension_semantics<parallel>], iteration_bounds = array<i64: 1>, scalar_prefetch = 0 : i64, scratch_operands = 2 : i64, tpu.core_type = #tpu.core_type<tc>, window_params = [{transform_indices = @transform_0, window_bounds = array<i64: 8, 8, 32>}, {pipeline_mode = #tpu.pipeline_mode<synchronous>, transform_indices = @transform_1, window_bounds = array<i64: 32, 128>}, {pipeline_mode = #tpu.pipeline_mode<synchronous>, transform_indices = @transform_2, window_bounds = array<i64: 32, 128>}, {pipeline_mode = #tpu.pipeline_mode<synchronous>, transform_indices = @transform_3, window_bounds = array<i64: 1, 128>}, {pipeline_mode = #tpu.pipeline_mode<synchronous>, transform_indices = @transform_4, window_bounds = array<i64: 1, 32>}, {pipeline_mode = #tpu.pipeline_mode<synchronous>, transform_indices = @transform_5, window_bounds = array<i64: 1, 32>}, {transform_indices = @transform_6, window_bounds = array<i64: 8, 8, 32>}]} {
    %c0 = arith.constant 0 : index
    %c0_0 = arith.constant 0 : index
    %c0_1 = arith.constant 0 : index
    %0 = vector.load %arg1[%c0, %c0_0, %c0_1] : memref<8x8x32xf32, #tpu.memory_space<vmem>>, vector<8x8x32xf32>
    %1 = vector.shape_cast %0 : vector<8x8x32xf32> to vector<64x32xf32>
    %c0_2 = arith.constant 0 : index
    %c0_3 = arith.constant 0 : index
    %2 = vector.load %arg2[%c0_2, %c0_3] : memref<32x128xf32, #tpu.memory_space<vmem>>, vector<32x128xf32>
    %cst = arith.constant dense<0.000000e+00> : vector<64x128xf32>
    %3 = tpu.matmul %1, %2, %cst {dimension_numbers = #tpu.dot_dimension_numbers<[1], [0], [0], [1], [0, 0, 1, 1], [], []>, precision = #tpu.contract_precision<fp32>} : vector<64x32xf32>, vector<32x128xf32>, vector<64x128xf32> -> vector<64x128xf32>
    %c0_4 = arith.constant 0 : index
    %c0_5 = arith.constant 0 : index
    %4 = vector.load %arg4[%c0_4, %c0_5] : memref<1x128xf32, #tpu.memory_space<vmem>>, vector<1x128xf32>
    %5 = vector.broadcast %4 : vector<1x128xf32> to vector<64x128xf32>
    %6 = arith.addf %3, %5 : vector<64x128xf32>
    %7 = vector.shape_cast %6 : vector<64x128xf32> to vector<8x8x128xf32>
    %c0_6 = arith.constant 0 : index
    %c0_7 = arith.constant 0 : index
    %c0_8 = arith.constant 0 : index
    %8 = vector.load %arg8[%c0_6, %c0_7, %c0_8] : memref<8x8x128xf32, #tpu.memory_space<vmem>>, vector<8x8x128xf32>
    tpu.vector_store %arg8[%c0_6, %c0_7, %c0_8], %7 {strides = array<i32>} : memref<8x8x128xf32, #tpu.memory_space<vmem>>, vector<8x8x128xf32>,
    %c0_9 = arith.constant 0 : index
    %c0_10 = arith.constant 0 : index
    %9 = vector.load %arg5[%c0_9, %c0_10] : memref<1x32xf32, #tpu.memory_space<vmem>>, vector<1x32xf32>
    %10 = vector.broadcast %9 : vector<1x32xf32> to vector<64x32xf32>
    %11 = arith.mulf %1, %10 : vector<64x32xf32>
    %cst_11 = arith.constant dense<0.000000e+00> : vector<64xf32>
    %12 = vector.multi_reduction <add>, %11, %cst_11 [1] : vector<64x32xf32> to vector<64xf32>
    %13 = vector.shape_cast %12 : vector<64xf32> to vector<64x1xf32>
    %14 = vector.shape_cast %13 : vector<64x1xf32> to vector<8x8x1xf32>
    %c0_12 = arith.constant 0 : index
    %c0_13 = arith.constant 0 : index
    %c0_14 = arith.constant 0 : index
    %15 = vector.load %arg9[%c0_12, %c0_13, %c0_14] : memref<8x8x1xf32, #tpu.memory_space<vmem>>, vector<8x8x1xf32>
    tpu.vector_store %arg9[%c0_12, %c0_13, %c0_14], %14 {strides = array<i32>} : memref<8x8x1xf32, #tpu.memory_space<vmem>>, vector<8x8x1xf32>,
    %c0_15 = arith.constant 0 : index
    %c0_16 = arith.constant 0 : index
    %16 = vector.load %arg3[%c0_15, %c0_16] : memref<32x128xf32, #tpu.memory_space<vmem>>, vector<32x128xf32>
    %c0_17 = arith.constant 0 : index
    %c0_18 = arith.constant 0 : index
    %17 = vector.load %arg6[%c0_17, %c0_18] : memref<1x32xf32, #tpu.memory_space<vmem>>, vector<1x32xf32>
    %cst_19 = arith.constant 0.000000e+00 : f32
    %18 = vector.broadcast %cst_19 : f32 to vector<8x32xf32>
    %cst_20 = arith.constant 0.000000e+00 : f32
    %19 = vector.broadcast %cst_20 : f32 to vector<8x1xf32>
    %c0_i32 = arith.constant 0 : i32
    %20 = arith.index_cast %c0_i32 : i32 to index
    %c0_21 = arith.constant 0 : index
    %c0_22 = arith.constant 0 : index
    %21 = vector.load %arg8[%20, %c0_21, %c0_22] : memref<8x8x128xf32, #tpu.memory_space<vmem>>, vector<1x8x128xf32>
    %22 = vector.shape_cast %21 : vector<1x8x128xf32> to vector<8x128xf32>
    %cst_23 = arith.constant dense<0.000000e+00> : vector<8x128xf32>
    %23 = tpu.matmul %18, %16, %cst_23 {dimension_numbers = #tpu.dot_dimension_numbers<[1], [0], [0], [1], [0, 0, 1, 1], [], []>, precision = #tpu.contract_precision<fp32>} : vector<8x32xf32>, vector<32x128xf32>, vector<8x128xf32> -> vector<8x128xf32>
    %24 = arith.addf %22, %23 : vector<8x128xf32>
    %25 = vector.extract_strided_slice %24 {offsets = [0, 0], sizes = [8, 32], strides = [1, 1]} : vector<8x128xf32> to vector<8x32xf32>
    %26 = arith.negf %25 : vector<8x32xf32>
    %27 = math.exp %26 : vector<8x32xf32>
    %cst_24 = arith.constant 1.000000e+00 : f32
    %28 = vector.broadcast %cst_24 : f32 to vector<8x32xf32>
    %29 = arith.addf %28, %27 : vector<8x32xf32>
    %30 = arith.divf %28, %29 : vector<8x32xf32>
    %31 = vector.extract_strided_slice %24 {offsets = [0, 32], sizes = [8, 32], strides = [1, 1]} : vector<8x128xf32> to vector<8x32xf32>
    %32 = arith.negf %31 : vector<8x32xf32>
    %33 = math.exp %32 : vector<8x32xf32>
    %cst_25 = arith.constant 1.000000e+00 : f32
    %34 = vector.broadcast %cst_25 : f32 to vector<8x32xf32>
    %35 = arith.addf %34, %33 : vector<8x32xf32>
    %36 = arith.divf %34, %35 : vector<8x32xf32>
    %37 = vector.extract_strided_slice %24 {offsets = [0, 64], sizes = [8, 32], strides = [1, 1]} : vector<8x128xf32> to vector<8x32xf32>
    %38 = math.tanh %37 : vector<8x32xf32>
    %39 = vector.extract_strided_slice %24 {offsets = [0, 96], sizes = [8, 32], strides = [1, 1]} : vector<8x128xf32> to vector<8x32xf32>
    %40 = arith.negf %39 : vector<8x32xf32>
    %41 = math.exp %40 : vector<8x32xf32>
    %cst_26 = arith.constant 1.000000e+00 : f32
    %42 = vector.broadcast %cst_26 : f32 to vector<8x32xf32>
    %43 = arith.addf %42, %41 : vector<8x32xf32>
    %44 = arith.divf %42, %43 : vector<8x32xf32>
    %45 = arith.mulf %36, %18 : vector<8x32xf32>
    %46 = arith.mulf %30, %38 : vector<8x32xf32>
    %47 = arith.addf %45, %46 : vector<8x32xf32>
    %48 = math.tanh %47 : vector<8x32xf32>
    %49 = arith.mulf %44, %48 : vector<8x32xf32>
    %50 = arith.index_cast %c0_i32 : i32 to index
    %c0_27 = arith.constant 0 : index
    %c0_28 = arith.constant 0 : index
    %51 = vector.load %arg9[%50, %c0_27, %c0_28] : memref<8x8x1xf32, #tpu.memory_space<vmem>>, vector<1x8x1xf32>
    %52 = vector.shape_cast %51 : vector<1x8x1xf32> to vector<8x1xf32>
    %53 = vector.broadcast %17 : vector<1x32xf32> to vector<8x32xf32>
    %54 = arith.mulf %49, %53 : vector<8x32xf32>
    %cst_29 = arith.constant dense<0.000000e+00> : vector<8xf32>
    %55 = vector.multi_reduction <add>, %54, %cst_29 [1] : vector<8x32xf32> to vector<8xf32>
    %56 = vector.shape_cast %55 : vector<8xf32> to vector<8x1xf32>
    %57 = arith.addf %52, %56 : vector<8x1xf32>
    %58 = arith.negf %57 : vector<8x1xf32>
    %59 = math.exp %58 : vector<8x1xf32>
    %cst_30 = arith.constant 1.000000e+00 : f32
    %60 = vector.broadcast %cst_30 : f32 to vector<8x1xf32>
    %61 = arith.addf %60, %59 : vector<8x1xf32>
    %62 = arith.divf %60, %61 : vector<8x1xf32>
    %63 = math.exp %62 : vector<8x1xf32>
    %64 = vector.broadcast %63 : vector<8x1xf32> to vector<8x32xf32>
    %65 = arith.mulf %64, %49 : vector<8x32xf32>
    %66 = arith.addf %18, %65 : vector<8x32xf32>
    %67 = arith.addf %19, %63 : vector<8x1xf32>
    %68 = vector.broadcast %67 : vector<8x1xf32> to vector<8x32xf32>
    %69 = arith.divf %66, %68 : vector<8x32xf32>
    %70 = arith.index_cast %c0_i32 : i32 to index
    %c0_31 = arith.constant 0 : index
    %c0_32 = arith.constant 0 : index
    %71 = vector.load %arg7[%70, %c0_31, %c0_32] : memref<8x8x32xf32, #tpu.memory_space<vmem>>, vector<1x8x32xf32>
    %72 = vector.shape_cast %71 : vector<1x8x32xf32> to vector<8x32xf32>
    %73 = vector.shape_cast %69 : vector<8x32xf32> to vector<1x8x32xf32>
    tpu.vector_store %arg7[%70, %c0_31, %c0_32], %73 {strides = array<i32>} : memref<8x8x32xf32, #tpu.memory_space<vmem>>, vector<1x8x32xf32>,
    %c1_i32 = arith.constant 1 : i32
    %74 = arith.index_cast %c1_i32 : i32 to index
    %c0_33 = arith.constant 0 : index
    %c0_34 = arith.constant 0 : index
    %75 = vector.load %arg8[%74, %c0_33, %c0_34] : memref<8x8x128xf32, #tpu.memory_space<vmem>>, vector<1x8x128xf32>
    %76 = vector.shape_cast %75 : vector<1x8x128xf32> to vector<8x128xf32>
    %cst_35 = arith.constant dense<0.000000e+00> : vector<8x128xf32>
    %77 = tpu.matmul %49, %16, %cst_35 {dimension_numbers = #tpu.dot_dimension_numbers<[1], [0], [0], [1], [0, 0, 1, 1], [], []>, precision = #tpu.contract_precision<fp32>} : vector<8x32xf32>, vector<32x128xf32>, vector<8x128xf32> -> vector<8x128xf32>
    %78 = arith.addf %76, %77 : vector<8x128xf32>
    %79 = vector.extract_strided_slice %78 {offsets = [0, 0], sizes = [8, 32], strides = [1, 1]} : vector<8x128xf32> to vector<8x32xf32>
    %80 = arith.negf %79 : vector<8x32xf32>
    %81 = math.exp %80 : vector<8x32xf32>
    %cst_36 = arith.constant 1.000000e+00 : f32
    %82 = vector.broadcast %cst_36 : f32 to vector<8x32xf32>
    %83 = arith.addf %82, %81 : vector<8x32xf32>
    %84 = arith.divf %82, %83 : vector<8x32xf32>
    %85 = vector.extract_strided_slice %78 {offsets = [0, 32], sizes = [8, 32], strides = [1, 1]} : vector<8x128xf32> to vector<8x32xf32>
    %86 = arith.negf %85 : vector<8x32xf32>
    %87 = math.exp %86 : vector<8x32xf32>
    %cst_37 = arith.constant 1.000000e+00 : f32
    %88 = vector.broadcast %cst_37 : f32 to vector<8x32xf32>
    %89 = arith.addf %88, %87 : vector<8x32xf32>
    %90 = arith.divf %88, %89 : vector<8x32xf32>
    %91 = vector.extract_strided_slice %78 {offsets = [0, 64], sizes = [8, 32], strides = [1, 1]} : vector<8x128xf32> to vector<8x32xf32>
    %92 = math.tanh %91 : vector<8x32xf32>
    %93 = vector.extract_strided_slice %78 {offsets = [0, 96], sizes = [8, 32], strides = [1, 1]} : vector<8x128xf32> to vector<8x32xf32>
    %94 = arith.negf %93 : vector<8x32xf32>
    %95 = math.exp %94 : vector<8x32xf32>
    %cst_38 = arith.constant 1.000000e+00 : f32
    %96 = vector.broadcast %cst_38 : f32 to vector<8x32xf32>
    %97 = arith.addf %96, %95 : vector<8x32xf32>
    %98 = arith.divf %96, %97 : vector<8x32xf32>
    %99 = arith.mulf %90, %47 : vector<8x32xf32>
    %100 = arith.mulf %84, %92 : vector<8x32xf32>
    %101 = arith.addf %99, %100 : vector<8x32xf32>
    %102 = math.tanh %101 : vector<8x32xf32>
    %103 = arith.mulf %98, %102 : vector<8x32xf32>
    %104 = arith.index_cast %c1_i32 : i32 to index
    %c0_39 = arith.constant 0 : index
    %c0_40 = arith.constant 0 : index
    %105 = vector.load %arg9[%104, %c0_39, %c0_40] : memref<8x8x1xf32, #tpu.memory_space<vmem>>, vector<1x8x1xf32>
    %106 = vector.shape_cast %105 : vector<1x8x1xf32> to vector<8x1xf32>
    %107 = vector.broadcast %17 : vector<1x32xf32> to vector<8x32xf32>
    %108 = arith.mulf %103, %107 : vector<8x32xf32>
    %cst_41 = arith.constant dense<0.000000e+00> : vector<8xf32>
    %109 = vector.multi_reduction <add>, %108, %cst_41 [1] : vector<8x32xf32> to vector<8xf32>
    %110 = vector.shape_cast %109 : vector<8xf32> to vector<8x1xf32>
    %111 = arith.addf %106, %110 : vector<8x1xf32>
    %112 = arith.negf %111 : vector<8x1xf32>
    %113 = math.exp %112 : vector<8x1xf32>
    %cst_42 = arith.constant 1.000000e+00 : f32
    %114 = vector.broadcast %cst_42 : f32 to vector<8x1xf32>
    %115 = arith.addf %114, %113 : vector<8x1xf32>
    %116 = arith.divf %114, %115 : vector<8x1xf32>
    %117 = math.exp %116 : vector<8x1xf32>
    %118 = vector.broadcast %117 : vector<8x1xf32> to vector<8x32xf32>
    %119 = arith.mulf %118, %103 : vector<8x32xf32>
    %120 = arith.addf %66, %119 : vector<8x32xf32>
    %121 = arith.addf %67, %117 : vector<8x1xf32>
    %122 = vector.broadcast %121 : vector<8x1xf32> to vector<8x32xf32>
    %123 = arith.divf %120, %122 : vector<8x32xf32>
    %124 = arith.index_cast %c1_i32 : i32 to index
    %c0_43 = arith.constant 0 : index
    %c0_44 = arith.constant 0 : index
    %125 = vector.load %arg7[%124, %c0_43, %c0_44] : memref<8x8x32xf32, #tpu.memory_space<vmem>>, vector<1x8x32xf32>
    %126 = vector.shape_cast %125 : vector<1x8x32xf32> to vector<8x32xf32>
    %127 = vector.shape_cast %123 : vector<8x32xf32> to vector<1x8x32xf32>
    tpu.vector_store %arg7[%124, %c0_43, %c0_44], %127 {strides = array<i32>} : memref<8x8x32xf32, #tpu.memory_space<vmem>>, vector<1x8x32xf32>,
    %c2_i32 = arith.constant 2 : i32
    %128 = arith.index_cast %c2_i32 : i32 to index
    %c0_45 = arith.constant 0 : index
    %c0_46 = arith.constant 0 : index
    %129 = vector.load %arg8[%128, %c0_45, %c0_46] : memref<8x8x128xf32, #tpu.memory_space<vmem>>, vector<1x8x128xf32>
    %130 = vector.shape_cast %129 : vector<1x8x128xf32> to vector<8x128xf32>
    %cst_47 = arith.constant dense<0.000000e+00> : vector<8x128xf32>
    %131 = tpu.matmul %103, %16, %cst_47 {dimension_numbers = #tpu.dot_dimension_numbers<[1], [0], [0], [1], [0, 0, 1, 1], [], []>, precision = #tpu.contract_precision<fp32>} : vector<8x32xf32>, vector<32x128xf32>, vector<8x128xf32> -> vector<8x128xf32>
    %132 = arith.addf %130, %131 : vector<8x128xf32>
    %133 = vector.extract_strided_slice %132 {offsets = [0, 0], sizes = [8, 32], strides = [1, 1]} : vector<8x128xf32> to vector<8x32xf32>
    %134 = arith.negf %133 : vector<8x32xf32>
    %135 = math.exp %134 : vector<8x32xf32>
    %cst_48 = arith.constant 1.000000e+00 : f32
    %136 = vector.broadcast %cst_48 : f32 to vector<8x32xf32>
    %137 = arith.addf %136, %135 : vector<8x32xf32>
    %138 = arith.divf %136, %137 : vector<8x32xf32>
    %139 = vector.extract_strided_slice %132 {offsets = [0, 32], sizes = [8, 32], strides = [1, 1]} : vector<8x128xf32> to vector<8x32xf32>
    %140 = arith.negf %139 : vector<8x32xf32>
    %141 = math.exp %140 : vector<8x32xf32>
    %cst_49 = arith.constant 1.000000e+00 : f32
    %142 = vector.broadcast %cst_49 : f32 to vector<8x32xf32>
    %143 = arith.addf %142, %141 : vector<8x32xf32>
    %144 = arith.divf %142, %143 : vector<8x32xf32>
    %145 = vector.extract_strided_slice %132 {offsets = [0, 64], sizes = [8, 32], strides = [1, 1]} : vector<8x128xf32> to vector<8x32xf32>
    %146 = math.tanh %145 : vector<8x32xf32>
    %147 = vector.extract_strided_slice %132 {offsets = [0, 96], sizes = [8, 32], strides = [1, 1]} : vector<8x128xf32> to vector<8x32xf32>
    %148 = arith.negf %147 : vector<8x32xf32>
    %149 = math.exp %148 : vector<8x32xf32>
    %cst_50 = arith.constant 1.000000e+00 : f32
    %150 = vector.broadcast %cst_50 : f32 to vector<8x32xf32>
    %151 = arith.addf %150, %149 : vector<8x32xf32>
    %152 = arith.divf %150, %151 : vector<8x32xf32>
    %153 = arith.mulf %144, %101 : vector<8x32xf32>
    %154 = arith.mulf %138, %146 : vector<8x32xf32>
    %155 = arith.addf %153, %154 : vector<8x32xf32>
    %156 = math.tanh %155 : vector<8x32xf32>
    %157 = arith.mulf %152, %156 : vector<8x32xf32>
    %158 = arith.index_cast %c2_i32 : i32 to index
    %c0_51 = arith.constant 0 : index
    %c0_52 = arith.constant 0 : index
    %159 = vector.load %arg9[%158, %c0_51, %c0_52] : memref<8x8x1xf32, #tpu.memory_space<vmem>>, vector<1x8x1xf32>
    %160 = vector.shape_cast %159 : vector<1x8x1xf32> to vector<8x1xf32>
    %161 = vector.broadcast %17 : vector<1x32xf32> to vector<8x32xf32>
    %162 = arith.mulf %157, %161 : vector<8x32xf32>
    %cst_53 = arith.constant dense<0.000000e+00> : vector<8xf32>
    %163 = vector.multi_reduction <add>, %162, %cst_53 [1] : vector<8x32xf32> to vector<8xf32>
    %164 = vector.shape_cast %163 : vector<8xf32> to vector<8x1xf32>
    %165 = arith.addf %160, %164 : vector<8x1xf32>
    %166 = arith.negf %165 : vector<8x1xf32>
    %167 = math.exp %166 : vector<8x1xf32>
    %cst_54 = arith.constant 1.000000e+00 : f32
    %168 = vector.broadcast %cst_54 : f32 to vector<8x1xf32>
    %169 = arith.addf %168, %167 : vector<8x1xf32>
    %170 = arith.divf %168, %169 : vector<8x1xf32>
    %171 = math.exp %170 : vector<8x1xf32>
    %172 = vector.broadcast %171 : vector<8x1xf32> to vector<8x32xf32>
    %173 = arith.mulf %172, %157 : vector<8x32xf32>
    %174 = arith.addf %120, %173 : vector<8x32xf32>
    %175 = arith.addf %121, %171 : vector<8x1xf32>
    %176 = vector.broadcast %175 : vector<8x1xf32> to vector<8x32xf32>
    %177 = arith.divf %174, %176 : vector<8x32xf32>
    %178 = arith.index_cast %c2_i32 : i32 to index
    %c0_55 = arith.constant 0 : index
    %c0_56 = arith.constant 0 : index
    %179 = vector.load %arg7[%178, %c0_55, %c0_56] : memref<8x8x32xf32, #tpu.memory_space<vmem>>, vector<1x8x32xf32>
    %180 = vector.shape_cast %179 : vector<1x8x32xf32> to vector<8x32xf32>
    %181 = vector.shape_cast %177 : vector<8x32xf32> to vector<1x8x32xf32>
    tpu.vector_store %arg7[%178, %c0_55, %c0_56], %181 {strides = array<i32>} : memref<8x8x32xf32, #tpu.memory_space<vmem>>, vector<1x8x32xf32>,
    %c3_i32 = arith.constant 3 : i32
    %182 = arith.index_cast %c3_i32 : i32 to index
    %c0_57 = arith.constant 0 : index
    %c0_58 = arith.constant 0 : index
    %183 = vector.load %arg8[%182, %c0_57, %c0_58] : memref<8x8x128xf32, #tpu.memory_space<vmem>>, vector<1x8x128xf32>
    %184 = vector.shape_cast %183 : vector<1x8x128xf32> to vector<8x128xf32>
    %cst_59 = arith.constant dense<0.000000e+00> : vector<8x128xf32>
    %185 = tpu.matmul %157, %16, %cst_59 {dimension_numbers = #tpu.dot_dimension_numbers<[1], [0], [0], [1], [0, 0, 1, 1], [], []>, precision = #tpu.contract_precision<fp32>} : vector<8x32xf32>, vector<32x128xf32>, vector<8x128xf32> -> vector<8x128xf32>
    %186 = arith.addf %184, %185 : vector<8x128xf32>
    %187 = vector.extract_strided_slice %186 {offsets = [0, 0], sizes = [8, 32], strides = [1, 1]} : vector<8x128xf32> to vector<8x32xf32>
    %188 = arith.negf %187 : vector<8x32xf32>
    %189 = math.exp %188 : vector<8x32xf32>
    %cst_60 = arith.constant 1.000000e+00 : f32
    %190 = vector.broadcast %cst_60 : f32 to vector<8x32xf32>
    %191 = arith.addf %190, %189 : vector<8x32xf32>
    %192 = arith.divf %190, %191 : vector<8x32xf32>
    %193 = vector.extract_strided_slice %186 {offsets = [0, 32], sizes = [8, 32], strides = [1, 1]} : vector<8x128xf32> to vector<8x32xf32>
    %194 = arith.negf %193 : vector<8x32xf32>
    %195 = math.exp %194 : vector<8x32xf32>
    %cst_61 = arith.constant 1.000000e+00 : f32
    %196 = vector.broadcast %cst_61 : f32 to vector<8x32xf32>
    %197 = arith.addf %196, %195 : vector<8x32xf32>
    %198 = arith.divf %196, %197 : vector<8x32xf32>
    %199 = vector.extract_strided_slice %186 {offsets = [0, 64], sizes = [8, 32], strides = [1, 1]} : vector<8x128xf32> to vector<8x32xf32>
    %200 = math.tanh %199 : vector<8x32xf32>
    %201 = vector.extract_strided_slice %186 {offsets = [0, 96], sizes = [8, 32], strides = [1, 1]} : vector<8x128xf32> to vector<8x32xf32>
    %202 = arith.negf %201 : vector<8x32xf32>
    %203 = math.exp %202 : vector<8x32xf32>
    %cst_62 = arith.constant 1.000000e+00 : f32
    %204 = vector.broadcast %cst_62 : f32 to vector<8x32xf32>
    %205 = arith.addf %204, %203 : vector<8x32xf32>
    %206 = arith.divf %204, %205 : vector<8x32xf32>
    %207 = arith.mulf %198, %155 : vector<8x32xf32>
    %208 = arith.mulf %192, %200 : vector<8x32xf32>
    %209 = arith.addf %207, %208 : vector<8x32xf32>
    %210 = math.tanh %209 : vector<8x32xf32>
    %211 = arith.mulf %206, %210 : vector<8x32xf32>
    %212 = arith.index_cast %c3_i32 : i32 to index
    %c0_63 = arith.constant 0 : index
    %c0_64 = arith.constant 0 : index
    %213 = vector.load %arg9[%212, %c0_63, %c0_64] : memref<8x8x1xf32, #tpu.memory_space<vmem>>, vector<1x8x1xf32>
    %214 = vector.shape_cast %213 : vector<1x8x1xf32> to vector<8x1xf32>
    %215 = vector.broadcast %17 : vector<1x32xf32> to vector<8x32xf32>
    %216 = arith.mulf %211, %215 : vector<8x32xf32>
    %cst_65 = arith.constant dense<0.000000e+00> : vector<8xf32>
    %217 = vector.multi_reduction <add>, %216, %cst_65 [1] : vector<8x32xf32> to vector<8xf32>
    %218 = vector.shape_cast %217 : vector<8xf32> to vector<8x1xf32>
    %219 = arith.addf %214, %218 : vector<8x1xf32>
    %220 = arith.negf %219 : vector<8x1xf32>
    %221 = math.exp %220 : vector<8x1xf32>
    %cst_66 = arith.constant 1.000000e+00 : f32
    %222 = vector.broadcast %cst_66 : f32 to vector<8x1xf32>
    %223 = arith.addf %222, %221 : vector<8x1xf32>
    %224 = arith.divf %222, %223 : vector<8x1xf32>
    %225 = math.exp %224 : vector<8x1xf32>
    %226 = vector.broadcast %225 : vector<8x1xf32> to vector<8x32xf32>
    %227 = arith.mulf %226, %211 : vector<8x32xf32>
    %228 = arith.addf %174, %227 : vector<8x32xf32>
    %229 = arith.addf %175, %225 : vector<8x1xf32>
    %230 = vector.broadcast %229 : vector<8x1xf32> to vector<8x32xf32>
    %231 = arith.divf %228, %230 : vector<8x32xf32>
    %232 = arith.index_cast %c3_i32 : i32 to index
    %c0_67 = arith.constant 0 : index
    %c0_68 = arith.constant 0 : index
    %233 = vector.load %arg7[%232, %c0_67, %c0_68] : memref<8x8x32xf32, #tpu.memory_space<vmem>>, vector<1x8x32xf32>
    %234 = vector.shape_cast %233 : vector<1x8x32xf32> to vector<8x32xf32>
    %235 = vector.shape_cast %231 : vector<8x32xf32> to vector<1x8x32xf32>
    tpu.vector_store %arg7[%232, %c0_67, %c0_68], %235 {strides = array<i32>} : memref<8x8x32xf32, #tpu.memory_space<vmem>>, vector<1x8x32xf32>,
    %c4_i32 = arith.constant 4 : i32
    %236 = arith.index_cast %c4_i32 : i32 to index
    %c0_69 = arith.constant 0 : index
    %c0_70 = arith.constant 0 : index
    %237 = vector.load %arg8[%236, %c0_69, %c0_70] : memref<8x8x128xf32, #tpu.memory_space<vmem>>, vector<1x8x128xf32>
    %238 = vector.shape_cast %237 : vector<1x8x128xf32> to vector<8x128xf32>
    %cst_71 = arith.constant dense<0.000000e+00> : vector<8x128xf32>
    %239 = tpu.matmul %211, %16, %cst_71 {dimension_numbers = #tpu.dot_dimension_numbers<[1], [0], [0], [1], [0, 0, 1, 1], [], []>, precision = #tpu.contract_precision<fp32>} : vector<8x32xf32>, vector<32x128xf32>, vector<8x128xf32> -> vector<8x128xf32>
    %240 = arith.addf %238, %239 : vector<8x128xf32>
    %241 = vector.extract_strided_slice %240 {offsets = [0, 0], sizes = [8, 32], strides = [1, 1]} : vector<8x128xf32> to vector<8x32xf32>
    %242 = arith.negf %241 : vector<8x32xf32>
    %243 = math.exp %242 : vector<8x32xf32>
    %cst_72 = arith.constant 1.000000e+00 : f32
    %244 = vector.broadcast %cst_72 : f32 to vector<8x32xf32>
    %245 = arith.addf %244, %243 : vector<8x32xf32>
    %246 = arith.divf %244, %245 : vector<8x32xf32>
    %247 = vector.extract_strided_slice %240 {offsets = [0, 32], sizes = [8, 32], strides = [1, 1]} : vector<8x128xf32> to vector<8x32xf32>
    %248 = arith.negf %247 : vector<8x32xf32>
    %249 = math.exp %248 : vector<8x32xf32>
    %cst_73 = arith.constant 1.000000e+00 : f32
    %250 = vector.broadcast %cst_73 : f32 to vector<8x32xf32>
    %251 = arith.addf %250, %249 : vector<8x32xf32>
    %252 = arith.divf %250, %251 : vector<8x32xf32>
    %253 = vector.extract_strided_slice %240 {offsets = [0, 64], sizes = [8, 32], strides = [1, 1]} : vector<8x128xf32> to vector<8x32xf32>
    %254 = math.tanh %253 : vector<8x32xf32>
    %255 = vector.extract_strided_slice %240 {offsets = [0, 96], sizes = [8, 32], strides = [1, 1]} : vector<8x128xf32> to vector<8x32xf32>
    %256 = arith.negf %255 : vector<8x32xf32>
    %257 = math.exp %256 : vector<8x32xf32>
    %cst_74 = arith.constant 1.000000e+00 : f32
    %258 = vector.broadcast %cst_74 : f32 to vector<8x32xf32>
    %259 = arith.addf %258, %257 : vector<8x32xf32>
    %260 = arith.divf %258, %259 : vector<8x32xf32>
    %261 = arith.mulf %252, %209 : vector<8x32xf32>
    %262 = arith.mulf %246, %254 : vector<8x32xf32>
    %263 = arith.addf %261, %262 : vector<8x32xf32>
    %264 = math.tanh %263 : vector<8x32xf32>
    %265 = arith.mulf %260, %264 : vector<8x32xf32>
    %266 = arith.index_cast %c4_i32 : i32 to index
    %c0_75 = arith.constant 0 : index
    %c0_76 = arith.constant 0 : index
    %267 = vector.load %arg9[%266, %c0_75, %c0_76] : memref<8x8x1xf32, #tpu.memory_space<vmem>>, vector<1x8x1xf32>
    %268 = vector.shape_cast %267 : vector<1x8x1xf32> to vector<8x1xf32>
    %269 = vector.broadcast %17 : vector<1x32xf32> to vector<8x32xf32>
    %270 = arith.mulf %265, %269 : vector<8x32xf32>
    %cst_77 = arith.constant dense<0.000000e+00> : vector<8xf32>
    %271 = vector.multi_reduction <add>, %270, %cst_77 [1] : vector<8x32xf32> to vector<8xf32>
    %272 = vector.shape_cast %271 : vector<8xf32> to vector<8x1xf32>
    %273 = arith.addf %268, %272 : vector<8x1xf32>
    %274 = arith.negf %273 : vector<8x1xf32>
    %275 = math.exp %274 : vector<8x1xf32>
    %cst_78 = arith.constant 1.000000e+00 : f32
    %276 = vector.broadcast %cst_78 : f32 to vector<8x1xf32>
    %277 = arith.addf %276, %275 : vector<8x1xf32>
    %278 = arith.divf %276, %277 : vector<8x1xf32>
    %279 = math.exp %278 : vector<8x1xf32>
    %280 = vector.broadcast %279 : vector<8x1xf32> to vector<8x32xf32>
    %281 = arith.mulf %280, %265 : vector<8x32xf32>
    %282 = arith.addf %228, %281 : vector<8x32xf32>
    %283 = arith.addf %229, %279 : vector<8x1xf32>
    %284 = vector.broadcast %283 : vector<8x1xf32> to vector<8x32xf32>
    %285 = arith.divf %282, %284 : vector<8x32xf32>
    %286 = arith.index_cast %c4_i32 : i32 to index
    %c0_79 = arith.constant 0 : index
    %c0_80 = arith.constant 0 : index
    %287 = vector.load %arg7[%286, %c0_79, %c0_80] : memref<8x8x32xf32, #tpu.memory_space<vmem>>, vector<1x8x32xf32>
    %288 = vector.shape_cast %287 : vector<1x8x32xf32> to vector<8x32xf32>
    %289 = vector.shape_cast %285 : vector<8x32xf32> to vector<1x8x32xf32>
    tpu.vector_store %arg7[%286, %c0_79, %c0_80], %289 {strides = array<i32>} : memref<8x8x32xf32, #tpu.memory_space<vmem>>, vector<1x8x32xf32>,
    %c5_i32 = arith.constant 5 : i32
    %290 = arith.index_cast %c5_i32 : i32 to index
    %c0_81 = arith.constant 0 : index
    %c0_82 = arith.constant 0 : index
    %291 = vector.load %arg8[%290, %c0_81, %c0_82] : memref<8x8x128xf32, #tpu.memory_space<vmem>>, vector<1x8x128xf32>
    %292 = vector.shape_cast %291 : vector<1x8x128xf32> to vector<8x128xf32>
    %cst_83 = arith.constant dense<0.000000e+00> : vector<8x128xf32>
    %293 = tpu.matmul %265, %16, %cst_83 {dimension_numbers = #tpu.dot_dimension_numbers<[1], [0], [0], [1], [0, 0, 1, 1], [], []>, precision = #tpu.contract_precision<fp32>} : vector<8x32xf32>, vector<32x128xf32>, vector<8x128xf32> -> vector<8x128xf32>
    %294 = arith.addf %292, %293 : vector<8x128xf32>
    %295 = vector.extract_strided_slice %294 {offsets = [0, 0], sizes = [8, 32], strides = [1, 1]} : vector<8x128xf32> to vector<8x32xf32>
    %296 = arith.negf %295 : vector<8x32xf32>
    %297 = math.exp %296 : vector<8x32xf32>
    %cst_84 = arith.constant 1.000000e+00 : f32
    %298 = vector.broadcast %cst_84 : f32 to vector<8x32xf32>
    %299 = arith.addf %298, %297 : vector<8x32xf32>
    %300 = arith.divf %298, %299 : vector<8x32xf32>
    %301 = vector.extract_strided_slice %294 {offsets = [0, 32], sizes = [8, 32], strides = [1, 1]} : vector<8x128xf32> to vector<8x32xf32>
    %302 = arith.negf %301 : vector<8x32xf32>
    %303 = math.exp %302 : vector<8x32xf32>
    %cst_85 = arith.constant 1.000000e+00 : f32
    %304 = vector.broadcast %cst_85 : f32 to vector<8x32xf32>
    %305 = arith.addf %304, %303 : vector<8x32xf32>
    %306 = arith.divf %304, %305 : vector<8x32xf32>
    %307 = vector.extract_strided_slice %294 {offsets = [0, 64], sizes = [8, 32], strides = [1, 1]} : vector<8x128xf32> to vector<8x32xf32>
    %308 = math.tanh %307 : vector<8x32xf32>
    %309 = vector.extract_strided_slice %294 {offsets = [0, 96], sizes = [8, 32], strides = [1, 1]} : vector<8x128xf32> to vector<8x32xf32>
    %310 = arith.negf %309 : vector<8x32xf32>
    %311 = math.exp %310 : vector<8x32xf32>
    %cst_86 = arith.constant 1.000000e+00 : f32
    %312 = vector.broadcast %cst_86 : f32 to vector<8x32xf32>
    %313 = arith.addf %312, %311 : vector<8x32xf32>
    %314 = arith.divf %312, %313 : vector<8x32xf32>
    %315 = arith.mulf %306, %263 : vector<8x32xf32>
    %316 = arith.mulf %300, %308 : vector<8x32xf32>
    %317 = arith.addf %315, %316 : vector<8x32xf32>
    %318 = math.tanh %317 : vector<8x32xf32>
    %319 = arith.mulf %314, %318 : vector<8x32xf32>
    %320 = arith.index_cast %c5_i32 : i32 to index
    %c0_87 = arith.constant 0 : index
    %c0_88 = arith.constant 0 : index
    %321 = vector.load %arg9[%320, %c0_87, %c0_88] : memref<8x8x1xf32, #tpu.memory_space<vmem>>, vector<1x8x1xf32>
    %322 = vector.shape_cast %321 : vector<1x8x1xf32> to vector<8x1xf32>
    %323 = vector.broadcast %17 : vector<1x32xf32> to vector<8x32xf32>
    %324 = arith.mulf %319, %323 : vector<8x32xf32>
    %cst_89 = arith.constant dense<0.000000e+00> : vector<8xf32>
    %325 = vector.multi_reduction <add>, %324, %cst_89 [1] : vector<8x32xf32> to vector<8xf32>
    %326 = vector.shape_cast %325 : vector<8xf32> to vector<8x1xf32>
    %327 = arith.addf %322, %326 : vector<8x1xf32>
    %328 = arith.negf %327 : vector<8x1xf32>
    %329 = math.exp %328 : vector<8x1xf32>
    %cst_90 = arith.constant 1.000000e+00 : f32
    %330 = vector.broadcast %cst_90 : f32 to vector<8x1xf32>
    %331 = arith.addf %330, %329 : vector<8x1xf32>
    %332 = arith.divf %330, %331 : vector<8x1xf32>
    %333 = math.exp %332 : vector<8x1xf32>
    %334 = vector.broadcast %333 : vector<8x1xf32> to vector<8x32xf32>
    %335 = arith.mulf %334, %319 : vector<8x32xf32>
    %336 = arith.addf %282, %335 : vector<8x32xf32>
    %337 = arith.addf %283, %333 : vector<8x1xf32>
    %338 = vector.broadcast %337 : vector<8x1xf32> to vector<8x32xf32>
    %339 = arith.divf %336, %338 : vector<8x32xf32>
    %340 = arith.index_cast %c5_i32 : i32 to index
    %c0_91 = arith.constant 0 : index
    %c0_92 = arith.constant 0 : index
    %341 = vector.load %arg7[%340, %c0_91, %c0_92] : memref<8x8x32xf32, #tpu.memory_space<vmem>>, vector<1x8x32xf32>
    %342 = vector.shape_cast %341 : vector<1x8x32xf32> to vector<8x32xf32>
    %343 = vector.shape_cast %339 : vector<8x32xf32> to vector<1x8x32xf32>
    tpu.vector_store %arg7[%340, %c0_91, %c0_92], %343 {strides = array<i32>} : memref<8x8x32xf32, #tpu.memory_space<vmem>>, vector<1x8x32xf32>,
    %c6_i32 = arith.constant 6 : i32
    %344 = arith.index_cast %c6_i32 : i32 to index
    %c0_93 = arith.constant 0 : index
    %c0_94 = arith.constant 0 : index
    %345 = vector.load %arg8[%344, %c0_93, %c0_94] : memref<8x8x128xf32, #tpu.memory_space<vmem>>, vector<1x8x128xf32>
    %346 = vector.shape_cast %345 : vector<1x8x128xf32> to vector<8x128xf32>
    %cst_95 = arith.constant dense<0.000000e+00> : vector<8x128xf32>
    %347 = tpu.matmul %319, %16, %cst_95 {dimension_numbers = #tpu.dot_dimension_numbers<[1], [0], [0], [1], [0, 0, 1, 1], [], []>, precision = #tpu.contract_precision<fp32>} : vector<8x32xf32>, vector<32x128xf32>, vector<8x128xf32> -> vector<8x128xf32>
    %348 = arith.addf %346, %347 : vector<8x128xf32>
    %349 = vector.extract_strided_slice %348 {offsets = [0, 0], sizes = [8, 32], strides = [1, 1]} : vector<8x128xf32> to vector<8x32xf32>
    %350 = arith.negf %349 : vector<8x32xf32>
    %351 = math.exp %350 : vector<8x32xf32>
    %cst_96 = arith.constant 1.000000e+00 : f32
    %352 = vector.broadcast %cst_96 : f32 to vector<8x32xf32>
    %353 = arith.addf %352, %351 : vector<8x32xf32>
    %354 = arith.divf %352, %353 : vector<8x32xf32>
    %355 = vector.extract_strided_slice %348 {offsets = [0, 32], sizes = [8, 32], strides = [1, 1]} : vector<8x128xf32> to vector<8x32xf32>
    %356 = arith.negf %355 : vector<8x32xf32>
    %357 = math.exp %356 : vector<8x32xf32>
    %cst_97 = arith.constant 1.000000e+00 : f32
    %358 = vector.broadcast %cst_97 : f32 to vector<8x32xf32>
    %359 = arith.addf %358, %357 : vector<8x32xf32>
    %360 = arith.divf %358, %359 : vector<8x32xf32>
    %361 = vector.extract_strided_slice %348 {offsets = [0, 64], sizes = [8, 32], strides = [1, 1]} : vector<8x128xf32> to vector<8x32xf32>
    %362 = math.tanh %361 : vector<8x32xf32>
    %363 = vector.extract_strided_slice %348 {offsets = [0, 96], sizes = [8, 32], strides = [1, 1]} : vector<8x128xf32> to vector<8x32xf32>
    %364 = arith.negf %363 : vector<8x32xf32>
    %365 = math.exp %364 : vector<8x32xf32>
    %cst_98 = arith.constant 1.000000e+00 : f32
    %366 = vector.broadcast %cst_98 : f32 to vector<8x32xf32>
    %367 = arith.addf %366, %365 : vector<8x32xf32>
    %368 = arith.divf %366, %367 : vector<8x32xf32>
    %369 = arith.mulf %360, %317 : vector<8x32xf32>
    %370 = arith.mulf %354, %362 : vector<8x32xf32>
    %371 = arith.addf %369, %370 : vector<8x32xf32>
    %372 = math.tanh %371 : vector<8x32xf32>
    %373 = arith.mulf %368, %372 : vector<8x32xf32>
    %374 = arith.index_cast %c6_i32 : i32 to index
    %c0_99 = arith.constant 0 : index
    %c0_100 = arith.constant 0 : index
    %375 = vector.load %arg9[%374, %c0_99, %c0_100] : memref<8x8x1xf32, #tpu.memory_space<vmem>>, vector<1x8x1xf32>
    %376 = vector.shape_cast %375 : vector<1x8x1xf32> to vector<8x1xf32>
    %377 = vector.broadcast %17 : vector<1x32xf32> to vector<8x32xf32>
    %378 = arith.mulf %373, %377 : vector<8x32xf32>
    %cst_101 = arith.constant dense<0.000000e+00> : vector<8xf32>
    %379 = vector.multi_reduction <add>, %378, %cst_101 [1] : vector<8x32xf32> to vector<8xf32>
    %380 = vector.shape_cast %379 : vector<8xf32> to vector<8x1xf32>
    %381 = arith.addf %376, %380 : vector<8x1xf32>
    %382 = arith.negf %381 : vector<8x1xf32>
    %383 = math.exp %382 : vector<8x1xf32>
    %cst_102 = arith.constant 1.000000e+00 : f32
    %384 = vector.broadcast %cst_102 : f32 to vector<8x1xf32>
    %385 = arith.addf %384, %383 : vector<8x1xf32>
    %386 = arith.divf %384, %385 : vector<8x1xf32>
    %387 = math.exp %386 : vector<8x1xf32>
    %388 = vector.broadcast %387 : vector<8x1xf32> to vector<8x32xf32>
    %389 = arith.mulf %388, %373 : vector<8x32xf32>
    %390 = arith.addf %336, %389 : vector<8x32xf32>
    %391 = arith.addf %337, %387 : vector<8x1xf32>
    %392 = vector.broadcast %391 : vector<8x1xf32> to vector<8x32xf32>
    %393 = arith.divf %390, %392 : vector<8x32xf32>
    %394 = arith.index_cast %c6_i32 : i32 to index
    %c0_103 = arith.constant 0 : index
    %c0_104 = arith.constant 0 : index
    %395 = vector.load %arg7[%394, %c0_103, %c0_104] : memref<8x8x32xf32, #tpu.memory_space<vmem>>, vector<1x8x32xf32>
    %396 = vector.shape_cast %395 : vector<1x8x32xf32> to vector<8x32xf32>
    %397 = vector.shape_cast %393 : vector<8x32xf32> to vector<1x8x32xf32>
    tpu.vector_store %arg7[%394, %c0_103, %c0_104], %397 {strides = array<i32>} : memref<8x8x32xf32, #tpu.memory_space<vmem>>, vector<1x8x32xf32>,
    %c7_i32 = arith.constant 7 : i32
    %398 = arith.index_cast %c7_i32 : i32 to index
    %c0_105 = arith.constant 0 : index
    %c0_106 = arith.constant 0 : index
    %399 = vector.load %arg8[%398, %c0_105, %c0_106] : memref<8x8x128xf32, #tpu.memory_space<vmem>>, vector<1x8x128xf32>
    %400 = vector.shape_cast %399 : vector<1x8x128xf32> to vector<8x128xf32>
    %cst_107 = arith.constant dense<0.000000e+00> : vector<8x128xf32>
    %401 = tpu.matmul %373, %16, %cst_107 {dimension_numbers = #tpu.dot_dimension_numbers<[1], [0], [0], [1], [0, 0, 1, 1], [], []>, precision = #tpu.contract_precision<fp32>} : vector<8x32xf32>, vector<32x128xf32>, vector<8x128xf32> -> vector<8x128xf32>
    %402 = arith.addf %400, %401 : vector<8x128xf32>
    %403 = vector.extract_strided_slice %402 {offsets = [0, 0], sizes = [8, 32], strides = [1, 1]} : vector<8x128xf32> to vector<8x32xf32>
    %404 = arith.negf %403 : vector<8x32xf32>
    %405 = math.exp %404 : vector<8x32xf32>
    %cst_108 = arith.constant 1.000000e+00 : f32
    %406 = vector.broadcast %cst_108 : f32 to vector<8x32xf32>
    %407 = arith.addf %406, %405 : vector<8x32xf32>
    %408 = arith.divf %406, %407 : vector<8x32xf32>
    %409 = vector.extract_strided_slice %402 {offsets = [0, 32], sizes = [8, 32], strides = [1, 1]} : vector<8x128xf32> to vector<8x32xf32>
    %410 = arith.negf %409 : vector<8x32xf32>
    %411 = math.exp %410 : vector<8x32xf32>
    %cst_109 = arith.constant 1.000000e+00 : f32
    %412 = vector.broadcast %cst_109 : f32 to vector<8x32xf32>
    %413 = arith.addf %412, %411 : vector<8x32xf32>
    %414 = arith.divf %412, %413 : vector<8x32xf32>
    %415 = vector.extract_strided_slice %402 {offsets = [0, 64], sizes = [8, 32], strides = [1, 1]} : vector<8x128xf32> to vector<8x32xf32>
    %416 = math.tanh %415 : vector<8x32xf32>
    %417 = vector.extract_strided_slice %402 {offsets = [0, 96], sizes = [8, 32], strides = [1, 1]} : vector<8x128xf32> to vector<8x32xf32>
    %418 = arith.negf %417 : vector<8x32xf32>
    %419 = math.exp %418 : vector<8x32xf32>
    %cst_110 = arith.constant 1.000000e+00 : f32
    %420 = vector.broadcast %cst_110 : f32 to vector<8x32xf32>
    %421 = arith.addf %420, %419 : vector<8x32xf32>
    %422 = arith.divf %420, %421 : vector<8x32xf32>
    %423 = arith.mulf %414, %371 : vector<8x32xf32>
    %424 = arith.mulf %408, %416 : vector<8x32xf32>
    %425 = arith.addf %423, %424 : vector<8x32xf32>
    %426 = math.tanh %425 : vector<8x32xf32>
    %427 = arith.mulf %422, %426 : vector<8x32xf32>
    %428 = arith.index_cast %c7_i32 : i32 to index
    %c0_111 = arith.constant 0 : index
    %c0_112 = arith.constant 0 : index
    %429 = vector.load %arg9[%428, %c0_111, %c0_112] : memref<8x8x1xf32, #tpu.memory_space<vmem>>, vector<1x8x1xf32>
    %430 = vector.shape_cast %429 : vector<1x8x1xf32> to vector<8x1xf32>
    %431 = vector.broadcast %17 : vector<1x32xf32> to vector<8x32xf32>
    %432 = arith.mulf %427, %431 : vector<8x32xf32>
    %cst_113 = arith.constant dense<0.000000e+00> : vector<8xf32>
    %433 = vector.multi_reduction <add>, %432, %cst_113 [1] : vector<8x32xf32> to vector<8xf32>
    %434 = vector.shape_cast %433 : vector<8xf32> to vector<8x1xf32>
    %435 = arith.addf %430, %434 : vector<8x1xf32>
    %436 = arith.negf %435 : vector<8x1xf32>
    %437 = math.exp %436 : vector<8x1xf32>
    %cst_114 = arith.constant 1.000000e+00 : f32
    %438 = vector.broadcast %cst_114 : f32 to vector<8x1xf32>
    %439 = arith.addf %438, %437 : vector<8x1xf32>
    %440 = arith.divf %438, %439 : vector<8x1xf32>
    %441 = math.exp %440 : vector<8x1xf32>
    %442 = vector.broadcast %441 : vector<8x1xf32> to vector<8x32xf32>
    %443 = arith.mulf %442, %427 : vector<8x32xf32>
    %444 = arith.addf %390, %443 : vector<8x32xf32>
    %445 = arith.addf %391, %441 : vector<8x1xf32>
    %446 = vector.broadcast %445 : vector<8x1xf32> to vector<8x32xf32>
    %447 = arith.divf %444, %446 : vector<8x32xf32>
    %448 = arith.index_cast %c7_i32 : i32 to index
    %c0_115 = arith.constant 0 : index
    %c0_116 = arith.constant 0 : index
    %449 = vector.load %arg7[%448, %c0_115, %c0_116] : memref<8x8x32xf32, #tpu.memory_space<vmem>>, vector<1x8x32xf32>
    %450 = vector.shape_cast %449 : vector<1x8x32xf32> to vector<8x32xf32>
    %451 = vector.shape_cast %447 : vector<8x32xf32> to vector<1x8x32xf32>
    tpu.vector_store %arg7[%448, %c0_115, %c0_116], %451 {strides = array<i32>} : memref<8x8x32xf32, #tpu.memory_space<vmem>>, vector<1x8x32xf32>,
    %c8_i32 = arith.constant 8 : i32
    return
  }
  func.func @transform_0(%arg0: i32) -> (i32, i32, i32) {
    %c0_i32 = arith.constant 0 : i32
    %c0_i32_0 = arith.constant 0 : i32
    %c0_i32_1 = arith.constant 0 : i32
    return %c0_i32, %arg0, %c0_i32_0 : i32, i32, i32
  }
  func.func @transform_1(%arg0: i32) -> (i32, i32) {
    %c0_i32 = arith.constant 0 : i32
    %c0_i32_0 = arith.constant 0 : i32
    %c0_i32_1 = arith.constant 0 : i32
    return %c0_i32, %c0_i32_0 : i32, i32
  }
  func.func @transform_2(%arg0: i32) -> (i32, i32) {
    %c0_i32 = arith.constant 0 : i32
    %c0_i32_0 = arith.constant 0 : i32
    %c0_i32_1 = arith.constant 0 : i32
    return %c0_i32, %c0_i32_0 : i32, i32
  }
  func.func @transform_3(%arg0: i32) -> (i32, i32) {
    %c0_i32 = arith.constant 0 : i32
    %c0_i32_0 = arith.constant 0 : i32
    %c0_i32_1 = arith.constant 0 : i32
    return %c0_i32, %c0_i32_0 : i32, i32
  }
  func.func @transform_4(%arg0: i32) -> (i32, i32) {
    %c0_i32 = arith.constant 0 : i32
    %c0_i32_0 = arith.constant 0 : i32
    %c0_i32_1 = arith.constant 0 : i32
    return %c0_i32, %c0_i32_0 : i32, i32
  }
  func.func @transform_5(%arg0: i32) -> (i32, i32) {
    %c0_i32 = arith.constant 0 : i32
    %c0_i32_0 = arith.constant 0 : i32
    %c0_i32_1 = arith.constant 0 : i32
    return %c0_i32, %c0_i32_0 : i32, i32
  }
  func.func @transform_6(%arg0: i32) -> (i32, i32, i32) {
    %c0_i32 = arith.constant 0 : i32
    %c0_i32_0 = arith.constant 0 : i32
    %c0_i32_1 = arith.constant 0 : i32
    return %c0_i32, %arg0, %c0_i32_0 : i32, i32, i32
  }
}

</mosaic_0001>

<llo_original>
// kernel: tpu_custom_call.1
$region0: #{tpu_custom_call.1}
  #allocation0 [shape = 'u32[]', space=smem, size = 0x4, offset = 0x4, fixed_abs, tag = 'smem constant byte address 0x4 - core index']
  #allocation1 [shape = 'u32[72,128]{1,0:T(1,128)}', space=vmem, size = 0x9000, scoped, tag = 'internal scratch']
  #allocation2 [shape = 'f32[8,8,128]{2,1,0:T(8,128)}', space=vmem, size = 0x8000, scoped, tag = 'scratch operand']
  #allocation3 [shape = 'f32[8,8,1]{2,1,0:T(8,128)}', space=vmem, size = 0x8000, scoped, tag = 'scratch operand']
  %s0 = inlined_call_operand.hbm [shape: f32[8,8,32], index: 0, kind: input, shape index: {}]
  %s1 = inlined_call_operand.hbm [shape: f32[32,128], index: 1, kind: input, shape index: {}]
  %s2 = inlined_call_operand.hbm [shape: f32[32,128], index: 2, kind: input, shape index: {}]
  %s3 = inlined_call_operand.vmem [shape: f32[1,128], index: 3, kind: input, shape index: {}]
  %s4 = inlined_call_operand.vmem [shape: f32[1,32], index: 4, kind: input, shape index: {}]
  %s5 = inlined_call_operand.vmem [shape: f32[1,32], index: 5, kind: input, shape index: {}]
  %s6 = inlined_call_operand.hbm [shape: f32[8,8,32], index: 6, kind: output, shape index: {}]
  %s7 = sld [smem:[#allocation0]]
  $region46: #{tpu_custom_call.1} parent=0
    _
  %s9 = ssub.s32 1, %s7
  %s10 = scalar_select 0, %s9, %s7
  $region1: #{tpu_custom_call.1} parent=0
    #allocation4 [shape = 'u8[32768]{0}', space=vmem, size = 0x8000, scoped, tag = 'input window, operand 0, single buffered']
    #allocation5 [shape = 's32[1]{0}', space=sflag, size = 0x4, scoped, tag = 'scoped memory for tpu_custom_call.1']
    #allocation6 [shape = 's32[1]{0}', space=sflag, size = 0x4, scoped, tag = 'scoped memory for tpu_custom_call.1']
    #allocation7 [shape = 'u8[16384]{0}', space=vmem, size = 0x4000, scoped, tag = 'input window, operand 1, single buffered']
    #allocation8 [shape = 's32[1]{0}', space=sflag, size = 0x4, scoped, tag = 'scoped memory for tpu_custom_call.1']
    #allocation9 [shape = 'u8[16384]{0}', space=vmem, size = 0x4000, scoped, tag = 'input window, operand 2, single buffered']
    #allocation10 [shape = 'u8[32768]{0}', space=vmem, size = 0x8000, scoped, tag = 'output window, operand 0, single buffered']
    %11 = vsyncpa [#allocation5], 0
    %12 = vsyncpa [#allocation8], 0
    %13 = vsyncpa [#allocation6], 0
    // Predicated region
    $region2: #{tpu_custom_call.1} parent=1 // pred_check
      _
    $region3: #{tpu_custom_call.1} parent=1 // pred_check_branch
      %15 = sbr.rel (0) target = $region5
    $region4: #{tpu_custom_call.1} parent=1 // pred_region
      %17 = vsyncadd [#allocation5], 0
      %s18 = sshll.u32 %s0, 4
      %s19 = int_to_ptr.hbm [resolvable:$true] %s18
      %s20 = sshll.u32 [#allocation4], 4
      %s21 = int_to_ptr.vmem [resolvable:$true] %s20
      %26 = dma.hbm_to_vmem [thread:$0]  %s19, 1024, %s21, [#allocation5], 128, 128, 8
    $region5: #{tpu_custom_call.1} parent=1 // pred_fallthru
      _
    // Predicated region
    $region6: #{tpu_custom_call.1} parent=1 // pred_check
      _
    $region7: #{tpu_custom_call.1} parent=1 // pred_check_branch
      %28 = sbr.rel (0) target = $region9
    $region8: #{tpu_custom_call.1} parent=1 // pred_region
      %30 = vsyncadd [#allocation8], 0
      %s31 = sshll.u32 %s1, 4
      %s32 = int_to_ptr.hbm [resolvable:$true] %s31
      %s33 = sshll.u32 [#allocation7], 4
      %s34 = int_to_ptr.vmem [resolvable:$true] %s33
      %39 = dma.hbm_to_vmem [thread:$0]  %s32, 512, %s34, [#allocation8], 128, 128, 8
    $region9: #{tpu_custom_call.1} parent=1 // pred_fallthru
      _
    // Predicated region
    $region10: #{tpu_custom_call.1} parent=1 // pred_check
      _
    $region11: #{tpu_custom_call.1} parent=1 // pred_check_branch
      %41 = sbr.rel (0) target = $region13
    $region12: #{tpu_custom_call.1} parent=1 // pred_region
      %43 = vsyncadd [#allocation8], 0
      %s44 = sshll.u32 %s2, 4
      %s45 = int_to_ptr.hbm [resolvable:$true] %s44
      %s46 = sshll.u32 [#allocation9], 4
      %s47 = int_to_ptr.vmem [resolvable:$true] %s46
      %52 = dma.hbm_to_vmem [thread:$0]  %s45, 512, %s47, [#allocation8], 128, 128, 8
    $region13: #{tpu_custom_call.1} parent=1 // pred_fallthru
      _
    // Predicated region
    $region14: #{tpu_custom_call.1} parent=1 // pred_check
      _
    $region15: #{tpu_custom_call.1} parent=1 // pred_check_branch
      %54 = sbr.rel (0) target = $region17
    $region16: #{tpu_custom_call.1} parent=1 // pred_region
      _
    $region17: #{tpu_custom_call.1} parent=1 // pred_fallthru
      _
    // Predicated region
    $region18: #{tpu_custom_call.1} parent=1 // pred_check
      _
    $region19: #{tpu_custom_call.1} parent=1 // pred_check_branch
      %56 = sbr.rel (0) target = $region21
    $region20: #{tpu_custom_call.1} parent=1 // pred_region
      _
    $region21: #{tpu_custom_call.1} parent=1 // pred_fallthru
      _
    // Predicated region
    $region22: #{tpu_custom_call.1} parent=1 // pred_check
      _
    $region23: #{tpu_custom_call.1} parent=1 // pred_check_branch
      %58 = sbr.rel (0) target = $region25
    $region24: #{tpu_custom_call.1} parent=1 // pred_region
      _
    $region25: #{tpu_custom_call.1} parent=1 // pred_fallthru
      _
    // Predicated region
    $region26: #{tpu_custom_call.1} parent=1 // pred_check
      _
    $region27: #{tpu_custom_call.1} parent=1 // pred_check_branch
      %60 = sbr.rel (0) target = $region29
    $region28: #{tpu_custom_call.1} parent=1 // pred_region
      %62 = dma.done [#allocation5], 1024
    $region29: #{tpu_custom_call.1} parent=1 // pred_fallthru
      _
    // Predicated region
    $region30: #{tpu_custom_call.1} parent=1 // pred_check
      _
    $region31: #{tpu_custom_call.1} parent=1 // pred_check_branch
      %64 = sbr.rel (0) target = $region33
    $region32: #{tpu_custom_call.1} parent=1 // pred_region
      %66 = dma.done [#allocation8], 512
    $region33: #{tpu_custom_call.1} parent=1 // pred_fallthru
      _
    // Predicated region
    $region34: #{tpu_custom_call.1} parent=1 // pred_check
      _
    $region35: #{tpu_custom_call.1} parent=1 // pred_check_branch
      %68 = sbr.rel (0) target = $region37
    $region36: #{tpu_custom_call.1} parent=1 // pred_region
      %70 = dma.done [#allocation8], 512
    $region37: #{tpu_custom_call.1} parent=1 // pred_fallthru
      _
    %v71 = vld [vmem:[#allocation4] sm:$0xff]
    %v72 = vld [vmem:[#allocation4 + $0x8] sm:$0xff]
    %v73 = vld [vmem:[#allocation4 + $0x10] sm:$0xff]
    %v74 = vld [vmem:[#allocation4 + $0x18] sm:$0xff]
    %v75 = vld [vmem:[#allocation4 + $0x20] sm:$0xff]
    %v76 = vld [vmem:[#allocation4 + $0x28] sm:$0xff]
    %v77 = vld [vmem:[#allocation4 + $0x30] sm:$0xff]
    %v78 = vld [vmem:[#allocation4 + $0x38] sm:$0xff]
    %v79 = vld [vmem:[#allocation7] sm:$0xff]
    %v80 = vld [vmem:[#allocation7 + $0x8] sm:$0xff]
    %v81 = vld [vmem:[#allocation7 + $0x10] sm:$0xff]
    %v82 = vld [vmem:[#allocation7 + $0x18] sm:$0xff]
    %v83 = vld [vmem:[%s3] sm:$0x1]
    %v85 = vperm.slane %v83, 0
    %vm87 = vcmask 261120
    %v89 = vsel %vm87, %v71, 0
    %v92 = vsel %vm87, %v72, 0
    %v95 = vsel %vm87, %v73, 0
    %v98 = vsel %vm87, %v74, 0
    %v101 = vsel %vm87, %v75, 0
    %v104 = vsel %vm87, %v76, 0
    %v107 = vsel %vm87, %v77, 0
    %v110 = vsel %vm87, %v78, 0
    %112 = vmatpush.msra.mxu0 0.0
    %113 = vmatpush.msra.mxu0 0.0
    %114 = vmatpush.msra.mxu0 0.0
    %115 = vmatpush.msra.mxu0 0.0
    %116 = vmatpush.msra.mxu0 0.0
    %117 = vmatpush.msra.mxu0 0.0
    %118 = vmatpush.msra.mxu0 0.0
    %119 = vmatpush.msra.mxu0 0.0
    %120 = vmatpush.msra.mxu0 0.0
    %121 = vmatpush.msra.mxu0 0.0
    %122 = vmatpush.msra.mxu0 0.0
    %123 = vmatpush.msra.mxu0 0.0
    %v124 = vand.u32 %v82, 4294901760
    %125 = vmatpush.msra.mxu0 %v124
    %v126 = vand.u32 %v81, 4294901760
    %127 = vmatpush.msra.mxu0 %v126
    %v128 = vand.u32 %v80, 4294901760
    %129 = vmatpush.msra.mxu0 %v128
    %v130 = vand.u32 %v79, 4294901760
    %131 = vmatpush.msra.mxu0 %v130
    %v132 = vand.u32 %v89, 4294901760
    %v133 = vsub.f32 %v89, %v132
    %v134 = vand.u32 %v133, 4294901760
    %v135 = vsub.f32 %v133, %v134
    %v136 = vand.u32 %v135, 4294901760
    %137 = vmatmul.f32.gmra.mxu0 %v136
    %v138 = vpop.f32.mrf.mxu0
    %v139 = vadd.f32 %v85, %v138
    %v140 = vand.u32 %v92, 4294901760
    %v141 = vsub.f32 %v92, %v140
    %v142 = vand.u32 %v141, 4294901760
    %v143 = vsub.f32 %v141, %v142
    %v144 = vand.u32 %v143, 4294901760
    %145 = vmatmul.f32.gmra.mxu0 %v144
    %v146 = vpop.f32.mrf.mxu0
    %v147 = vadd.f32 %v85, %v146
    %v148 = vand.u32 %v95, 4294901760
    %v149 = vsub.f32 %v95, %v148
    %v150 = vand.u32 %v149, 4294901760
    %v151 = vsub.f32 %v149, %v150
    %v152 = vand.u32 %v151, 4294901760
    %153 = vmatmul.f32.gmra.mxu0 %v152
    %v154 = vpop.f32.mrf.mxu0
    %v155 = vadd.f32 %v85, %v154
    %v156 = vand.u32 %v98, 4294901760
    %v157 = vsub.f32 %v98, %v156
    %v158 = vand.u32 %v157, 4294901760
    %v159 = vsub.f32 %v157, %v158
    %v160 = vand.u32 %v159, 4294901760
    %161 = vmatmul.f32.gmra.mxu0 %v160
    %v162 = vpop.f32.mrf.mxu0
    %v163 = vadd.f32 %v85, %v162
    %v164 = vand.u32 %v101, 4294901760
    %v165 = vsub.f32 %v101, %v164
    %v166 = vand.u32 %v165, 4294901760
    %v167 = vsub.f32 %v165, %v166
    %v168 = vand.u32 %v167, 4294901760
    %169 = vmatmul.f32.gmra.mxu0 %v168
    %v170 = vpop.f32.mrf.mxu0
    %v171 = vadd.f32 %v85, %v170
    %v172 = vand.u32 %v104, 4294901760
    %v173 = vsub.f32 %v104, %v172
    %v174 = vand.u32 %v173, 4294901760
    %v175 = vsub.f32 %v173, %v174
    %v176 = vand.u32 %v175, 4294901760
    %177 = vmatmul.f32.gmra.mxu0 %v176
    %v178 = vpop.f32.mrf.mxu0
    %v179 = vadd.f32 %v85, %v178
    %v180 = vand.u32 %v107, 4294901760
    %v181 = vsub.f32 %v107, %v180
    %v182 = vand.u32 %v181, 4294901760
    %v183 = vsub.f32 %v181, %v182
    %v184 = vand.u32 %v183, 4294901760
    %185 = vmatmul.f32.gmra.mxu0 %v184
    %v186 = vpop.f32.mrf.mxu0
    %v187 = vadd.f32 %v85, %v186
    %v188 = vand.u32 %v110, 4294901760
    %v189 = vsub.f32 %v110, %v188
    %v190 = vand.u32 %v189, 4294901760
    %v191 = vsub.f32 %v189, %v190
    %v192 = vand.u32 %v191, 4294901760
    %193 = vmatmul.f32.gmra.mxu0 %v192
    %v194 = vpop.f32.mrf.mxu0
    %v195 = vadd.f32 %v85, %v194
    %196 = vdwg.mxu0
    %197 = vmatpush.msra.mxu0 0.0
    %198 = vmatpush.msra.mxu0 0.0
    %199 = vmatpush.msra.mxu0 0.0
    %200 = vmatpush.msra.mxu0 0.0
    %201 = vmatpush.msra.mxu0 0.0
    %202 = vmatpush.msra.mxu0 0.0
    %203 = vmatpush.msra.mxu0 0.0
    %204 = vmatpush.msra.mxu0 0.0
    %205 = vmatpush.msra.mxu0 0.0
    %206 = vmatpush.msra.mxu0 0.0
    %207 = vmatpush.msra.mxu0 0.0
    %208 = vmatpush.msra.mxu0 0.0
    %v209 = vand.u32 %v82, 4294901760
    %v210 = vsub.f32 %v82, %v209
    %v211 = vand.u32 %v210, 4294901760
    %v212 = vsub.f32 %v210, %v211
    %v213 = vand.u32 %v212, 4294901760
    %214 = vmatpush.msra.mxu0 %v213
    %v215 = vand.u32 %v81, 4294901760
    %v216 = vsub.f32 %v81, %v215
    %v217 = vand.u32 %v216, 4294901760
    %v218 = vsub.f32 %v216, %v217
    %v219 = vand.u32 %v218, 4294901760
    %220 = vmatpush.msra.mxu0 %v219
    %v221 = vand.u32 %v80, 4294901760
    %v222 = vsub.f32 %v80, %v221
    %v223 = vand.u32 %v222, 4294901760
    %v224 = vsub.f32 %v222, %v223
    %v225 = vand.u32 %v224, 4294901760
    %226 = vmatpush.msra.mxu0 %v225
    %v227 = vand.u32 %v79, 4294901760
    %v228 = vsub.f32 %v79, %v227
    %v229 = vand.u32 %v228, 4294901760
    %v230 = vsub.f32 %v228, %v229
    %v231 = vand.u32 %v230, 4294901760
    %232 = vmatpush.msra.mxu0 %v231
    %v233 = vand.u32 %v89, 4294901760
    %234 = vmatmul.f32.gmra.mxu0 %v233
    %v235 = vpop.f32.mrf.mxu0
    %v236 = vadd.f32 %v139, %v235
    %v237 = vand.u32 %v92, 4294901760
    %238 = vmatmul.f32.gmra.mxu0 %v237
    %v239 = vpop.f32.mrf.mxu0
    %v240 = vadd.f32 %v147, %v239
    %v241 = vand.u32 %v95, 4294901760
    %242 = vmatmul.f32.gmra.mxu0 %v241
    %v243 = vpop.f32.mrf.mxu0
    %v244 = vadd.f32 %v155, %v243
    %v245 = vand.u32 %v98, 4294901760
    %246 = vmatmul.f32.gmra.mxu0 %v245
    %v247 = vpop.f32.mrf.mxu0
    %v248 = vadd.f32 %v163, %v247
    %v249 = vand.u32 %v101, 4294901760
    %250 = vmatmul.f32.gmra.mxu0 %v249
    %v251 = vpop.f32.mrf.mxu0
    %v252 = vadd.f32 %v171, %v251
    %v253 = vand.u32 %v104, 4294901760
    %254 = vmatmul.f32.gmra.mxu0 %v253
    %v255 = vpop.f32.mrf.mxu0
    %v256 = vadd.f32 %v179, %v255
    %v257 = vand.u32 %v107, 4294901760
    %258 = vmatmul.f32.gmra.mxu0 %v257
    %v259 = vpop.f32.mrf.mxu0
    %v260 = vadd.f32 %v187, %v259
    %v261 = vand.u32 %v110, 4294901760
    %262 = vmatmul.f32.gmra.mxu0 %v261
    %v263 = vpop.f32.mrf.mxu0
    %v264 = vadd.f32 %v195, %v263
    %265 = vdwg.mxu0
    %266 = vmatpush.msra.mxu0 0.0
    %267 = vmatpush.msra.mxu0 0.0
    %268 = vmatpush.msra.mxu0 0.0
    %269 = vmatpush.msra.mxu0 0.0
    %270 = vmatpush.msra.mxu0 0.0
    %271 = vmatpush.msra.mxu0 0.0
    %272 = vmatpush.msra.mxu0 0.0
    %273 = vmatpush.msra.mxu0 0.0
    %274 = vmatpush.msra.mxu0 0.0
    %275 = vmatpush.msra.mxu0 0.0
    %276 = vmatpush.msra.mxu0 0.0
    %277 = vmatpush.msra.mxu0 0.0
    %v278 = vand.u32 %v82, 4294901760
    %v279 = vsub.f32 %v82, %v278
    %280 = vmatpush.msra.mxu0 %v279
    %v281 = vand.u32 %v81, 4294901760
    %v282 = vsub.f32 %v81, %v281
    %283 = vmatpush.msra.mxu0 %v282
    %v284 = vand.u32 %v80, 4294901760
    %v285 = vsub.f32 %v80, %v284
    %286 = vmatpush.msra.mxu0 %v285
    %v287 = vand.u32 %v79, 4294901760
    %v288 = vsub.f32 %v79, %v287
    %289 = vmatpush.msra.mxu0 %v288
    %v290 = vand.u32 %v89, 4294901760
    %v291 = vsub.f32 %v89, %v290
    %292 = vmatmul.f32.gmra.mxu0 %v291
    %v293 = vpop.f32.mrf.mxu0
    %v294 = vadd.f32 %v236, %v293
    %v295 = vand.u32 %v92, 4294901760
    %v296 = vsub.f32 %v92, %v295
    %297 = vmatmul.f32.gmra.mxu0 %v296
    %v298 = vpop.f32.mrf.mxu0
    %v299 = vadd.f32 %v240, %v298
    %v300 = vand.u32 %v95, 4294901760
    %v301 = vsub.f32 %v95, %v300
    %302 = vmatmul.f32.gmra.mxu0 %v301
    %v303 = vpop.f32.mrf.mxu0
    %v304 = vadd.f32 %v244, %v303
    %v305 = vand.u32 %v98, 4294901760
    %v306 = vsub.f32 %v98, %v305
    %307 = vmatmul.f32.gmra.mxu0 %v306
    %v308 = vpop.f32.mrf.mxu0
    %v309 = vadd.f32 %v248, %v308
    %v310 = vand.u32 %v101, 4294901760
    %v311 = vsub.f32 %v101, %v310
    %312 = vmatmul.f32.gmra.mxu0 %v311
    %v313 = vpop.f32.mrf.mxu0
    %v314 = vadd.f32 %v252, %v313
    %v315 = vand.u32 %v104, 4294901760
    %v316 = vsub.f32 %v104, %v315
    %317 = vmatmul.f32.gmra.mxu0 %v316
    %v318 = vpop.f32.mrf.mxu0
    %v319 = vadd.f32 %v256, %v318
    %v320 = vand.u32 %v107, 4294901760
    %v321 = vsub.f32 %v107, %v320
    %322 = vmatmul.f32.gmra.mxu0 %v321
    %v323 = vpop.f32.mrf.mxu0
    %v324 = vadd.f32 %v260, %v323
    %v325 = vand.u32 %v110, 4294901760
    %v326 = vsub.f32 %v110, %v325
    %327 = vmatmul.f32.gmra.mxu0 %v326
    %v328 = vpop.f32.mrf.mxu0
    %v329 = vadd.f32 %v264, %v328
    %330 = vdwg.mxu0
    %331 = vmatpush.msra.mxu0 0.0
    %332 = vmatpush.msra.mxu0 0.0
    %333 = vmatpush.msra.mxu0 0.0
    %334 = vmatpush.msra.mxu0 0.0
    %335 = vmatpush.msra.mxu0 0.0
    %336 = vmatpush.msra.mxu0 0.0
    %337 = vmatpush.msra.mxu0 0.0
    %338 = vmatpush.msra.mxu0 0.0
    %339 = vmatpush.msra.mxu0 0.0
    %340 = vmatpush.msra.mxu0 0.0
    %341 = vmatpush.msra.mxu0 0.0
    %342 = vmatpush.msra.mxu0 0.0
    %v343 = vand.u32 %v82, 4294901760
    %344 = vmatpush.msra.mxu0 %v343
    %v345 = vand.u32 %v81, 4294901760
    %346 = vmatpush.msra.mxu0 %v345
    %v347 = vand.u32 %v80, 4294901760
    %348 = vmatpush.msra.mxu0 %v347
    %v349 = vand.u32 %v79, 4294901760
    %350 = vmatpush.msra.mxu0 %v349
    %v351 = vand.u32 %v89, 4294901760
    %v352 = vsub.f32 %v89, %v351
    %v353 = vand.u32 %v352, 4294901760
    %354 = vmatmul.f32.gmra.mxu0 %v353
    %v355 = vpop.f32.mrf.mxu0
    %v356 = vadd.f32 %v294, %v355
    %v357 = vand.u32 %v92, 4294901760
    %v358 = vsub.f32 %v92, %v357
    %v359 = vand.u32 %v358, 4294901760
    %360 = vmatmul.f32.gmra.mxu0 %v359
    %v361 = vpop.f32.mrf.mxu0
    %v362 = vadd.f32 %v299, %v361
    %v363 = vand.u32 %v95, 4294901760
    %v364 = vsub.f32 %v95, %v363
    %v365 = vand.u32 %v364, 4294901760
    %366 = vmatmul.f32.gmra.mxu0 %v365
    %v367 = vpop.f32.mrf.mxu0
    %v368 = vadd.f32 %v304, %v367
    %v369 = vand.u32 %v98, 4294901760
    %v370 = vsub.f32 %v98, %v369
    %v371 = vand.u32 %v370, 4294901760
    %372 = vmatmul.f32.gmra.mxu0 %v371
    %v373 = vpop.f32.mrf.mxu0
    %v374 = vadd.f32 %v309, %v373
    %v375 = vand.u32 %v101, 4294901760
    %v376 = vsub.f32 %v101, %v375
    %v377 = vand.u32 %v376, 4294901760
    %378 = vmatmul.f32.gmra.mxu0 %v377
    %v379 = vpop.f32.mrf.mxu0
    %v380 = vadd.f32 %v314, %v379
    %v381 = vand.u32 %v104, 4294901760
    %v382 = vsub.f32 %v104, %v381
    %v383 = vand.u32 %v382, 4294901760
    %384 = vmatmul.f32.gmra.mxu0 %v383
    %v385 = vpop.f32.mrf.mxu0
    %v386 = vadd.f32 %v319, %v385
    %v387 = vand.u32 %v107, 4294901760
    %v388 = vsub.f32 %v107, %v387
    %v389 = vand.u32 %v388, 4294901760
    %390 = vmatmul.f32.gmra.mxu0 %v389
    %v391 = vpop.f32.mrf.mxu0
    %v392 = vadd.f32 %v324, %v391
    %v393 = vand.u32 %v110, 4294901760
    %v394 = vsub.f32 %v110, %v393
    %v395 = vand.u32 %v394, 4294901760
    %396 = vmatmul.f32.gmra.mxu0 %v395
    %v397 = vpop.f32.mrf.mxu0
    %v398 = vadd.f32 %v329, %v397
    %399 = vdwg.mxu0
    %400 = vmatpush.msra.mxu0 0.0
    %401 = vmatpush.msra.mxu0 0.0
    %402 = vmatpush.msra.mxu0 0.0
    %403 = vmatpush.msra.mxu0 0.0
    %404 = vmatpush.msra.mxu0 0.0
    %405 = vmatpush.msra.mxu0 0.0
    %406 = vmatpush.msra.mxu0 0.0
    %407 = vmatpush.msra.mxu0 0.0
    %408 = vmatpush.msra.mxu0 0.0
    %409 = vmatpush.msra.mxu0 0.0
    %410 = vmatpush.msra.mxu0 0.0
    %411 = vmatpush.msra.mxu0 0.0
    %v412 = vand.u32 %v82, 4294901760
    %v413 = vsub.f32 %v82, %v412
    %v414 = vand.u32 %v413, 4294901760
    %415 = vmatpush.msra.mxu0 %v414
    %v416 = vand.u32 %v81, 4294901760
    %v417 = vsub.f32 %v81, %v416
    %v418 = vand.u32 %v417, 4294901760
    %419 = vmatpush.msra.mxu0 %v418
    %v420 = vand.u32 %v80, 4294901760
    %v421 = vsub.f32 %v80, %v420
    %v422 = vand.u32 %v421, 4294901760
    %423 = vmatpush.msra.mxu0 %v422
    %v424 = vand.u32 %v79, 4294901760
    %v425 = vsub.f32 %v79, %v424
    %v426 = vand.u32 %v425, 4294901760
    %427 = vmatpush.msra.mxu0 %v426
    %v428 = vand.u32 %v89, 4294901760
    %429 = vmatmul.f32.gmra.mxu0 %v428
    %v430 = vpop.f32.mrf.mxu0
    %v431 = vadd.f32 %v356, %v430
    %v432 = vand.u32 %v92, 4294901760
    %433 = vmatmul.f32.gmra.mxu0 %v432
    %v434 = vpop.f32.mrf.mxu0
    %v435 = vadd.f32 %v362, %v434
    %v436 = vand.u32 %v95, 4294901760
    %437 = vmatmul.f32.gmra.mxu0 %v436
    %v438 = vpop.f32.mrf.mxu0
    %v439 = vadd.f32 %v368, %v438
    %v440 = vand.u32 %v98, 4294901760
    %441 = vmatmul.f32.gmra.mxu0 %v440
    %v442 = vpop.f32.mrf.mxu0
    %v443 = vadd.f32 %v374, %v442
    %v444 = vand.u32 %v101, 4294901760
    %445 = vmatmul.f32.gmra.mxu0 %v444
    %v446 = vpop.f32.mrf.mxu0
    %v447 = vadd.f32 %v380, %v446
    %v448 = vand.u32 %v104, 4294901760
    %449 = vmatmul.f32.gmra.mxu0 %v448
    %v450 = vpop.f32.mrf.mxu0
    %v451 = vadd.f32 %v386, %v450
    %v452 = vand.u32 %v107, 4294901760
    %453 = vmatmul.f32.gmra.mxu0 %v452
    %v454 = vpop.f32.mrf.mxu0
    %v455 = vadd.f32 %v392, %v454
    %v456 = vand.u32 %v110, 4294901760
    %457 = vmatmul.f32.gmra.mxu0 %v456
    %v458 = vpop.f32.mrf.mxu0
    %v459 = vadd.f32 %v398, %v458
    %460 = vdwg.mxu0
    %461 = vmatpush.msra.mxu0 0.0
    %462 = vmatpush.msra.mxu0 0.0
    %463 = vmatpush.msra.mxu0 0.0
    %464 = vmatpush.msra.mxu0 0.0
    %465 = vmatpush.msra.mxu0 0.0
    %466 = vmatpush.msra.mxu0 0.0
    %467 = vmatpush.msra.mxu0 0.0
    %468 = vmatpush.msra.mxu0 0.0
    %469 = vmatpush.msra.mxu0 0.0
    %470 = vmatpush.msra.mxu0 0.0
    %471 = vmatpush.msra.mxu0 0.0
    %472 = vmatpush.msra.mxu0 0.0
    %v473 = vand.u32 %v82, 4294901760
    %474 = vmatpush.msra.mxu0 %v473
    %v475 = vand.u32 %v81, 4294901760
    %476 = vmatpush.msra.mxu0 %v475
    %v477 = vand.u32 %v80, 4294901760
    %478 = vmatpush.msra.mxu0 %v477
    %v479 = vand.u32 %v79, 4294901760
    %480 = vmatpush.msra.mxu0 %v479
    %v481 = vand.u32 %v89, 4294901760
    %482 = vmatmul.f32.gmra.mxu0 %v481
    %v483 = vpop.f32.mrf.mxu0
    %v484 = vadd.f32 %v431, %v483
    %v485 = vand.u32 %v92, 4294901760
    %486 = vmatmul.f32.gmra.mxu0 %v485
    %v487 = vpop.f32.mrf.mxu0
    %v488 = vadd.f32 %v435, %v487
    %v489 = vand.u32 %v95, 4294901760
    %490 = vmatmul.f32.gmra.mxu0 %v489
    %v491 = vpop.f32.mrf.mxu0
    %v492 = vadd.f32 %v439, %v491
    %v493 = vand.u32 %v98, 4294901760
    %494 = vmatmul.f32.gmra.mxu0 %v493
    %v495 = vpop.f32.mrf.mxu0
    %v496 = vadd.f32 %v443, %v495
    %v497 = vand.u32 %v101, 4294901760
    %498 = vmatmul.f32.gmra.mxu0 %v497
    %v499 = vpop.f32.mrf.mxu0
    %v500 = vadd.f32 %v447, %v499
    %v501 = vand.u32 %v104, 4294901760
    %502 = vmatmul.f32.gmra.mxu0 %v501
    %v503 = vpop.f32.mrf.mxu0
    %v504 = vadd.f32 %v451, %v503
    %v505 = vand.u32 %v107, 4294901760
    %506 = vmatmul.f32.gmra.mxu0 %v505
    %v507 = vpop.f32.mrf.mxu0
    %v508 = vadd.f32 %v455, %v507
    %v509 = vand.u32 %v110, 4294901760
    %510 = vmatmul.f32.gmra.mxu0 %v509
    %v511 = vpop.f32.mrf.mxu0
    %v512 = vadd.f32 %v459, %v511
    %513 = vdwg.mxu0
    %514 = vst [vmem:[#allocation2] sm:$0xff] %v484
    %515 = vst [vmem:[#allocation2 + $0x8] sm:$0xff] %v488
    %516 = vst [vmem:[#allocation2 + $0x10] sm:$0xff] %v492
    %517 = vst [vmem:[#allocation2 + $0x18] sm:$0xff] %v496
    %518 = vst [vmem:[#allocation2 + $0x20] sm:$0xff] %v500
    %519 = vst [vmem:[#allocation2 + $0x28] sm:$0xff] %v504
    %520 = vst [vmem:[#allocation2 + $0x30] sm:$0xff] %v508
    %521 = vst [vmem:[#allocation2 + $0x38] sm:$0xff] %v512
    %v522 = vld [vmem:[%s4] sm:$0x1]
    %v524 = vperm.slane %v522, 0
    %v526 = vmul.f32 %v71, %v524
    %v527 = vmul.f32 %v72, %v524
    %v528 = vmul.f32 %v73, %v524
    %v529 = vmul.f32 %v74, %v524
    %v530 = vmul.f32 %v75, %v524
    %v531 = vmul.f32 %v76, %v524
    %v532 = vmul.f32 %v77, %v524
    %v533 = vmul.f32 %v78, %v524
    %v534 = vsel %vm87, %v526, 0.0
    %535 = vadd.xlane.f32.xlu0 %v534
    %v536 = vpop.xlane.xlu0 %535
    %v537 = vsel %vm87, %v527, 0.0
    %538 = vadd.xlane.f32.xlu0 %v537
    %v539 = vpop.xlane.xlu0 %538
    %v540 = vsel %vm87, %v528, 0.0
    %541 = vadd.xlane.f32.xlu0 %v540
    %v542 = vpop.xlane.xlu0 %541
    %v543 = vsel %vm87, %v529, 0.0
    %544 = vadd.xlane.f32.xlu0 %v543
    %v545 = vpop.xlane.xlu0 %544
    %v546 = vsel %vm87, %v530, 0.0
    %547 = vadd.xlane.f32.xlu0 %v546
    %v548 = vpop.xlane.xlu0 %547
    %v549 = vsel %vm87, %v531, 0.0
    %550 = vadd.xlane.f32.xlu0 %v549
    %v551 = vpop.xlane.xlu0 %550
    %v552 = vsel %vm87, %v532, 0.0
    %553 = vadd.xlane.f32.xlu0 %v552
    %v554 = vpop.xlane.xlu0 %553
    %v555 = vsel %vm87, %v533, 0.0
    %556 = vadd.xlane.f32.xlu0 %v555
    %v557 = vpop.xlane.xlu0 %556
    %vm558 = vcmask 7168
    %559 = vst.msk [vmem:[#allocation3] sm:$0xff] %vm558, %v536
    %560 = vst.msk [vmem:[#allocation3 + $0x8] sm:$0xff] %vm558, %v539
    %561 = vst.msk [vmem:[#allocation3 + $0x10] sm:$0xff] %vm558, %v542
    %562 = vst.msk [vmem:[#allocation3 + $0x18] sm:$0xff] %vm558, %v545
    %563 = vst.msk [vmem:[#allocation3 + $0x20] sm:$0xff] %vm558, %v548
    %564 = vst.msk [vmem:[#allocation3 + $0x28] sm:$0xff] %vm558, %v551
    %565 = vst.msk [vmem:[#allocation3 + $0x30] sm:$0xff] %vm558, %v554
    %566 = vst.msk [vmem:[#allocation3 + $0x38] sm:$0xff] %vm558, %v557
    %v567 = vld [vmem:[#allocation9] sm:$0xff]
    %v568 = vld [vmem:[#allocation9 + $0x8] sm:$0xff]
    %v569 = vld [vmem:[#allocation9 + $0x10] sm:$0xff]
    %v570 = vld [vmem:[#allocation9 + $0x18] sm:$0xff]
    %v571 = vld [vmem:[%s5] sm:$0x1]
    %v572 = vld [vmem:[#allocation2] sm:$0xff]
    %v574 = vsel %vm87, 0.0, 0
    %576 = vmatpush.msra.mxu0 0.0
    %577 = vmatpush.msra.mxu0 0.0
    %578 = vmatpush.msra.mxu0 0.0
    %579 = vmatpush.msra.mxu0 0.0
    %580 = vmatpush.msra.mxu0 0.0
    %581 = vmatpush.msra.mxu0 0.0
    %582 = vmatpush.msra.mxu0 0.0
    %583 = vmatpush.msra.mxu0 0.0
    %584 = vmatpush.msra.mxu0 0.0
    %585 = vmatpush.msra.mxu0 0.0
    %586 = vmatpush.msra.mxu0 0.0
    %587 = vmatpush.msra.mxu0 0.0
    %v588 = vand.u32 %v570, 4294901760
    %589 = vmatpush.msra.mxu0 %v588
    %v590 = vand.u32 %v569, 4294901760
    %591 = vmatpush.msra.mxu0 %v590
    %v592 = vand.u32 %v568, 4294901760
    %593 = vmatpush.msra.mxu0 %v592
    %v594 = vand.u32 %v567, 4294901760
    %595 = vmatpush.msra.mxu0 %v594
    %v596 = vand.u32 %v574, 4294901760
    %v597 = vsub.f32 %v574, %v596
    %v598 = vand.u32 %v597, 4294901760
    %v599 = vsub.f32 %v597, %v598
    %v600 = vand.u32 %v599, 4294901760
    %601 = vmatmul.f32.gmra.mxu0 %v600
    %v602 = vpop.f32.mrf.mxu0
    %v603 = vadd.f32 0.0, %v602
    %604 = vdwg.mxu0
    %605 = vmatpush.msra.mxu0 0.0
    %606 = vmatpush.msra.mxu0 0.0
    %607 = vmatpush.msra.mxu0 0.0
    %608 = vmatpush.msra.mxu0 0.0
    %609 = vmatpush.msra.mxu0 0.0
    %610 = vmatpush.msra.mxu0 0.0
    %611 = vmatpush.msra.mxu0 0.0
    %612 = vmatpush.msra.mxu0 0.0
    %613 = vmatpush.msra.mxu0 0.0
    %614 = vmatpush.msra.mxu0 0.0
    %615 = vmatpush.msra.mxu0 0.0
    %616 = vmatpush.msra.mxu0 0.0
    %v617 = vand.u32 %v570, 4294901760
    %v618 = vsub.f32 %v570, %v617
    %v619 = vand.u32 %v618, 4294901760
    %v620 = vsub.f32 %v618, %v619
    %v621 = vand.u32 %v620, 4294901760
    %622 = vmatpush.msra.mxu0 %v621
    %v623 = vand.u32 %v569, 4294901760
    %v624 = vsub.f32 %v569, %v623
    %v625 = vand.u32 %v624, 4294901760
    %v626 = vsub.f32 %v624, %v625
    %v627 = vand.u32 %v626, 4294901760
    %628 = vmatpush.msra.mxu0 %v627
    %v629 = vand.u32 %v568, 4294901760
    %v630 = vsub.f32 %v568, %v629
    %v631 = vand.u32 %v630, 4294901760
    %v632 = vsub.f32 %v630, %v631
    %v633 = vand.u32 %v632, 4294901760
    %634 = vmatpush.msra.mxu0 %v633
    %v635 = vand.u32 %v567, 4294901760
    %v636 = vsub.f32 %v567, %v635
    %v637 = vand.u32 %v636, 4294901760
    %v638 = vsub.f32 %v636, %v637
    %v639 = vand.u32 %v638, 4294901760
    %640 = vmatpush.msra.mxu0 %v639
    %v641 = vand.u32 %v574, 4294901760
    %642 = vmatmul.f32.gmra.mxu0 %v641
    %v643 = vpop.f32.mrf.mxu0
    %v644 = vadd.f32 %v603, %v643
    %645 = vdwg.mxu0
    %646 = vmatpush.msra.mxu0 0.0
    %647 = vmatpush.msra.mxu0 0.0
    %648 = vmatpush.msra.mxu0 0.0
    %649 = vmatpush.msra.mxu0 0.0
    %650 = vmatpush.msra.mxu0 0.0
    %651 = vmatpush.msra.mxu0 0.0
    %652 = vmatpush.msra.mxu0 0.0
    %653 = vmatpush.msra.mxu0 0.0
    %654 = vmatpush.msra.mxu0 0.0
    %655 = vmatpush.msra.mxu0 0.0
    %656 = vmatpush.msra.mxu0 0.0
    %657 = vmatpush.msra.mxu0 0.0
    %v658 = vand.u32 %v570, 4294901760
    %v659 = vsub.f32 %v570, %v658
    %660 = vmatpush.msra.mxu0 %v659
    %v661 = vand.u32 %v569, 4294901760
    %v662 = vsub.f32 %v569, %v661
    %663 = vmatpush.msra.mxu0 %v662
    %v664 = vand.u32 %v568, 4294901760
    %v665 = vsub.f32 %v568, %v664
    %666 = vmatpush.msra.mxu0 %v665
    %v667 = vand.u32 %v567, 4294901760
    %v668 = vsub.f32 %v567, %v667
    %669 = vmatpush.msra.mxu0 %v668
    %v670 = vand.u32 %v574, 4294901760
    %v671 = vsub.f32 %v574, %v670
    %672 = vmatmul.f32.gmra.mxu0 %v671
    %v673 = vpop.f32.mrf.mxu0
    %v674 = vadd.f32 %v644, %v673
    %675 = vdwg.mxu0
    %676 = vmatpush.msra.mxu0 0.0
    %677 = vmatpush.msra.mxu0 0.0
    %678 = vmatpush.msra.mxu0 0.0
    %679 = vmatpush.msra.mxu0 0.0
    %680 = vmatpush.msra.mxu0 0.0
    %681 = vmatpush.msra.mxu0 0.0
    %682 = vmatpush.msra.mxu0 0.0
    %683 = vmatpush.msra.mxu0 0.0
    %684 = vmatpush.msra.mxu0 0.0
    %685 = vmatpush.msra.mxu0 0.0
    %686 = vmatpush.msra.mxu0 0.0
    %687 = vmatpush.msra.mxu0 0.0
    %v688 = vand.u32 %v570, 4294901760
    %689 = vmatpush.msra.mxu0 %v688
    %v690 = vand.u32 %v569, 4294901760
    %691 = vmatpush.msra.mxu0 %v690
    %v692 = vand.u32 %v568, 4294901760
    %693 = vmatpush.msra.mxu0 %v692
    %v694 = vand.u32 %v567, 4294901760
    %695 = vmatpush.msra.mxu0 %v694
    %v696 = vand.u32 %v574, 4294901760
    %v697 = vsub.f32 %v574, %v696
    %v698 = vand.u32 %v697, 4294901760
    %699 = vmatmul.f32.gmra.mxu0 %v698
    %v700 = vpop.f32.mrf.mxu0
    %v701 = vadd.f32 %v674, %v700
    %702 = vdwg.mxu0
    %703 = vmatpush.msra.mxu0 0.0
    %704 = vmatpush.msra.mxu0 0.0
    %705 = vmatpush.msra.mxu0 0.0
    %706 = vmatpush.msra.mxu0 0.0
    %707 = vmatpush.msra.mxu0 0.0
    %708 = vmatpush.msra.mxu0 0.0
    %709 = vmatpush.msra.mxu0 0.0
    %710 = vmatpush.msra.mxu0 0.0
    %711 = vmatpush.msra.mxu0 0.0
    %712 = vmatpush.msra.mxu0 0.0
    %713 = vmatpush.msra.mxu0 0.0
    %714 = vmatpush.msra.mxu0 0.0
    %v715 = vand.u32 %v570, 4294901760
    %v716 = vsub.f32 %v570, %v715
    %v717 = vand.u32 %v716, 4294901760
    %718 = vmatpush.msra.mxu0 %v717
    %v719 = vand.u32 %v569, 4294901760
    %v720 = vsub.f32 %v569, %v719
    %v721 = vand.u32 %v720, 4294901760
    %722 = vmatpush.msra.mxu0 %v721
    %v723 = vand.u32 %v568, 4294901760
    %v724 = vsub.f32 %v568, %v723
    %v725 = vand.u32 %v724, 4294901760
    %726 = vmatpush.msra.mxu0 %v725
    %v727 = vand.u32 %v567, 4294901760
    %v728 = vsub.f32 %v567, %v727
    %v729 = vand.u32 %v728, 4294901760
    %730 = vmatpush.msra.mxu0 %v729
    %v731 = vand.u32 %v574, 4294901760
    %732 = vmatmul.f32.gmra.mxu0 %v731
    %v733 = vpop.f32.mrf.mxu0
    %v734 = vadd.f32 %v701, %v733
    %735 = vdwg.mxu0
    %736 = vmatpush.msra.mxu0 0.0
    %737 = vmatpush.msra.mxu0 0.0
    %738 = vmatpush.msra.mxu0 0.0
    %739 = vmatpush.msra.mxu0 0.0
    %740 = vmatpush.msra.mxu0 0.0
    %741 = vmatpush.msra.mxu0 0.0
    %742 = vmatpush.msra.mxu0 0.0
    %743 = vmatpush.msra.mxu0 0.0
    %744 = vmatpush.msra.mxu0 0.0
    %745 = vmatpush.msra.mxu0 0.0
    %746 = vmatpush.msra.mxu0 0.0
    %747 = vmatpush.msra.mxu0 0.0
    %v748 = vand.u32 %v570, 4294901760
    %749 = vmatpush.msra.mxu0 %v748
    %v750 = vand.u32 %v569, 4294901760
    %751 = vmatpush.msra.mxu0 %v750
    %v752 = vand.u32 %v568, 4294901760
    %753 = vmatpush.msra.mxu0 %v752
    %v754 = vand.u32 %v567, 4294901760
    %755 = vmatpush.msra.mxu0 %v754
    %v756 = vand.u32 %v574, 4294901760
    %757 = vmatmul.f32.gmra.mxu0 %v756
    %v758 = vpop.f32.mrf.mxu0
    %v759 = vadd.f32 %v734, %v758
    %760 = vdwg.mxu0
    %v761 = vadd.f32 %v572, %v759
    %v762 = vxor.u32 %v761, 2147483648
    %v763 = vmul.f32 %v762, 1.442695
    %v764 = vpow.pop %v763
    %v765 = vadd.f32 %v764, 1.0
    %v766 = vrcp.pop %v765
    %v767 = vmul.f32 %v765, %v766
    %v768 = vsub.f32 1.0, %v767
    %v769 = vmul.f32 %v766, %v768
    %v770 = vadd.f32 %v766, %v769
    %vm771 = vweird.f32 %v765
    %vm772 = vweird.f32 %v766
    %vm773 = vmor %vm771, %vm772
    %v774 = vsel %vm773, %v766, %v770
    %v775 = vand.u32 2147483647, %v765
    %vm776 = vcmp.eq.f32.partialorder %v775, 8.507059e+37
    %v777 = vand.u32 %v765, 2147483648
    %v778 = vor.u32 1.1754944e-38, %v777
    %v779 = vsel %vm776, %v778, %v774
    %v780 = vmul.f32 1.0, %v779
    %v781 = vtanh.pop %v761
    %v782 = vmul.f32 %v780, 0.0
    %784 = vrot.lane.b32.xlu0 %v781, 64
    %v785 = vpop.permute.xlu0 %784
    %v787 = vmul.f32 %v780, %v785
    %789 = vrot.lane.b32.xlu0 %v787, 32
    %v790 = vpop.permute.xlu0 %789
    %v792 = vadd.f32 %v782, %v790
    %v793 = vtanh.pop %v792
    %795 = vrot.lane.b32.xlu0 %v793, 64
    %v796 = vpop.permute.xlu0 %795
    %v798 = vmul.f32 %v780, %v796
    %v799 = vld [vmem:[#allocation3] sm:$0xff]
    %v801 = vperm.slane %v571, 0
    %802 = vrot.lane.b32.xlu0 %v801, 96
    %v803 = vpop.permute.xlu0 %802
    %v805 = vmul.f32 %v798, %v803
    %807 = vrot.lane.b32.xlu0 %v805, 32
    %v808 = vpop.permute.xlu0 %807
    %v810 = vsel %vm87, %v808, 0.0
    %811 = vadd.xlane.f32.xlu0 %v810
    %v812 = vpop.xlane.xlu0 %811
    %v813 = vadd.f32 %v799, %v812
    %v814 = vxor.u32 %v813, 2147483648
    %v815 = vmul.f32 %v814, 1.442695
    %v816 = vpow.pop %v815
    %v817 = vadd.f32 %v816, 1.0
    %v818 = vrcp.pop %v817
    %v819 = vmul.f32 %v817, %v818
    %v820 = vsub.f32 1.0, %v819
    %v821 = vmul.f32 %v818, %v820
    %v822 = vadd.f32 %v818, %v821
    %vm823 = vweird.f32 %v817
    %vm824 = vweird.f32 %v818
    %vm825 = vmor %vm823, %vm824
    %v826 = vsel %vm825, %v818, %v822
    %v827 = vand.u32 2147483647, %v817
    %vm828 = vcmp.eq.f32.partialorder %v827, 8.507059e+37
    %v829 = vand.u32 %v817, 2147483648
    %v830 = vor.u32 1.1754944e-38, %v829
    %v831 = vsel %vm828, %v830, %v826
    %v832 = vmul.f32 1.0, %v831
    %v833 = vmul.f32 %v832, 1.442695
    %v834 = vpow.pop %v833
    %836 = vset.pattern.permute.xlu0 0
    %837 = vperm.xlu0 %836, %v834
    %v838 = vpop.permute.xlu0 %837
    %v840 = vmul.f32 %v838, %v798
    %v841 = vadd.f32 %v840, 0.0
    %v842 = vadd.f32 %v834, 0.0
    %844 = vset.pattern.permute.xlu0 0
    %845 = vperm.xlu0 %844, %v842
    %v846 = vpop.permute.xlu0 %845
    %v848 = vrcp.pop %v846
    %v849 = vmul.f32 %v846, %v848
    %v850 = vsub.f32 1.0, %v849
    %v851 = vmul.f32 %v848, %v850
    %v852 = vadd.f32 %v848, %v851
    %vm853 = vweird.f32 %v846
    %vm854 = vweird.f32 %v848
    %vm855 = vmor %vm853, %vm854
    %v856 = vsel %vm855, %v848, %v852
    %v857 = vand.u32 2147483647, %v846
    %vm858 = vcmp.eq.f32.partialorder %v857, 8.507059e+37
    %v859 = vand.u32 %v846, 2147483648
    %v860 = vor.u32 1.1754944e-38, %v859
    %v861 = vsel %vm858, %v860, %v856
    %v862 = vmul.f32 %v841, %v861
    %864 = vrot.lane.b32.xlu0 %v862, 32
    %v865 = vpop.permute.xlu0 %864
    %867 = vst.msk [vmem:[#allocation10] sm:$0xff] %vm87, %v865
    %s868 = scalar_lea.vmem [#allocation2], 8
    %v869 = vld [vmem:[%s868] sm:$0xff]
    %871 = vrot.lane.b32.xlu0 %v798, 32
    %v872 = vpop.permute.xlu0 %871
    %v873 = vsel %vm87, %v872, 0
    %875 = vmatpush.msra.mxu0 0.0
    %876 = vmatpush.msra.mxu0 0.0
    %877 = vmatpush.msra.mxu0 0.0
    %878 = vmatpush.msra.mxu0 0.0
    %879 = vmatpush.msra.mxu0 0.0
    %880 = vmatpush.msra.mxu0 0.0
    %881 = vmatpush.msra.mxu0 0.0
    %882 = vmatpush.msra.mxu0 0.0
    %883 = vmatpush.msra.mxu0 0.0
    %884 = vmatpush.msra.mxu0 0.0
    %885 = vmatpush.msra.mxu0 0.0
    %886 = vmatpush.msra.mxu0 0.0
    %v887 = vand.u32 %v570, 4294901760
    %888 = vmatpush.msra.mxu0 %v887
    %v889 = vand.u32 %v569, 4294901760
    %890 = vmatpush.msra.mxu0 %v889
    %v891 = vand.u32 %v568, 4294901760
    %892 = vmatpush.msra.mxu0 %v891
    %v893 = vand.u32 %v567, 4294901760
    %894 = vmatpush.msra.mxu0 %v893
    %v895 = vand.u32 %v873, 4294901760
    %v896 = vsub.f32 %v873, %v895
    %v897 = vand.u32 %v896, 4294901760
    %v898 = vsub.f32 %v896, %v897
    %v899 = vand.u32 %v898, 4294901760
    %900 = vmatmul.f32.gmra.mxu0 %v899
    %v901 = vpop.f32.mrf.mxu0
    %v902 = vadd.f32 0.0, %v901
    %903 = vdwg.mxu0
    %904 = vmatpush.msra.mxu0 0.0
    %905 = vmatpush.msra.mxu0 0.0
    %906 = vmatpush.msra.mxu0 0.0
    %907 = vmatpush.msra.mxu0 0.0
    %908 = vmatpush.msra.mxu0 0.0
    %909 = vmatpush.msra.mxu0 0.0
    %910 = vmatpush.msra.mxu0 0.0
    %911 = vmatpush.msra.mxu0 0.0
    %912 = vmatpush.msra.mxu0 0.0
    %913 = vmatpush.msra.mxu0 0.0
    %914 = vmatpush.msra.mxu0 0.0
    %915 = vmatpush.msra.mxu0 0.0
    %v916 = vand.u32 %v570, 4294901760
    %v917 = vsub.f32 %v570, %v916
    %v918 = vand.u32 %v917, 4294901760
    %v919 = vsub.f32 %v917, %v918
    %v920 = vand.u32 %v919, 4294901760
    %921 = vmatpush.msra.mxu0 %v920
    %v922 = vand.u32 %v569, 4294901760
    %v923 = vsub.f32 %v569, %v922
    %v924 = vand.u32 %v923, 4294901760
    %v925 = vsub.f32 %v923, %v924
    %v926 = vand.u32 %v925, 4294901760
    %927 = vmatpush.msra.mxu0 %v926
    %v928 = vand.u32 %v568, 4294901760
    %v929 = vsub.f32 %v568, %v928
    %v930 = vand.u32 %v929, 4294901760
    %v931 = vsub.f32 %v929, %v930
    %v932 = vand.u32 %v931, 4294901760
    %933 = vmatpush.msra.mxu0 %v932
    %v934 = vand.u32 %v567, 4294901760
    %v935 = vsub.f32 %v567, %v934
    %v936 = vand.u32 %v935, 4294901760
    %v937 = vsub.f32 %v935, %v936
    %v938 = vand.u32 %v937, 4294901760
    %939 = vmatpush.msra.mxu0 %v938
    %v940 = vand.u32 %v873, 4294901760
    %941 = vmatmul.f32.gmra.mxu0 %v940
    %v942 = vpop.f32.mrf.mxu0
    %v943 = vadd.f32 %v902, %v942
    %944 = vdwg.mxu0
    %945 = vmatpush.msra.mxu0 0.0
    %946 = vmatpush.msra.mxu0 0.0
    %947 = vmatpush.msra.mxu0 0.0
    %948 = vmatpush.msra.mxu0 0.0
    %949 = vmatpush.msra.mxu0 0.0
    %950 = vmatpush.msra.mxu0 0.0
    %951 = vmatpush.msra.mxu0 0.0
    %952 = vmatpush.msra.mxu0 0.0
    %953 = vmatpush.msra.mxu0 0.0
    %954 = vmatpush.msra.mxu0 0.0
    %955 = vmatpush.msra.mxu0 0.0
    %956 = vmatpush.msra.mxu0 0.0
    %v957 = vand.u32 %v570, 4294901760
    %v958 = vsub.f32 %v570, %v957
    %959 = vmatpush.msra.mxu0 %v958
    %v960 = vand.u32 %v569, 4294901760
    %v961 = vsub.f32 %v569, %v960
    %962 = vmatpush.msra.mxu0 %v961
    %v963 = vand.u32 %v568, 4294901760
    %v964 = vsub.f32 %v568, %v963
    %965 = vmatpush.msra.mxu0 %v964
    %v966 = vand.u32 %v567, 4294901760
    %v967 = vsub.f32 %v567, %v966
    %968 = vmatpush.msra.mxu0 %v967
    %v969 = vand.u32 %v873, 4294901760
    %v970 = vsub.f32 %v873, %v969
    %971 = vmatmul.f32.gmra.mxu0 %v970
    %v972 = vpop.f32.mrf.mxu0
    %v973 = vadd.f32 %v943, %v972
    %974 = vdwg.mxu0
    %975 = vmatpush.msra.mxu0 0.0
    %976 = vmatpush.msra.mxu0 0.0
    %977 = vmatpush.msra.mxu0 0.0
    %978 = vmatpush.msra.mxu0 0.0
    %979 = vmatpush.msra.mxu0 0.0
    %980 = vmatpush.msra.mxu0 0.0
    %981 = vmatpush.msra.mxu0 0.0
    %982 = vmatpush.msra.mxu0 0.0
    %983 = vmatpush.msra.mxu0 0.0
    %984 = vmatpush.msra.mxu0 0.0
    %985 = vmatpush.msra.mxu0 0.0
    %986 = vmatpush.msra.mxu0 0.0
    %v987 = vand.u32 %v570, 4294901760
    %988 = vmatpush.msra.mxu0 %v987
    %v989 = vand.u32 %v569, 4294901760
    %990 = vmatpush.msra.mxu0 %v989
    %v991 = vand.u32 %v568, 4294901760
    %992 = vmatpush.msra.mxu0 %v991
    %v993 = vand.u32 %v567, 4294901760
    %994 = vmatpush.msra.mxu0 %v993
    %v995 = vand.u32 %v873, 4294901760
    %v996 = vsub.f32 %v873, %v995
    %v997 = vand.u32 %v996, 4294901760
    %998 = vmatmul.f32.gmra.mxu0 %v997
    %v999 = vpop.f32.mrf.mxu0
    %v1000 = vadd.f32 %v973, %v999
    %1001 = vdwg.mxu0
    %1002 = vmatpush.msra.mxu0 0.0
    %1003 = vmatpush.msra.mxu0 0.0
    %1004 = vmatpush.msra.mxu0 0.0
    %1005 = vmatpush.msra.mxu0 0.0
    %1006 = vmatpush.msra.mxu0 0.0
    %1007 = vmatpush.msra.mxu0 0.0
    %1008 = vmatpush.msra.mxu0 0.0
    %1009 = vmatpush.msra.mxu0 0.0
    %1010 = vmatpush.msra.mxu0 0.0
    %1011 = vmatpush.msra.mxu0 0.0
    %1012 = vmatpush.msra.mxu0 0.0
    %1013 = vmatpush.msra.mxu0 0.0
    %v1014 = vand.u32 %v570, 4294901760
    %v1015 = vsub.f32 %v570, %v1014
    %v1016 = vand.u32 %v1015, 4294901760
    %1017 = vmatpush.msra.mxu0 %v1016
    %v1018 = vand.u32 %v569, 4294901760
    %v1019 = vsub.f32 %v569, %v1018
    %v1020 = vand.u32 %v1019, 4294901760
    %1021 = vmatpush.msra.mxu0 %v1020
    %v1022 = vand.u32 %v568, 4294901760
    %v1023 = vsub.f32 %v568, %v1022
    %v1024 = vand.u32 %v1023, 4294901760
    %1025 = vmatpush.msra.mxu0 %v1024
    %v1026 = vand.u32 %v567, 4294901760
    %v1027 = vsub.f32 %v567, %v1026
    %v1028 = vand.u32 %v1027, 4294901760
    %1029 = vmatpush.msra.mxu0 %v1028
    %v1030 = vand.u32 %v873, 4294901760
    %1031 = vmatmul.f32.gmra.mxu0 %v1030
    %v1032 = vpop.f32.mrf.mxu0
    %v1033 = vadd.f32 %v1000, %v1032
    %1034 = vdwg.mxu0
    %1035 = vmatpush.msra.mxu0 0.0
    %1036 = vmatpush.msra.mxu0 0.0
    %1037 = vmatpush.msra.mxu0 0.0
    %1038 = vmatpush.msra.mxu0 0.0
    %1039 = vmatpush.msra.mxu0 0.0
    %1040 = vmatpush.msra.mxu0 0.0
    %1041 = vmatpush.msra.mxu0 0.0
    %1042 = vmatpush.msra.mxu0 0.0
    %1043 = vmatpush.msra.mxu0 0.0
    %1044 = vmatpush.msra.mxu0 0.0
    %1045 = vmatpush.msra.mxu0 0.0
    %1046 = vmatpush.msra.mxu0 0.0
    %v1047 = vand.u32 %v570, 4294901760
    %1048 = vmatpush.msra.mxu0 %v1047
    %v1049 = vand.u32 %v569, 4294901760
    %1050 = vmatpush.msra.mxu0 %v1049
    %v1051 = vand.u32 %v568, 4294901760
    %1052 = vmatpush.msra.mxu0 %v1051
    %v1053 = vand.u32 %v567, 4294901760
    %1054 = vmatpush.msra.mxu0 %v1053
    %v1055 = vand.u32 %v873, 4294901760
    %1056 = vmatmul.f32.gmra.mxu0 %v1055
    %v1057 = vpop.f32.mrf.mxu0
    %v1058 = vadd.f32 %v1033, %v1057
    %1059 = vdwg.mxu0
    %v1060 = vadd.f32 %v869, %v1058
    %v1061 = vxor.u32 %v1060, 2147483648
    %v1062 = vmul.f32 %v1061, 1.442695
    %v1063 = vpow.pop %v1062
    %v1064 = vadd.f32 %v1063, 1.0
    %v1065 = vrcp.pop %v1064
    %v1066 = vmul.f32 %v1064, %v1065
    %v1067 = vsub.f32 1.0, %v1066
    %v1068 = vmul.f32 %v1065, %v1067
    %v1069 = vadd.f32 %v1065, %v1068
    %vm1070 = vweird.f32 %v1064
    %vm1071 = vweird.f32 %v1065
    %vm1072 = vmor %vm1070, %vm1071
    %v1073 = vsel %vm1072, %v1065, %v1069
    %v1074 = vand.u32 2147483647, %v1064
    %vm1075 = vcmp.eq.f32.partialorder %v1074, 8.507059e+37
    %v1076 = vand.u32 %v1064, 2147483648
    %v1077 = vor.u32 1.1754944e-38, %v1076
    %v1078 = vsel %vm1075, %v1077, %v1073
    %v1079 = vmul.f32 1.0, %v1078
    %v1080 = vtanh.pop %v1060
    %v1081 = vmul.f32 %v1079, %v792
    %1083 = vrot.lane.b32.xlu0 %v1080, 64
    %v1084 = vpop.permute.xlu0 %1083
    %v1086 = vmul.f32 %v1079, %v1084
    %1088 = vrot.lane.b32.xlu0 %v1086, 32
    %v1089 = vpop.permute.xlu0 %1088
    %v1091 = vadd.f32 %v1081, %v1089
    %v1092 = vtanh.pop %v1091
    %1094 = vrot.lane.b32.xlu0 %v1092, 64
    %v1095 = vpop.permute.xlu0 %1094
    %v1097 = vmul.f32 %v1079, %v1095
    %s1098 = scalar_lea.vmem [#allocation3], 8
    %v1099 = vld [vmem:[%s1098] sm:$0xff]
    %v1100 = vmul.f32 %v1097, %v803
    %1102 = vrot.lane.b32.xlu0 %v1100, 32
    %v1103 = vpop.permute.xlu0 %1102
    %v1105 = vsel %vm87, %v1103, 0.0
    %1106 = vadd.xlane.f32.xlu0 %v1105
    %v1107 = vpop.xlane.xlu0 %1106
    %v1108 = vadd.f32 %v1099, %v1107
    %v1109 = vxor.u32 %v1108, 2147483648
    %v1110 = vmul.f32 %v1109, 1.442695
    %v1111 = vpow.pop %v1110
    %v1112 = vadd.f32 %v1111, 1.0
    %v1113 = vrcp.pop %v1112
    %v1114 = vmul.f32 %v1112, %v1113
    %v1115 = vsub.f32 1.0, %v1114
    %v1116 = vmul.f32 %v1113, %v1115
    %v1117 = vadd.f32 %v1113, %v1116
    %vm1118 = vweird.f32 %v1112
    %vm1119 = vweird.f32 %v1113
    %vm1120 = vmor %vm1118, %vm1119
    %v1121 = vsel %vm1120, %v1113, %v1117
    %v1122 = vand.u32 2147483647, %v1112
    %vm1123 = vcmp.eq.f32.partialorder %v1122, 8.507059e+37
    %v1124 = vand.u32 %v1112, 2147483648
    %v1125 = vor.u32 1.1754944e-38, %v1124
    %v1126 = vsel %vm1123, %v1125, %v1121
    %v1127 = vmul.f32 1.0, %v1126
    %v1128 = vmul.f32 %v1127, 1.442695
    %v1129 = vpow.pop %v1128
    %1131 = vset.pattern.permute.xlu0 0
    %1132 = vperm.xlu0 %1131, %v1129
    %v1133 = vpop.permute.xlu0 %1132
    %v1135 = vmul.f32 %v1133, %v1097
    %v1136 = vadd.f32 %v841, %v1135
    %v1137 = vadd.f32 %v842, %v1129
    %1139 = vset.pattern.permute.xlu0 0
    %1140 = vperm.xlu0 %1139, %v1137
    %v1141 = vpop.permute.xlu0 %1140
    %v1143 = vrcp.pop %v1141
    %v1144 = vmul.f32 %v1141, %v1143
    %v1145 = vsub.f32 1.0, %v1144
    %v1146 = vmul.f32 %v1143, %v1145
    %v1147 = vadd.f32 %v1143, %v1146
    %vm1148 = vweird.f32 %v1141
    %vm1149 = vweird.f32 %v1143
    %vm1150 = vmor %vm1148, %vm1149
    %v1151 = vsel %vm1150, %v1143, %v1147
    %v1152 = vand.u32 2147483647, %v1141
    %vm1153 = vcmp.eq.f32.partialorder %v1152, 8.507059e+37
    %v1154 = vand.u32 %v1141, 2147483648
    %v1155 = vor.u32 1.1754944e-38, %v1154
    %v1156 = vsel %vm1153, %v1155, %v1151
    %v1157 = vmul.f32 %v1136, %v1156
    %1159 = vrot.lane.b32.xlu0 %v1157, 32
    %v1160 = vpop.permute.xlu0 %1159
    %s1162 = scalar_lea.vmem [#allocation10], 8
    %1163 = vst.msk [vmem:[%s1162] sm:$0xff] %vm87, %v1160
    %s1164 = scalar_lea.vmem [#allocation2], 16
    %v1165 = vld [vmem:[%s1164] sm:$0xff]
    %1167 = vrot.lane.b32.xlu0 %v1097, 32
    %v1168 = vpop.permute.xlu0 %1167
    %v1169 = vsel %vm87, %v1168, 0
    %1171 = vmatpush.msra.mxu0 0.0
    %1172 = vmatpush.msra.mxu0 0.0
    %1173 = vmatpush.msra.mxu0 0.0
    %1174 = vmatpush.msra.mxu0 0.0
    %1175 = vmatpush.msra.mxu0 0.0
    %1176 = vmatpush.msra.mxu0 0.0
    %1177 = vmatpush.msra.mxu0 0.0
    %1178 = vmatpush.msra.mxu0 0.0
    %1179 = vmatpush.msra.mxu0 0.0
    %1180 = vmatpush.msra.mxu0 0.0
    %1181 = vmatpush.msra.mxu0 0.0
    %1182 = vmatpush.msra.mxu0 0.0
    %v1183 = vand.u32 %v570, 4294901760
    %1184 = vmatpush.msra.mxu0 %v1183
    %v1185 = vand.u32 %v569, 4294901760
    %1186 = vmatpush.msra.mxu0 %v1185
    %v1187 = vand.u32 %v568, 4294901760
    %1188 = vmatpush.msra.mxu0 %v1187
    %v1189 = vand.u32 %v567, 4294901760
    %1190 = vmatpush.msra.mxu0 %v1189
    %v1191 = vand.u32 %v1169, 4294901760
    %v1192 = vsub.f32 %v1169, %v1191
    %v1193 = vand.u32 %v1192, 4294901760
    %v1194 = vsub.f32 %v1192, %v1193
    %v1195 = vand.u32 %v1194, 4294901760
    %1196 = vmatmul.f32.gmra.mxu0 %v1195
    %v1197 = vpop.f32.mrf.mxu0
    %v1198 = vadd.f32 0.0, %v1197
    %1199 = vdwg.mxu0
    %1200 = vmatpush.msra.mxu0 0.0
    %1201 = vmatpush.msra.mxu0 0.0
    %1202 = vmatpush.msra.mxu0 0.0
    %1203 = vmatpush.msra.mxu0 0.0
    %1204 = vmatpush.msra.mxu0 0.0
    %1205 = vmatpush.msra.mxu0 0.0
    %1206 = vmatpush.msra.mxu0 0.0
    %1207 = vmatpush.msra.mxu0 0.0
    %1208 = vmatpush.msra.mxu0 0.0
    %1209 = vmatpush.msra.mxu0 0.0
    %1210 = vmatpush.msra.mxu0 0.0
    %1211 = vmatpush.msra.mxu0 0.0
    %v1212 = vand.u32 %v570, 4294901760
    %v1213 = vsub.f32 %v570, %v1212
    %v1214 = vand.u32 %v1213, 4294901760
    %v1215 = vsub.f32 %v1213, %v1214
    %v1216 = vand.u32 %v1215, 4294901760
    %1217 = vmatpush.msra.mxu0 %v1216
    %v1218 = vand.u32 %v569, 4294901760
    %v1219 = vsub.f32 %v569, %v1218
    %v1220 = vand.u32 %v1219, 4294901760
    %v1221 = vsub.f32 %v1219, %v1220
    %v1222 = vand.u32 %v1221, 4294901760
    %1223 = vmatpush.msra.mxu0 %v1222
    %v1224 = vand.u32 %v568, 4294901760
    %v1225 = vsub.f32 %v568, %v1224
    %v1226 = vand.u32 %v1225, 4294901760
    %v1227 = vsub.f32 %v1225, %v1226
    %v1228 = vand.u32 %v1227, 4294901760
    %1229 = vmatpush.msra.mxu0 %v1228
    %v1230 = vand.u32 %v567, 4294901760
    %v1231 = vsub.f32 %v567, %v1230
    %v1232 = vand.u32 %v1231, 4294901760
    %v1233 = vsub.f32 %v1231, %v1232
    %v1234 = vand.u32 %v1233, 4294901760
    %1235 = vmatpush.msra.mxu0 %v1234
    %v1236 = vand.u32 %v1169, 4294901760
    %1237 = vmatmul.f32.gmra.mxu0 %v1236
    %v1238 = vpop.f32.mrf.mxu0
    %v1239 = vadd.f32 %v1198, %v1238
    %1240 = vdwg.mxu0
    %1241 = vmatpush.msra.mxu0 0.0
    %1242 = vmatpush.msra.mxu0 0.0
    %1243 = vmatpush.msra.mxu0 0.0
    %1244 = vmatpush.msra.mxu0 0.0
    %1245 = vmatpush.msra.mxu0 0.0
    %1246 = vmatpush.msra.mxu0 0.0
    %1247 = vmatpush.msra.mxu0 0.0
    %1248 = vmatpush.msra.mxu0 0.0
    %1249 = vmatpush.msra.mxu0 0.0
    %1250 = vmatpush.msra.mxu0 0.0
    %1251 = vmatpush.msra.mxu0 0.0
    %1252 = vmatpush.msra.mxu0 0.0
    %v1253 = vand.u32 %v570, 4294901760
    %v1254 = vsub.f32 %v570, %v1253
    %1255 = vmatpush.msra.mxu0 %v1254
    %v1256 = vand.u32 %v569, 4294901760
    %v1257 = vsub.f32 %v569, %v1256
    %1258 = vmatpush.msra.mxu0 %v1257
    %v1259 = vand.u32 %v568, 4294901760
    %v1260 = vsub.f32 %v568, %v1259
    %1261 = vmatpush.msra.mxu0 %v1260
    %v1262 = vand.u32 %v567, 4294901760
    %v1263 = vsub.f32 %v567, %v1262
    %1264 = vmatpush.msra.mxu0 %v1263
    %v1265 = vand.u32 %v1169, 4294901760
    %v1266 = vsub.f32 %v1169, %v1265
    %1267 = vmatmul.f32.gmra.mxu0 %v1266
    %v1268 = vpop.f32.mrf.mxu0
    %v1269 = vadd.f32 %v1239, %v1268
    %1270 = vdwg.mxu0
    %1271 = vmatpush.msra.mxu0 0.0
    %1272 = vmatpush.msra.mxu0 0.0
    %1273 = vmatpush.msra.mxu0 0.0
    %1274 = vmatpush.msra.mxu0 0.0
    %1275 = vmatpush.msra.mxu0 0.0
    %1276 = vmatpush.msra.mxu0 0.0
    %1277 = vmatpush.msra.mxu0 0.0
    %1278 = vmatpush.msra.mxu0 0.0
    %1279 = vmatpush.msra.mxu0 0.0
    %1280 = vmatpush.msra.mxu0 0.0
    %1281 = vmatpush.msra.mxu0 0.0
    %1282 = vmatpush.msra.mxu0 0.0
    %v1283 = vand.u32 %v570, 4294901760
    %1284 = vmatpush.msra.mxu0 %v1283
    %v1285 = vand.u32 %v569, 4294901760
    %1286 = vmatpush.msra.mxu0 %v1285
    %v1287 = vand.u32 %v568, 4294901760
    %1288 = vmatpush.msra.mxu0 %v1287
    %v1289 = vand.u32 %v567, 4294901760
    %1290 = vmatpush.msra.mxu0 %v1289
    %v1291 = vand.u32 %v1169, 4294901760
    %v1292 = vsub.f32 %v1169, %v1291
    %v1293 = vand.u32 %v1292, 4294901760
    %1294 = vmatmul.f32.gmra.mxu0 %v1293
    %v1295 = vpop.f32.mrf.mxu0
    %v1296 = vadd.f32 %v1269, %v1295
    %1297 = vdwg.mxu0
    %1298 = vmatpush.msra.mxu0 0.0
    %1299 = vmatpush.msra.mxu0 0.0
    %1300 = vmatpush.msra.mxu0 0.0
    %1301 = vmatpush.msra.mxu0 0.0
    %1302 = vmatpush.msra.mxu0 0.0
    %1303 = vmatpush.msra.mxu0 0.0
    %1304 = vmatpush.msra.mxu0 0.0
    %1305 = vmatpush.msra.mxu0 0.0
    %1306 = vmatpush.msra.mxu0 0.0
    %1307 = vmatpush.msra.mxu0 0.0
    %1308 = vmatpush.msra.mxu0 0.0
    %1309 = vmatpush.msra.mxu0 0.0
    %v1310 = vand.u32 %v570, 4294901760
    %v1311 = vsub.f32 %v570, %v1310
    %v1312 = vand.u32 %v1311, 4294901760
    %1313 = vmatpush.msra.mxu0 %v1312
    %v1314 = vand.u32 %v569, 4294901760
    %v1315 = vsub.f32 %v569, %v1314
    %v1316 = vand.u32 %v1315, 4294901760
    %1317 = vmatpush.msra.mxu0 %v1316
    %v1318 = vand.u32 %v568, 4294901760
    %v1319 = vsub.f32 %v568, %v1318
    %v1320 = vand.u32 %v1319, 4294901760
    %1321 = vmatpush.msra.mxu0 %v1320
    %v1322 = vand.u32 %v567, 4294901760
    %v1323 = vsub.f32 %v567, %v1322
    %v1324 = vand.u32 %v1323, 4294901760
    %1325 = vmatpush.msra.mxu0 %v1324
    %v1326 = vand.u32 %v1169, 4294901760
    %1327 = vmatmul.f32.gmra.mxu0 %v1326
    %v1328 = vpop.f32.mrf.mxu0
    %v1329 = vadd.f32 %v1296, %v1328
    %1330 = vdwg.mxu0
    %1331 = vmatpush.msra.mxu0 0.0
    %1332 = vmatpush.msra.mxu0 0.0
    %1333 = vmatpush.msra.mxu0 0.0
    %1334 = vmatpush.msra.mxu0 0.0
    %1335 = vmatpush.msra.mxu0 0.0
    %1336 = vmatpush.msra.mxu0 0.0
    %1337 = vmatpush.msra.mxu0 0.0
    %1338 = vmatpush.msra.mxu0 0.0
    %1339 = vmatpush.msra.mxu0 0.0
    %1340 = vmatpush.msra.mxu0 0.0
    %1341 = vmatpush.msra.mxu0 0.0
    %1342 = vmatpush.msra.mxu0 0.0
    %v1343 = vand.u32 %v570, 4294901760
    %1344 = vmatpush.msra.mxu0 %v1343
    %v1345 = vand.u32 %v569, 4294901760
    %1346 = vmatpush.msra.mxu0 %v1345
    %v1347 = vand.u32 %v568, 4294901760
    %1348 = vmatpush.msra.mxu0 %v1347
    %v1349 = vand.u32 %v567, 4294901760
    %1350 = vmatpush.msra.mxu0 %v1349
    %v1351 = vand.u32 %v1169, 4294901760
    %1352 = vmatmul.f32.gmra.mxu0 %v1351
    %v1353 = vpop.f32.mrf.mxu0
    %v1354 = vadd.f32 %v1329, %v1353
    %1355 = vdwg.mxu0
    %v1356 = vadd.f32 %v1165, %v1354
    %v1357 = vxor.u32 %v1356, 2147483648
    %v1358 = vmul.f32 %v1357, 1.442695
    %v1359 = vpow.pop %v1358
    %v1360 = vadd.f32 %v1359, 1.0
    %v1361 = vrcp.pop %v1360
    %v1362 = vmul.f32 %v1360, %v1361
    %v1363 = vsub.f32 1.0, %v1362
    %v1364 = vmul.f32 %v1361, %v1363
    %v1365 = vadd.f32 %v1361, %v1364
    %vm1366 = vweird.f32 %v1360
    %vm1367 = vweird.f32 %v1361
    %vm1368 = vmor %vm1366, %vm1367
    %v1369 = vsel %vm1368, %v1361, %v1365
    %v1370 = vand.u32 2147483647, %v1360
    %vm1371 = vcmp.eq.f32.partialorder %v1370, 8.507059e+37
    %v1372 = vand.u32 %v1360, 2147483648
    %v1373 = vor.u32 1.1754944e-38, %v1372
    %v1374 = vsel %vm1371, %v1373, %v1369
    %v1375 = vmul.f32 1.0, %v1374
    %v1376 = vtanh.pop %v1356
    %v1377 = vmul.f32 %v1375, %v1091
    %1379 = vrot.lane.b32.xlu0 %v1376, 64
    %v1380 = vpop.permute.xlu0 %1379
    %v1382 = vmul.f32 %v1375, %v1380
    %1384 = vrot.lane.b32.xlu0 %v1382, 32
    %v1385 = vpop.permute.xlu0 %1384
    %v1387 = vadd.f32 %v1377, %v1385
    %v1388 = vtanh.pop %v1387
    %1390 = vrot.lane.b32.xlu0 %v1388, 64
    %v1391 = vpop.permute.xlu0 %1390
    %v1393 = vmul.f32 %v1375, %v1391
    %s1394 = scalar_lea.vmem [#allocation3], 16
    %v1395 = vld [vmem:[%s1394] sm:$0xff]
    %v1396 = vmul.f32 %v1393, %v803
    %1398 = vrot.lane.b32.xlu0 %v1396, 32
    %v1399 = vpop.permute.xlu0 %1398
    %v1401 = vsel %vm87, %v1399, 0.0
    %1402 = vadd.xlane.f32.xlu0 %v1401
    %v1403 = vpop.xlane.xlu0 %1402
    %v1404 = vadd.f32 %v1395, %v1403
    %v1405 = vxor.u32 %v1404, 2147483648
    %v1406 = vmul.f32 %v1405, 1.442695
    %v1407 = vpow.pop %v1406
    %v1408 = vadd.f32 %v1407, 1.0
    %v1409 = vrcp.pop %v1408
    %v1410 = vmul.f32 %v1408, %v1409
    %v1411 = vsub.f32 1.0, %v1410
    %v1412 = vmul.f32 %v1409, %v1411
    %v1413 = vadd.f32 %v1409, %v1412
    %vm1414 = vweird.f32 %v1408
    %vm1415 = vweird.f32 %v1409
    %vm1416 = vmor %vm1414, %vm1415
    %v1417 = vsel %vm1416, %v1409, %v1413
    %v1418 = vand.u32 2147483647, %v1408
    %vm1419 = vcmp.eq.f32.partialorder %v1418, 8.507059e+37
    %v1420 = vand.u32 %v1408, 2147483648
    %v1421 = vor.u32 1.1754944e-38, %v1420
    %v1422 = vsel %vm1419, %v1421, %v1417
    %v1423 = vmul.f32 1.0, %v1422
    %v1424 = vmul.f32 %v1423, 1.442695
    %v1425 = vpow.pop %v1424
    %1427 = vset.pattern.permute.xlu0 0
    %1428 = vperm.xlu0 %1427, %v1425
    %v1429 = vpop.permute.xlu0 %1428
    %v1431 = vmul.f32 %v1429, %v1393
    %v1432 = vadd.f32 %v1136, %v1431
    %v1433 = vadd.f32 %v1137, %v1425
    %1435 = vset.pattern.permute.xlu0 0
    %1436 = vperm.xlu0 %1435, %v1433
    %v1437 = vpop.permute.xlu0 %1436
    %v1439 = vrcp.pop %v1437
    %v1440 = vmul.f32 %v1437, %v1439
    %v1441 = vsub.f32 1.0, %v1440
    %v1442 = vmul.f32 %v1439, %v1441
    %v1443 = vadd.f32 %v1439, %v1442
    %vm1444 = vweird.f32 %v1437
    %vm1445 = vweird.f32 %v1439
    %vm1446 = vmor %vm1444, %vm1445
    %v1447 = vsel %vm1446, %v1439, %v1443
    %v1448 = vand.u32 2147483647, %v1437
    %vm1449 = vcmp.eq.f32.partialorder %v1448, 8.507059e+37
    %v1450 = vand.u32 %v1437, 2147483648
    %v1451 = vor.u32 1.1754944e-38, %v1450
    %v1452 = vsel %vm1449, %v1451, %v1447
    %v1453 = vmul.f32 %v1432, %v1452
    %1455 = vrot.lane.b32.xlu0 %v1453, 32
    %v1456 = vpop.permute.xlu0 %1455
    %s1458 = scalar_lea.vmem [#allocation10], 16
    %1459 = vst.msk [vmem:[%s1458] sm:$0xff] %vm87, %v1456
    %s1460 = scalar_lea.vmem [#allocation2], 24
    %v1461 = vld [vmem:[%s1460] sm:$0xff]
    %1463 = vrot.lane.b32.xlu0 %v1393, 32
    %v1464 = vpop.permute.xlu0 %1463
    %v1465 = vsel %vm87, %v1464, 0
    %1467 = vmatpush.msra.mxu0 0.0
    %1468 = vmatpush.msra.mxu0 0.0
    %1469 = vmatpush.msra.mxu0 0.0
    %1470 = vmatpush.msra.mxu0 0.0
    %1471 = vmatpush.msra.mxu0 0.0
    %1472 = vmatpush.msra.mxu0 0.0
    %1473 = vmatpush.msra.mxu0 0.0
    %1474 = vmatpush.msra.mxu0 0.0
    %1475 = vmatpush.msra.mxu0 0.0
    %1476 = vmatpush.msra.mxu0 0.0
    %1477 = vmatpush.msra.mxu0 0.0
    %1478 = vmatpush.msra.mxu0 0.0
    %v1479 = vand.u32 %v570, 4294901760
    %1480 = vmatpush.msra.mxu0 %v1479
    %v1481 = vand.u32 %v569, 4294901760
    %1482 = vmatpush.msra.mxu0 %v1481
    %v1483 = vand.u32 %v568, 4294901760
    %1484 = vmatpush.msra.mxu0 %v1483
    %v1485 = vand.u32 %v567, 4294901760
    %1486 = vmatpush.msra.mxu0 %v1485
    %v1487 = vand.u32 %v1465, 4294901760
    %v1488 = vsub.f32 %v1465, %v1487
    %v1489 = vand.u32 %v1488, 4294901760
    %v1490 = vsub.f32 %v1488, %v1489
    %v1491 = vand.u32 %v1490, 4294901760
    %1492 = vmatmul.f32.gmra.mxu0 %v1491
    %v1493 = vpop.f32.mrf.mxu0
    %v1494 = vadd.f32 0.0, %v1493
    %1495 = vdwg.mxu0
    %1496 = vmatpush.msra.mxu0 0.0
    %1497 = vmatpush.msra.mxu0 0.0
    %1498 = vmatpush.msra.mxu0 0.0
    %1499 = vmatpush.msra.mxu0 0.0
    %1500 = vmatpush.msra.mxu0 0.0
    %1501 = vmatpush.msra.mxu0 0.0
    %1502 = vmatpush.msra.mxu0 0.0
    %1503 = vmatpush.msra.mxu0 0.0
    %1504 = vmatpush.msra.mxu0 0.0
    %1505 = vmatpush.msra.mxu0 0.0
    %1506 = vmatpush.msra.mxu0 0.0
    %1507 = vmatpush.msra.mxu0 0.0
    %v1508 = vand.u32 %v570, 4294901760
    %v1509 = vsub.f32 %v570, %v1508
    %v1510 = vand.u32 %v1509, 4294901760
    %v1511 = vsub.f32 %v1509, %v1510
    %v1512 = vand.u32 %v1511, 4294901760
    %1513 = vmatpush.msra.mxu0 %v1512
    %v1514 = vand.u32 %v569, 4294901760
    %v1515 = vsub.f32 %v569, %v1514
    %v1516 = vand.u32 %v1515, 4294901760
    %v1517 = vsub.f32 %v1515, %v1516
    %v1518 = vand.u32 %v1517, 4294901760
    %1519 = vmatpush.msra.mxu0 %v1518
    %v1520 = vand.u32 %v568, 4294901760
    %v1521 = vsub.f32 %v568, %v1520
    %v1522 = vand.u32 %v1521, 4294901760
    %v1523 = vsub.f32 %v1521, %v1522
    %v1524 = vand.u32 %v1523, 4294901760
    %1525 = vmatpush.msra.mxu0 %v1524
    %v1526 = vand.u32 %v567, 4294901760
    %v1527 = vsub.f32 %v567, %v1526
    %v1528 = vand.u32 %v1527, 4294901760
    %v1529 = vsub.f32 %v1527, %v1528
    %v1530 = vand.u32 %v1529, 4294901760
    %1531 = vmatpush.msra.mxu0 %v1530
    %v1532 = vand.u32 %v1465, 4294901760
    %1533 = vmatmul.f32.gmra.mxu0 %v1532
    %v1534 = vpop.f32.mrf.mxu0
    %v1535 = vadd.f32 %v1494, %v1534
    %1536 = vdwg.mxu0
    %1537 = vmatpush.msra.mxu0 0.0
    %1538 = vmatpush.msra.mxu0 0.0
    %1539 = vmatpush.msra.mxu0 0.0
    %1540 = vmatpush.msra.mxu0 0.0
    %1541 = vmatpush.msra.mxu0 0.0
    %1542 = vmatpush.msra.mxu0 0.0
    %1543 = vmatpush.msra.mxu0 0.0
    %1544 = vmatpush.msra.mxu0 0.0
    %1545 = vmatpush.msra.mxu0 0.0
    %1546 = vmatpush.msra.mxu0 0.0
    %1547 = vmatpush.msra.mxu0 0.0
    %1548 = vmatpush.msra.mxu0 0.0
    %v1549 = vand.u32 %v570, 4294901760
    %v1550 = vsub.f32 %v570, %v1549
    %1551 = vmatpush.msra.mxu0 %v1550
    %v1552 = vand.u32 %v569, 4294901760
    %v1553 = vsub.f32 %v569, %v1552
    %1554 = vmatpush.msra.mxu0 %v1553
    %v1555 = vand.u32 %v568, 4294901760
    %v1556 = vsub.f32 %v568, %v1555
    %1557 = vmatpush.msra.mxu0 %v1556
    %v1558 = vand.u32 %v567, 4294901760
    %v1559 = vsub.f32 %v567, %v1558
    %1560 = vmatpush.msra.mxu0 %v1559
    %v1561 = vand.u32 %v1465, 4294901760
    %v1562 = vsub.f32 %v1465, %v1561
    %1563 = vmatmul.f32.gmra.mxu0 %v1562
    %v1564 = vpop.f32.mrf.mxu0
    %v1565 = vadd.f32 %v1535, %v1564
    %1566 = vdwg.mxu0
    %1567 = vmatpush.msra.mxu0 0.0
    %1568 = vmatpush.msra.mxu0 0.0
    %1569 = vmatpush.msra.mxu0 0.0
    %1570 = vmatpush.msra.mxu0 0.0
    %1571 = vmatpush.msra.mxu0 0.0
    %1572 = vmatpush.msra.mxu0 0.0
    %1573 = vmatpush.msra.mxu0 0.0
    %1574 = vmatpush.msra.mxu0 0.0
    %1575 = vmatpush.msra.mxu0 0.0
    %1576 = vmatpush.msra.mxu0 0.0
    %1577 = vmatpush.msra.mxu0 0.0
    %1578 = vmatpush.msra.mxu0 0.0
    %v1579 = vand.u32 %v570, 4294901760
    %1580 = vmatpush.msra.mxu0 %v1579
    %v1581 = vand.u32 %v569, 4294901760
    %1582 = vmatpush.msra.mxu0 %v1581
    %v1583 = vand.u32 %v568, 4294901760
    %1584 = vmatpush.msra.mxu0 %v1583
    %v1585 = vand.u32 %v567, 4294901760
    %1586 = vmatpush.msra.mxu0 %v1585
    %v1587 = vand.u32 %v1465, 4294901760
    %v1588 = vsub.f32 %v1465, %v1587
    %v1589 = vand.u32 %v1588, 4294901760
    %1590 = vmatmul.f32.gmra.mxu0 %v1589
    %v1591 = vpop.f32.mrf.mxu0
    %v1592 = vadd.f32 %v1565, %v1591
    %1593 = vdwg.mxu0
    %1594 = vmatpush.msra.mxu0 0.0
    %1595 = vmatpush.msra.mxu0 0.0
    %1596 = vmatpush.msra.mxu0 0.0
    %1597 = vmatpush.msra.mxu0 0.0
    %1598 = vmatpush.msra.mxu0 0.0
    %1599 = vmatpush.msra.mxu0 0.0
    %1600 = vmatpush.msra.mxu0 0.0
    %1601 = vmatpush.msra.mxu0 0.0
    %1602 = vmatpush.msra.mxu0 0.0
    %1603 = vmatpush.msra.mxu0 0.0
    %1604 = vmatpush.msra.mxu0 0.0
    %1605 = vmatpush.msra.mxu0 0.0
    %v1606 = vand.u32 %v570, 4294901760
    %v1607 = vsub.f32 %v570, %v1606
    %v1608 = vand.u32 %v1607, 4294901760
    %1609 = vmatpush.msra.mxu0 %v1608
    %v1610 = vand.u32 %v569, 4294901760
    %v1611 = vsub.f32 %v569, %v1610
    %v1612 = vand.u32 %v1611, 4294901760
    %1613 = vmatpush.msra.mxu0 %v1612
    %v1614 = vand.u32 %v568, 4294901760
    %v1615 = vsub.f32 %v568, %v1614
    %v1616 = vand.u32 %v1615, 4294901760
    %1617 = vmatpush.msra.mxu0 %v1616
    %v1618 = vand.u32 %v567, 4294901760
    %v1619 = vsub.f32 %v567, %v1618
    %v1620 = vand.u32 %v1619, 4294901760
    %1621 = vmatpush.msra.mxu0 %v1620
    %v1622 = vand.u32 %v1465, 4294901760
    %1623 = vmatmul.f32.gmra.mxu0 %v1622
    %v1624 = vpop.f32.mrf.mxu0
    %v1625 = vadd.f32 %v1592, %v1624
    %1626 = vdwg.mxu0
    %1627 = vmatpush.msra.mxu0 0.0
    %1628 = vmatpush.msra.mxu0 0.0
    %1629 = vmatpush.msra.mxu0 0.0
    %1630 = vmatpush.msra.mxu0 0.0
    %1631 = vmatpush.msra.mxu0 0.0
    %1632 = vmatpush.msra.mxu0 0.0
    %1633 = vmatpush.msra.mxu0 0.0
    %1634 = vmatpush.msra.mxu0 0.0
    %1635 = vmatpush.msra.mxu0 0.0
    %1636 = vmatpush.msra.mxu0 0.0
    %1637 = vmatpush.msra.mxu0 0.0
    %1638 = vmatpush.msra.mxu0 0.0
    %v1639 = vand.u32 %v570, 4294901760
    %1640 = vmatpush.msra.mxu0 %v1639
    %v1641 = vand.u32 %v569, 4294901760
    %1642 = vmatpush.msra.mxu0 %v1641
    %v1643 = vand.u32 %v568, 4294901760
    %1644 = vmatpush.msra.mxu0 %v1643
    %v1645 = vand.u32 %v567, 4294901760
    %1646 = vmatpush.msra.mxu0 %v1645
    %v1647 = vand.u32 %v1465, 4294901760
    %1648 = vmatmul.f32.gmra.mxu0 %v1647
    %v1649 = vpop.f32.mrf.mxu0
    %v1650 = vadd.f32 %v1625, %v1649
    %1651 = vdwg.mxu0
    %v1652 = vadd.f32 %v1461, %v1650
    %v1653 = vxor.u32 %v1652, 2147483648
    %v1654 = vmul.f32 %v1653, 1.442695
    %v1655 = vpow.pop %v1654
    %v1656 = vadd.f32 %v1655, 1.0
    %v1657 = vrcp.pop %v1656
    %v1658 = vmul.f32 %v1656, %v1657
    %v1659 = vsub.f32 1.0, %v1658
    %v1660 = vmul.f32 %v1657, %v1659
    %v1661 = vadd.f32 %v1657, %v1660
    %vm1662 = vweird.f32 %v1656
    %vm1663 = vweird.f32 %v1657
    %vm1664 = vmor %vm1662, %vm1663
    %v1665 = vsel %vm1664, %v1657, %v1661
    %v1666 = vand.u32 2147483647, %v1656
    %vm1667 = vcmp.eq.f32.partialorder %v1666, 8.507059e+37
    %v1668 = vand.u32 %v1656, 2147483648
    %v1669 = vor.u32 1.1754944e-38, %v1668
    %v1670 = vsel %vm1667, %v1669, %v1665
    %v1671 = vmul.f32 1.0, %v1670
    %v1672 = vtanh.pop %v1652
    %v1673 = vmul.f32 %v1671, %v1387
    %1675 = vrot.lane.b32.xlu0 %v1672, 64
    %v1676 = vpop.permute.xlu0 %1675
    %v1678 = vmul.f32 %v1671, %v1676
    %1680 = vrot.lane.b32.xlu0 %v1678, 32
    %v1681 = vpop.permute.xlu0 %1680
    %v1683 = vadd.f32 %v1673, %v1681
    %v1684 = vtanh.pop %v1683
    %1686 = vrot.lane.b32.xlu0 %v1684, 64
    %v1687 = vpop.permute.xlu0 %1686
    %v1689 = vmul.f32 %v1671, %v1687
    %s1690 = scalar_lea.vmem [#allocation3], 24
    %v1691 = vld [vmem:[%s1690] sm:$0xff]
    %v1692 = vmul.f32 %v1689, %v803
    %1694 = vrot.lane.b32.xlu0 %v1692, 32
    %v1695 = vpop.permute.xlu0 %1694
    %v1697 = vsel %vm87, %v1695, 0.0
    %1698 = vadd.xlane.f32.xlu0 %v1697
    %v1699 = vpop.xlane.xlu0 %1698
    %v1700 = vadd.f32 %v1691, %v1699
    %v1701 = vxor.u32 %v1700, 2147483648
    %v1702 = vmul.f32 %v1701, 1.442695
    %v1703 = vpow.pop %v1702
    %v1704 = vadd.f32 %v1703, 1.0
    %v1705 = vrcp.pop %v1704
    %v1706 = vmul.f32 %v1704, %v1705
    %v1707 = vsub.f32 1.0, %v1706
    %v1708 = vmul.f32 %v1705, %v1707
    %v1709 = vadd.f32 %v1705, %v1708
    %vm1710 = vweird.f32 %v1704
    %vm1711 = vweird.f32 %v1705
    %vm1712 = vmor %vm1710, %vm1711
    %v1713 = vsel %vm1712, %v1705, %v1709
    %v1714 = vand.u32 2147483647, %v1704
    %vm1715 = vcmp.eq.f32.partialorder %v1714, 8.507059e+37
    %v1716 = vand.u32 %v1704, 2147483648
    %v1717 = vor.u32 1.1754944e-38, %v1716
    %v1718 = vsel %vm1715, %v1717, %v1713
    %v1719 = vmul.f32 1.0, %v1718
    %v1720 = vmul.f32 %v1719, 1.442695
    %v1721 = vpow.pop %v1720
    %1723 = vset.pattern.permute.xlu0 0
    %1724 = vperm.xlu0 %1723, %v1721
    %v1725 = vpop.permute.xlu0 %1724
    %v1727 = vmul.f32 %v1725, %v1689
    %v1728 = vadd.f32 %v1432, %v1727
    %v1729 = vadd.f32 %v1433, %v1721
    %1731 = vset.pattern.permute.xlu0 0
    %1732 = vperm.xlu0 %1731, %v1729
    %v1733 = vpop.permute.xlu0 %1732
    %v1735 = vrcp.pop %v1733
    %v1736 = vmul.f32 %v1733, %v1735
    %v1737 = vsub.f32 1.0, %v1736
    %v1738 = vmul.f32 %v1735, %v1737
    %v1739 = vadd.f32 %v1735, %v1738
    %vm1740 = vweird.f32 %v1733
    %vm1741 = vweird.f32 %v1735
    %vm1742 = vmor %vm1740, %vm1741
    %v1743 = vsel %vm1742, %v1735, %v1739
    %v1744 = vand.u32 2147483647, %v1733
    %vm1745 = vcmp.eq.f32.partialorder %v1744, 8.507059e+37
    %v1746 = vand.u32 %v1733, 2147483648
    %v1747 = vor.u32 1.1754944e-38, %v1746
    %v1748 = vsel %vm1745, %v1747, %v1743
    %v1749 = vmul.f32 %v1728, %v1748
    %1751 = vrot.lane.b32.xlu0 %v1749, 32
    %v1752 = vpop.permute.xlu0 %1751
    %s1754 = scalar_lea.vmem [#allocation10], 24
    %1755 = vst.msk [vmem:[%s1754] sm:$0xff] %vm87, %v1752
    %s1756 = scalar_lea.vmem [#allocation2], 32
    %v1757 = vld [vmem:[%s1756] sm:$0xff]
    %1759 = vrot.lane.b32.xlu0 %v1689, 32
    %v1760 = vpop.permute.xlu0 %1759
    %v1761 = vsel %vm87, %v1760, 0
    %1763 = vmatpush.msra.mxu0 0.0
    %1764 = vmatpush.msra.mxu0 0.0
    %1765 = vmatpush.msra.mxu0 0.0
    %1766 = vmatpush.msra.mxu0 0.0
    %1767 = vmatpush.msra.mxu0 0.0
    %1768 = vmatpush.msra.mxu0 0.0
    %1769 = vmatpush.msra.mxu0 0.0
    %1770 = vmatpush.msra.mxu0 0.0
    %1771 = vmatpush.msra.mxu0 0.0
    %1772 = vmatpush.msra.mxu0 0.0
    %1773 = vmatpush.msra.mxu0 0.0
    %1774 = vmatpush.msra.mxu0 0.0
    %v1775 = vand.u32 %v570, 4294901760
    %1776 = vmatpush.msra.mxu0 %v1775
    %v1777 = vand.u32 %v569, 4294901760
    %1778 = vmatpush.msra.mxu0 %v1777
    %v1779 = vand.u32 %v568, 4294901760
    %1780 = vmatpush.msra.mxu0 %v1779
    %v1781 = vand.u32 %v567, 4294901760
    %1782 = vmatpush.msra.mxu0 %v1781
    %v1783 = vand.u32 %v1761, 4294901760
    %v1784 = vsub.f32 %v1761, %v1783
    %v1785 = vand.u32 %v1784, 4294901760
    %v1786 = vsub.f32 %v1784, %v1785
    %v1787 = vand.u32 %v1786, 4294901760
    %1788 = vmatmul.f32.gmra.mxu0 %v1787
    %v1789 = vpop.f32.mrf.mxu0
    %v1790 = vadd.f32 0.0, %v1789
    %1791 = vdwg.mxu0
    %1792 = vmatpush.msra.mxu0 0.0
    %1793 = vmatpush.msra.mxu0 0.0
    %1794 = vmatpush.msra.mxu0 0.0
    %1795 = vmatpush.msra.mxu0 0.0
    %1796 = vmatpush.msra.mxu0 0.0
    %1797 = vmatpush.msra.mxu0 0.0
    %1798 = vmatpush.msra.mxu0 0.0
    %1799 = vmatpush.msra.mxu0 0.0
    %1800 = vmatpush.msra.mxu0 0.0
    %1801 = vmatpush.msra.mxu0 0.0
    %1802 = vmatpush.msra.mxu0 0.0
    %1803 = vmatpush.msra.mxu0 0.0
    %v1804 = vand.u32 %v570, 4294901760
    %v1805 = vsub.f32 %v570, %v1804
    %v1806 = vand.u32 %v1805, 4294901760
    %v1807 = vsub.f32 %v1805, %v1806
    %v1808 = vand.u32 %v1807, 4294901760
    %1809 = vmatpush.msra.mxu0 %v1808
    %v1810 = vand.u32 %v569, 4294901760
    %v1811 = vsub.f32 %v569, %v1810
    %v1812 = vand.u32 %v1811, 4294901760
    %v1813 = vsub.f32 %v1811, %v1812
    %v1814 = vand.u32 %v1813, 4294901760
    %1815 = vmatpush.msra.mxu0 %v1814
    %v1816 = vand.u32 %v568, 4294901760
    %v1817 = vsub.f32 %v568, %v1816
    %v1818 = vand.u32 %v1817, 4294901760
    %v1819 = vsub.f32 %v1817, %v1818
    %v1820 = vand.u32 %v1819, 4294901760
    %1821 = vmatpush.msra.mxu0 %v1820
    %v1822 = vand.u32 %v567, 4294901760
    %v1823 = vsub.f32 %v567, %v1822
    %v1824 = vand.u32 %v1823, 4294901760
    %v1825 = vsub.f32 %v1823, %v1824
    %v1826 = vand.u32 %v1825, 4294901760
    %1827 = vmatpush.msra.mxu0 %v1826
    %v1828 = vand.u32 %v1761, 4294901760
    %1829 = vmatmul.f32.gmra.mxu0 %v1828
    %v1830 = vpop.f32.mrf.mxu0
    %v1831 = vadd.f32 %v1790, %v1830
    %1832 = vdwg.mxu0
    %1833 = vmatpush.msra.mxu0 0.0
    %1834 = vmatpush.msra.mxu0 0.0
    %1835 = vmatpush.msra.mxu0 0.0
    %1836 = vmatpush.msra.mxu0 0.0
    %1837 = vmatpush.msra.mxu0 0.0
    %1838 = vmatpush.msra.mxu0 0.0
    %1839 = vmatpush.msra.mxu0 0.0
    %1840 = vmatpush.msra.mxu0 0.0
    %1841 = vmatpush.msra.mxu0 0.0
    %1842 = vmatpush.msra.mxu0 0.0
    %1843 = vmatpush.msra.mxu0 0.0
    %1844 = vmatpush.msra.mxu0 0.0
    %v1845 = vand.u32 %v570, 4294901760
    %v1846 = vsub.f32 %v570, %v1845
    %1847 = vmatpush.msra.mxu0 %v1846
    %v1848 = vand.u32 %v569, 4294901760
    %v1849 = vsub.f32 %v569, %v1848
    %1850 = vmatpush.msra.mxu0 %v1849
    %v1851 = vand.u32 %v568, 4294901760
    %v1852 = vsub.f32 %v568, %v1851
    %1853 = vmatpush.msra.mxu0 %v1852
    %v1854 = vand.u32 %v567, 4294901760
    %v1855 = vsub.f32 %v567, %v1854
    %1856 = vmatpush.msra.mxu0 %v1855
    %v1857 = vand.u32 %v1761, 4294901760
    %v1858 = vsub.f32 %v1761, %v1857
    %1859 = vmatmul.f32.gmra.mxu0 %v1858
    %v1860 = vpop.f32.mrf.mxu0
    %v1861 = vadd.f32 %v1831, %v1860
    %1862 = vdwg.mxu0
    %1863 = vmatpush.msra.mxu0 0.0
    %1864 = vmatpush.msra.mxu0 0.0
    %1865 = vmatpush.msra.mxu0 0.0
    %1866 = vmatpush.msra.mxu0 0.0
    %1867 = vmatpush.msra.mxu0 0.0
    %1868 = vmatpush.msra.mxu0 0.0
    %1869 = vmatpush.msra.mxu0 0.0
    %1870 = vmatpush.msra.mxu0 0.0
    %1871 = vmatpush.msra.mxu0 0.0
    %1872 = vmatpush.msra.mxu0 0.0
    %1873 = vmatpush.msra.mxu0 0.0
    %1874 = vmatpush.msra.mxu0 0.0
    %v1875 = vand.u32 %v570, 4294901760
    %1876 = vmatpush.msra.mxu0 %v1875
    %v1877 = vand.u32 %v569, 4294901760
    %1878 = vmatpush.msra.mxu0 %v1877
    %v1879 = vand.u32 %v568, 4294901760
    %1880 = vmatpush.msra.mxu0 %v1879
    %v1881 = vand.u32 %v567, 4294901760
    %1882 = vmatpush.msra.mxu0 %v1881
    %v1883 = vand.u32 %v1761, 4294901760
    %v1884 = vsub.f32 %v1761, %v1883
    %v1885 = vand.u32 %v1884, 4294901760
    %1886 = vmatmul.f32.gmra.mxu0 %v1885
    %v1887 = vpop.f32.mrf.mxu0
    %v1888 = vadd.f32 %v1861, %v1887
    %1889 = vdwg.mxu0
    %1890 = vmatpush.msra.mxu0 0.0
    %1891 = vmatpush.msra.mxu0 0.0
    %1892 = vmatpush.msra.mxu0 0.0
    %1893 = vmatpush.msra.mxu0 0.0
    %1894 = vmatpush.msra.mxu0 0.0
    %1895 = vmatpush.msra.mxu0 0.0
    %1896 = vmatpush.msra.mxu0 0.0
    %1897 = vmatpush.msra.mxu0 0.0
    %1898 = vmatpush.msra.mxu0 0.0
    %1899 = vmatpush.msra.mxu0 0.0
    %1900 = vmatpush.msra.mxu0 0.0
    %1901 = vmatpush.msra.mxu0 0.0
    %v1902 = vand.u32 %v570, 4294901760
    %v1903 = vsub.f32 %v570, %v1902
    %v1904 = vand.u32 %v1903, 4294901760
    %1905 = vmatpush.msra.mxu0 %v1904
    %v1906 = vand.u32 %v569, 4294901760
    %v1907 = vsub.f32 %v569, %v1906
    %v1908 = vand.u32 %v1907, 4294901760
    %1909 = vmatpush.msra.mxu0 %v1908
    %v1910 = vand.u32 %v568, 4294901760
    %v1911 = vsub.f32 %v568, %v1910
    %v1912 = vand.u32 %v1911, 4294901760
    %1913 = vmatpush.msra.mxu0 %v1912
    %v1914 = vand.u32 %v567, 4294901760
    %v1915 = vsub.f32 %v567, %v1914
    %v1916 = vand.u32 %v1915, 4294901760
    %1917 = vmatpush.msra.mxu0 %v1916
    %v1918 = vand.u32 %v1761, 4294901760
    %1919 = vmatmul.f32.gmra.mxu0 %v1918
    %v1920 = vpop.f32.mrf.mxu0
    %v1921 = vadd.f32 %v1888, %v1920
    %1922 = vdwg.mxu0
    %1923 = vmatpush.msra.mxu0 0.0
    %1924 = vmatpush.msra.mxu0 0.0
    %1925 = vmatpush.msra.mxu0 0.0
    %1926 = vmatpush.msra.mxu0 0.0
    %1927 = vmatpush.msra.mxu0 0.0
    %1928 = vmatpush.msra.mxu0 0.0
    %1929 = vmatpush.msra.mxu0 0.0
    %1930 = vmatpush.msra.mxu0 0.0
    %1931 = vmatpush.msra.mxu0 0.0
    %1932 = vmatpush.msra.mxu0 0.0
    %1933 = vmatpush.msra.mxu0 0.0
    %1934 = vmatpush.msra.mxu0 0.0
    %v1935 = vand.u32 %v570, 4294901760
    %1936 = vmatpush.msra.mxu0 %v1935
    %v1937 = vand.u32 %v569, 4294901760
    %1938 = vmatpush.msra.mxu0 %v1937
    %v1939 = vand.u32 %v568, 4294901760
    %1940 = vmatpush.msra.mxu0 %v1939
    %v1941 = vand.u32 %v567, 4294901760
    %1942 = vmatpush.msra.mxu0 %v1941
    %v1943 = vand.u32 %v1761, 4294901760
    %1944 = vmatmul.f32.gmra.mxu0 %v1943
    %v1945 = vpop.f32.mrf.mxu0
    %v1946 = vadd.f32 %v1921, %v1945
    %1947 = vdwg.mxu0
    %v1948 = vadd.f32 %v1757, %v1946
    %v1949 = vxor.u32 %v1948, 2147483648
    %v1950 = vmul.f32 %v1949, 1.442695
    %v1951 = vpow.pop %v1950
    %v1952 = vadd.f32 %v1951, 1.0
    %v1953 = vrcp.pop %v1952
    %v1954 = vmul.f32 %v1952, %v1953
    %v1955 = vsub.f32 1.0, %v1954
    %v1956 = vmul.f32 %v1953, %v1955
    %v1957 = vadd.f32 %v1953, %v1956
    %vm1958 = vweird.f32 %v1952
    %vm1959 = vweird.f32 %v1953
    %vm1960 = vmor %vm1958, %vm1959
    %v1961 = vsel %vm1960, %v1953, %v1957
    %v1962 = vand.u32 2147483647, %v1952
    %vm1963 = vcmp.eq.f32.partialorder %v1962, 8.507059e+37
    %v1964 = vand.u32 %v1952, 2147483648
    %v1965 = vor.u32 1.1754944e-38, %v1964
    %v1966 = vsel %vm1963, %v1965, %v1961
    %v1967 = vmul.f32 1.0, %v1966
    %v1968 = vtanh.pop %v1948
    %v1969 = vmul.f32 %v1967, %v1683
    %1971 = vrot.lane.b32.xlu0 %v1968, 64
    %v1972 = vpop.permute.xlu0 %1971
    %v1974 = vmul.f32 %v1967, %v1972
    %1976 = vrot.lane.b32.xlu0 %v1974, 32
    %v1977 = vpop.permute.xlu0 %1976
    %v1979 = vadd.f32 %v1969, %v1977
    %v1980 = vtanh.pop %v1979
    %1982 = vrot.lane.b32.xlu0 %v1980, 64
    %v1983 = vpop.permute.xlu0 %1982
    %v1985 = vmul.f32 %v1967, %v1983
    %s1986 = scalar_lea.vmem [#allocation3], 32
    %v1987 = vld [vmem:[%s1986] sm:$0xff]
    %v1988 = vmul.f32 %v1985, %v803
    %1990 = vrot.lane.b32.xlu0 %v1988, 32
    %v1991 = vpop.permute.xlu0 %1990
    %v1993 = vsel %vm87, %v1991, 0.0
    %1994 = vadd.xlane.f32.xlu0 %v1993
    %v1995 = vpop.xlane.xlu0 %1994
    %v1996 = vadd.f32 %v1987, %v1995
    %v1997 = vxor.u32 %v1996, 2147483648
    %v1998 = vmul.f32 %v1997, 1.442695
    %v1999 = vpow.pop %v1998
    %v2000 = vadd.f32 %v1999, 1.0
    %v2001 = vrcp.pop %v2000
    %v2002 = vmul.f32 %v2000, %v2001
    %v2003 = vsub.f32 1.0, %v2002
    %v2004 = vmul.f32 %v2001, %v2003
    %v2005 = vadd.f32 %v2001, %v2004
    %vm2006 = vweird.f32 %v2000
    %vm2007 = vweird.f32 %v2001
    %vm2008 = vmor %vm2006, %vm2007
    %v2009 = vsel %vm2008, %v2001, %v2005
    %v2010 = vand.u32 2147483647, %v2000
    %vm2011 = vcmp.eq.f32.partialorder %v2010, 8.507059e+37
    %v2012 = vand.u32 %v2000, 2147483648
    %v2013 = vor.u32 1.1754944e-38, %v2012
    %v2014 = vsel %vm2011, %v2013, %v2009
    %v2015 = vmul.f32 1.0, %v2014
    %v2016 = vmul.f32 %v2015, 1.442695
    %v2017 = vpow.pop %v2016
    %2019 = vset.pattern.permute.xlu0 0
    %2020 = vperm.xlu0 %2019, %v2017
    %v2021 = vpop.permute.xlu0 %2020
    %v2023 = vmul.f32 %v2021, %v1985
    %v2024 = vadd.f32 %v1728, %v2023
    %v2025 = vadd.f32 %v1729, %v2017
    %2027 = vset.pattern.permute.xlu0 0
    %2028 = vperm.xlu0 %2027, %v2025
    %v2029 = vpop.permute.xlu0 %2028
    %v2031 = vrcp.pop %v2029
    %v2032 = vmul.f32 %v2029, %v2031
    %v2033 = vsub.f32 1.0, %v2032
    %v2034 = vmul.f32 %v2031, %v2033
    %v2035 = vadd.f32 %v2031, %v2034
    %vm2036 = vweird.f32 %v2029
    %vm2037 = vweird.f32 %v2031
    %vm2038 = vmor %vm2036, %vm2037
    %v2039 = vsel %vm2038, %v2031, %v2035
    %v2040 = vand.u32 2147483647, %v2029
    %vm2041 = vcmp.eq.f32.partialorder %v2040, 8.507059e+37
    %v2042 = vand.u32 %v2029, 2147483648
    %v2043 = vor.u32 1.1754944e-38, %v2042
    %v2044 = vsel %vm2041, %v2043, %v2039
    %v2045 = vmul.f32 %v2024, %v2044
    %2047 = vrot.lane.b32.xlu0 %v2045, 32
    %v2048 = vpop.permute.xlu0 %2047
    %s2050 = scalar_lea.vmem [#allocation10], 32
    %2051 = vst.msk [vmem:[%s2050] sm:$0xff] %vm87, %v2048
    %s2052 = scalar_lea.vmem [#allocation2], 40
    %v2053 = vld [vmem:[%s2052] sm:$0xff]
    %2055 = vrot.lane.b32.xlu0 %v1985, 32
    %v2056 = vpop.permute.xlu0 %2055
    %v2057 = vsel %vm87, %v2056, 0
    %2059 = vmatpush.msra.mxu0 0.0
    %2060 = vmatpush.msra.mxu0 0.0
    %2061 = vmatpush.msra.mxu0 0.0
    %2062 = vmatpush.msra.mxu0 0.0
    %2063 = vmatpush.msra.mxu0 0.0
    %2064 = vmatpush.msra.mxu0 0.0
    %2065 = vmatpush.msra.mxu0 0.0
    %2066 = vmatpush.msra.mxu0 0.0
    %2067 = vmatpush.msra.mxu0 0.0
    %2068 = vmatpush.msra.mxu0 0.0
    %2069 = vmatpush.msra.mxu0 0.0
    %2070 = vmatpush.msra.mxu0 0.0
    %v2071 = vand.u32 %v570, 4294901760
    %2072 = vmatpush.msra.mxu0 %v2071
    %v2073 = vand.u32 %v569, 4294901760
    %2074 = vmatpush.msra.mxu0 %v2073
    %v2075 = vand.u32 %v568, 4294901760
    %2076 = vmatpush.msra.mxu0 %v2075
    %v2077 = vand.u32 %v567, 4294901760
    %2078 = vmatpush.msra.mxu0 %v2077
    %v2079 = vand.u32 %v2057, 4294901760
    %v2080 = vsub.f32 %v2057, %v2079
    %v2081 = vand.u32 %v2080, 4294901760
    %v2082 = vsub.f32 %v2080, %v2081
    %v2083 = vand.u32 %v2082, 4294901760
    %2084 = vmatmul.f32.gmra.mxu0 %v2083
    %v2085 = vpop.f32.mrf.mxu0
    %v2086 = vadd.f32 0.0, %v2085
    %2087 = vdwg.mxu0
    %2088 = vmatpush.msra.mxu0 0.0
    %2089 = vmatpush.msra.mxu0 0.0
    %2090 = vmatpush.msra.mxu0 0.0
    %2091 = vmatpush.msra.mxu0 0.0
    %2092 = vmatpush.msra.mxu0 0.0
    %2093 = vmatpush.msra.mxu0 0.0
    %2094 = vmatpush.msra.mxu0 0.0
    %2095 = vmatpush.msra.mxu0 0.0
    %2096 = vmatpush.msra.mxu0 0.0
    %2097 = vmatpush.msra.mxu0 0.0
    %2098 = vmatpush.msra.mxu0 0.0
    %2099 = vmatpush.msra.mxu0 0.0
    %v2100 = vand.u32 %v570, 4294901760
    %v2101 = vsub.f32 %v570, %v2100
    %v2102 = vand.u32 %v2101, 4294901760
    %v2103 = vsub.f32 %v2101, %v2102
    %v2104 = vand.u32 %v2103, 4294901760
    %2105 = vmatpush.msra.mxu0 %v2104
    %v2106 = vand.u32 %v569, 4294901760
    %v2107 = vsub.f32 %v569, %v2106
    %v2108 = vand.u32 %v2107, 4294901760
    %v2109 = vsub.f32 %v2107, %v2108
    %v2110 = vand.u32 %v2109, 4294901760
    %2111 = vmatpush.msra.mxu0 %v2110
    %v2112 = vand.u32 %v568, 4294901760
    %v2113 = vsub.f32 %v568, %v2112
    %v2114 = vand.u32 %v2113, 4294901760
    %v2115 = vsub.f32 %v2113, %v2114
    %v2116 = vand.u32 %v2115, 4294901760
    %2117 = vmatpush.msra.mxu0 %v2116
    %v2118 = vand.u32 %v567, 4294901760
    %v2119 = vsub.f32 %v567, %v2118
    %v2120 = vand.u32 %v2119, 4294901760
    %v2121 = vsub.f32 %v2119, %v2120
    %v2122 = vand.u32 %v2121, 4294901760
    %2123 = vmatpush.msra.mxu0 %v2122
    %v2124 = vand.u32 %v2057, 4294901760
    %2125 = vmatmul.f32.gmra.mxu0 %v2124
    %v2126 = vpop.f32.mrf.mxu0
    %v2127 = vadd.f32 %v2086, %v2126
    %2128 = vdwg.mxu0
    %2129 = vmatpush.msra.mxu0 0.0
    %2130 = vmatpush.msra.mxu0 0.0
    %2131 = vmatpush.msra.mxu0 0.0
    %2132 = vmatpush.msra.mxu0 0.0
    %2133 = vmatpush.msra.mxu0 0.0
    %2134 = vmatpush.msra.mxu0 0.0
    %2135 = vmatpush.msra.mxu0 0.0
    %2136 = vmatpush.msra.mxu0 0.0
    %2137 = vmatpush.msra.mxu0 0.0
    %2138 = vmatpush.msra.mxu0 0.0
    %2139 = vmatpush.msra.mxu0 0.0
    %2140 = vmatpush.msra.mxu0 0.0
    %v2141 = vand.u32 %v570, 4294901760
    %v2142 = vsub.f32 %v570, %v2141
    %2143 = vmatpush.msra.mxu0 %v2142
    %v2144 = vand.u32 %v569, 4294901760
    %v2145 = vsub.f32 %v569, %v2144
    %2146 = vmatpush.msra.mxu0 %v2145
    %v2147 = vand.u32 %v568, 4294901760
    %v2148 = vsub.f32 %v568, %v2147
    %2149 = vmatpush.msra.mxu0 %v2148
    %v2150 = vand.u32 %v567, 4294901760
    %v2151 = vsub.f32 %v567, %v2150
    %2152 = vmatpush.msra.mxu0 %v2151
    %v2153 = vand.u32 %v2057, 4294901760
    %v2154 = vsub.f32 %v2057, %v2153
    %2155 = vmatmul.f32.gmra.mxu0 %v2154
    %v2156 = vpop.f32.mrf.mxu0
    %v2157 = vadd.f32 %v2127, %v2156
    %2158 = vdwg.mxu0
    %2159 = vmatpush.msra.mxu0 0.0
    %2160 = vmatpush.msra.mxu0 0.0
    %2161 = vmatpush.msra.mxu0 0.0
    %2162 = vmatpush.msra.mxu0 0.0
    %2163 = vmatpush.msra.mxu0 0.0
    %2164 = vmatpush.msra.mxu0 0.0
    %2165 = vmatpush.msra.mxu0 0.0
    %2166 = vmatpush.msra.mxu0 0.0
    %2167 = vmatpush.msra.mxu0 0.0
    %2168 = vmatpush.msra.mxu0 0.0
    %2169 = vmatpush.msra.mxu0 0.0
    %2170 = vmatpush.msra.mxu0 0.0
    %v2171 = vand.u32 %v570, 4294901760
    %2172 = vmatpush.msra.mxu0 %v2171
    %v2173 = vand.u32 %v569, 4294901760
    %2174 = vmatpush.msra.mxu0 %v2173
    %v2175 = vand.u32 %v568, 4294901760
    %2176 = vmatpush.msra.mxu0 %v2175
    %v2177 = vand.u32 %v567, 4294901760
    %2178 = vmatpush.msra.mxu0 %v2177
    %v2179 = vand.u32 %v2057, 4294901760
    %v2180 = vsub.f32 %v2057, %v2179
    %v2181 = vand.u32 %v2180, 4294901760
    %2182 = vmatmul.f32.gmra.mxu0 %v2181
    %v2183 = vpop.f32.mrf.mxu0
    %v2184 = vadd.f32 %v2157, %v2183
    %2185 = vdwg.mxu0
    %2186 = vmatpush.msra.mxu0 0.0
    %2187 = vmatpush.msra.mxu0 0.0
    %2188 = vmatpush.msra.mxu0 0.0
    %2189 = vmatpush.msra.mxu0 0.0
    %2190 = vmatpush.msra.mxu0 0.0
    %2191 = vmatpush.msra.mxu0 0.0
    %2192 = vmatpush.msra.mxu0 0.0
    %2193 = vmatpush.msra.mxu0 0.0
    %2194 = vmatpush.msra.mxu0 0.0
    %2195 = vmatpush.msra.mxu0 0.0
    %2196 = vmatpush.msra.mxu0 0.0
    %2197 = vmatpush.msra.mxu0 0.0
    %v2198 = vand.u32 %v570, 4294901760
    %v2199 = vsub.f32 %v570, %v2198
    %v2200 = vand.u32 %v2199, 4294901760
    %2201 = vmatpush.msra.mxu0 %v2200
    %v2202 = vand.u32 %v569, 4294901760
    %v2203 = vsub.f32 %v569, %v2202
    %v2204 = vand.u32 %v2203, 4294901760
    %2205 = vmatpush.msra.mxu0 %v2204
    %v2206 = vand.u32 %v568, 4294901760
    %v2207 = vsub.f32 %v568, %v2206
    %v2208 = vand.u32 %v2207, 4294901760
    %2209 = vmatpush.msra.mxu0 %v2208
    %v2210 = vand.u32 %v567, 4294901760
    %v2211 = vsub.f32 %v567, %v2210
    %v2212 = vand.u32 %v2211, 4294901760
    %2213 = vmatpush.msra.mxu0 %v2212
    %v2214 = vand.u32 %v2057, 4294901760
    %2215 = vmatmul.f32.gmra.mxu0 %v2214
    %v2216 = vpop.f32.mrf.mxu0
    %v2217 = vadd.f32 %v2184, %v2216
    %2218 = vdwg.mxu0
    %2219 = vmatpush.msra.mxu0 0.0
    %2220 = vmatpush.msra.mxu0 0.0
    %2221 = vmatpush.msra.mxu0 0.0
    %2222 = vmatpush.msra.mxu0 0.0
    %2223 = vmatpush.msra.mxu0 0.0
    %2224 = vmatpush.msra.mxu0 0.0
    %2225 = vmatpush.msra.mxu0 0.0
    %2226 = vmatpush.msra.mxu0 0.0
    %2227 = vmatpush.msra.mxu0 0.0
    %2228 = vmatpush.msra.mxu0 0.0
    %2229 = vmatpush.msra.mxu0 0.0
    %2230 = vmatpush.msra.mxu0 0.0
    %v2231 = vand.u32 %v570, 4294901760
    %2232 = vmatpush.msra.mxu0 %v2231
    %v2233 = vand.u32 %v569, 4294901760
    %2234 = vmatpush.msra.mxu0 %v2233
    %v2235 = vand.u32 %v568, 4294901760
    %2236 = vmatpush.msra.mxu0 %v2235
    %v2237 = vand.u32 %v567, 4294901760
    %2238 = vmatpush.msra.mxu0 %v2237
    %v2239 = vand.u32 %v2057, 4294901760
    %2240 = vmatmul.f32.gmra.mxu0 %v2239
    %v2241 = vpop.f32.mrf.mxu0
    %v2242 = vadd.f32 %v2217, %v2241
    %2243 = vdwg.mxu0
    %v2244 = vadd.f32 %v2053, %v2242
    %v2245 = vxor.u32 %v2244, 2147483648
    %v2246 = vmul.f32 %v2245, 1.442695
    %v2247 = vpow.pop %v2246
    %v2248 = vadd.f32 %v2247, 1.0
    %v2249 = vrcp.pop %v2248
    %v2250 = vmul.f32 %v2248, %v2249
    %v2251 = vsub.f32 1.0, %v2250
    %v2252 = vmul.f32 %v2249, %v2251
    %v2253 = vadd.f32 %v2249, %v2252
    %vm2254 = vweird.f32 %v2248
    %vm2255 = vweird.f32 %v2249
    %vm2256 = vmor %vm2254, %vm2255
    %v2257 = vsel %vm2256, %v2249, %v2253
    %v2258 = vand.u32 2147483647, %v2248
    %vm2259 = vcmp.eq.f32.partialorder %v2258, 8.507059e+37
    %v2260 = vand.u32 %v2248, 2147483648
    %v2261 = vor.u32 1.1754944e-38, %v2260
    %v2262 = vsel %vm2259, %v2261, %v2257
    %v2263 = vmul.f32 1.0, %v2262
    %v2264 = vtanh.pop %v2244
    %v2265 = vmul.f32 %v2263, %v1979
    %2267 = vrot.lane.b32.xlu0 %v2264, 64
    %v2268 = vpop.permute.xlu0 %2267
    %v2270 = vmul.f32 %v2263, %v2268
    %2272 = vrot.lane.b32.xlu0 %v2270, 32
    %v2273 = vpop.permute.xlu0 %2272
    %v2275 = vadd.f32 %v2265, %v2273
    %v2276 = vtanh.pop %v2275
    %2278 = vrot.lane.b32.xlu0 %v2276, 64
    %v2279 = vpop.permute.xlu0 %2278
    %v2281 = vmul.f32 %v2263, %v2279
    %s2282 = scalar_lea.vmem [#allocation3], 40
    %v2283 = vld [vmem:[%s2282] sm:$0xff]
    %v2284 = vmul.f32 %v2281, %v803
    %2286 = vrot.lane.b32.xlu0 %v2284, 32
    %v2287 = vpop.permute.xlu0 %2286
    %v2289 = vsel %vm87, %v2287, 0.0
    %2290 = vadd.xlane.f32.xlu0 %v2289
    %v2291 = vpop.xlane.xlu0 %2290
    %v2292 = vadd.f32 %v2283, %v2291
    %v2293 = vxor.u32 %v2292, 2147483648
    %v2294 = vmul.f32 %v2293, 1.442695
    %v2295 = vpow.pop %v2294
    %v2296 = vadd.f32 %v2295, 1.0
    %v2297 = vrcp.pop %v2296
    %v2298 = vmul.f32 %v2296, %v2297
    %v2299 = vsub.f32 1.0, %v2298
    %v2300 = vmul.f32 %v2297, %v2299
    %v2301 = vadd.f32 %v2297, %v2300
    %vm2302 = vweird.f32 %v2296
    %vm2303 = vweird.f32 %v2297
    %vm2304 = vmor %vm2302, %vm2303
    %v2305 = vsel %vm2304, %v2297, %v2301
    %v2306 = vand.u32 2147483647, %v2296
    %vm2307 = vcmp.eq.f32.partialorder %v2306, 8.507059e+37
    %v2308 = vand.u32 %v2296, 2147483648
    %v2309 = vor.u32 1.1754944e-38, %v2308
    %v2310 = vsel %vm2307, %v2309, %v2305
    %v2311 = vmul.f32 1.0, %v2310
    %v2312 = vmul.f32 %v2311, 1.442695
    %v2313 = vpow.pop %v2312
    %2315 = vset.pattern.permute.xlu0 0
    %2316 = vperm.xlu0 %2315, %v2313
    %v2317 = vpop.permute.xlu0 %2316
    %v2319 = vmul.f32 %v2317, %v2281
    %v2320 = vadd.f32 %v2024, %v2319
    %v2321 = vadd.f32 %v2025, %v2313
    %2323 = vset.pattern.permute.xlu0 0
    %2324 = vperm.xlu0 %2323, %v2321
    %v2325 = vpop.permute.xlu0 %2324
    %v2327 = vrcp.pop %v2325
    %v2328 = vmul.f32 %v2325, %v2327
    %v2329 = vsub.f32 1.0, %v2328
    %v2330 = vmul.f32 %v2327, %v2329
    %v2331 = vadd.f32 %v2327, %v2330
    %vm2332 = vweird.f32 %v2325
    %vm2333 = vweird.f32 %v2327
    %vm2334 = vmor %vm2332, %vm2333
    %v2335 = vsel %vm2334, %v2327, %v2331
    %v2336 = vand.u32 2147483647, %v2325
    %vm2337 = vcmp.eq.f32.partialorder %v2336, 8.507059e+37
    %v2338 = vand.u32 %v2325, 2147483648
    %v2339 = vor.u32 1.1754944e-38, %v2338
    %v2340 = vsel %vm2337, %v2339, %v2335
    %v2341 = vmul.f32 %v2320, %v2340
    %2343 = vrot.lane.b32.xlu0 %v2341, 32
    %v2344 = vpop.permute.xlu0 %2343
    %s2346 = scalar_lea.vmem [#allocation10], 40
    %2347 = vst.msk [vmem:[%s2346] sm:$0xff] %vm87, %v2344
    %s2348 = scalar_lea.vmem [#allocation2], 48
    %v2349 = vld [vmem:[%s2348] sm:$0xff]
    %2351 = vrot.lane.b32.xlu0 %v2281, 32
    %v2352 = vpop.permute.xlu0 %2351
    %v2353 = vsel %vm87, %v2352, 0
    %2355 = vmatpush.msra.mxu0 0.0
    %2356 = vmatpush.msra.mxu0 0.0
    %2357 = vmatpush.msra.mxu0 0.0
    %2358 = vmatpush.msra.mxu0 0.0
    %2359 = vmatpush.msra.mxu0 0.0
    %2360 = vmatpush.msra.mxu0 0.0
    %2361 = vmatpush.msra.mxu0 0.0
    %2362 = vmatpush.msra.mxu0 0.0
    %2363 = vmatpush.msra.mxu0 0.0
    %2364 = vmatpush.msra.mxu0 0.0
    %2365 = vmatpush.msra.mxu0 0.0
    %2366 = vmatpush.msra.mxu0 0.0
    %v2367 = vand.u32 %v570, 4294901760
    %2368 = vmatpush.msra.mxu0 %v2367
    %v2369 = vand.u32 %v569, 4294901760
    %2370 = vmatpush.msra.mxu0 %v2369
    %v2371 = vand.u32 %v568, 4294901760
    %2372 = vmatpush.msra.mxu0 %v2371
    %v2373 = vand.u32 %v567, 4294901760
    %2374 = vmatpush.msra.mxu0 %v2373
    %v2375 = vand.u32 %v2353, 4294901760
    %v2376 = vsub.f32 %v2353, %v2375
    %v2377 = vand.u32 %v2376, 4294901760
    %v2378 = vsub.f32 %v2376, %v2377
    %v2379 = vand.u32 %v2378, 4294901760
    %2380 = vmatmul.f32.gmra.mxu0 %v2379
    %v2381 = vpop.f32.mrf.mxu0
    %v2382 = vadd.f32 0.0, %v2381
    %2383 = vdwg.mxu0
    %2384 = vmatpush.msra.mxu0 0.0
    %2385 = vmatpush.msra.mxu0 0.0
    %2386 = vmatpush.msra.mxu0 0.0
    %2387 = vmatpush.msra.mxu0 0.0
    %2388 = vmatpush.msra.mxu0 0.0
    %2389 = vmatpush.msra.mxu0 0.0
    %2390 = vmatpush.msra.mxu0 0.0
    %2391 = vmatpush.msra.mxu0 0.0
    %2392 = vmatpush.msra.mxu0 0.0
    %2393 = vmatpush.msra.mxu0 0.0
    %2394 = vmatpush.msra.mxu0 0.0
    %2395 = vmatpush.msra.mxu0 0.0
    %v2396 = vand.u32 %v570, 4294901760
    %v2397 = vsub.f32 %v570, %v2396
    %v2398 = vand.u32 %v2397, 4294901760
    %v2399 = vsub.f32 %v2397, %v2398
    %v2400 = vand.u32 %v2399, 4294901760
    %2401 = vmatpush.msra.mxu0 %v2400
    %v2402 = vand.u32 %v569, 4294901760
    %v2403 = vsub.f32 %v569, %v2402
    %v2404 = vand.u32 %v2403, 4294901760
    %v2405 = vsub.f32 %v2403, %v2404
    %v2406 = vand.u32 %v2405, 4294901760
    %2407 = vmatpush.msra.mxu0 %v2406
    %v2408 = vand.u32 %v568, 4294901760
    %v2409 = vsub.f32 %v568, %v2408
    %v2410 = vand.u32 %v2409, 4294901760
    %v2411 = vsub.f32 %v2409, %v2410
    %v2412 = vand.u32 %v2411, 4294901760
    %2413 = vmatpush.msra.mxu0 %v2412
    %v2414 = vand.u32 %v567, 4294901760
    %v2415 = vsub.f32 %v567, %v2414
    %v2416 = vand.u32 %v2415, 4294901760
    %v2417 = vsub.f32 %v2415, %v2416
    %v2418 = vand.u32 %v2417, 4294901760
    %2419 = vmatpush.msra.mxu0 %v2418
    %v2420 = vand.u32 %v2353, 4294901760
    %2421 = vmatmul.f32.gmra.mxu0 %v2420
    %v2422 = vpop.f32.mrf.mxu0
    %v2423 = vadd.f32 %v2382, %v2422
    %2424 = vdwg.mxu0
    %2425 = vmatpush.msra.mxu0 0.0
    %2426 = vmatpush.msra.mxu0 0.0
    %2427 = vmatpush.msra.mxu0 0.0
    %2428 = vmatpush.msra.mxu0 0.0
    %2429 = vmatpush.msra.mxu0 0.0
    %2430 = vmatpush.msra.mxu0 0.0
    %2431 = vmatpush.msra.mxu0 0.0
    %2432 = vmatpush.msra.mxu0 0.0
    %2433 = vmatpush.msra.mxu0 0.0
    %2434 = vmatpush.msra.mxu0 0.0
    %2435 = vmatpush.msra.mxu0 0.0
    %2436 = vmatpush.msra.mxu0 0.0
    %v2437 = vand.u32 %v570, 4294901760
    %v2438 = vsub.f32 %v570, %v2437
    %2439 = vmatpush.msra.mxu0 %v2438
    %v2440 = vand.u32 %v569, 4294901760
    %v2441 = vsub.f32 %v569, %v2440
    %2442 = vmatpush.msra.mxu0 %v2441
    %v2443 = vand.u32 %v568, 4294901760
    %v2444 = vsub.f32 %v568, %v2443
    %2445 = vmatpush.msra.mxu0 %v2444
    %v2446 = vand.u32 %v567, 4294901760
    %v2447 = vsub.f32 %v567, %v2446
    %2448 = vmatpush.msra.mxu0 %v2447
    %v2449 = vand.u32 %v2353, 4294901760
    %v2450 = vsub.f32 %v2353, %v2449
    %2451 = vmatmul.f32.gmra.mxu0 %v2450
    %v2452 = vpop.f32.mrf.mxu0
    %v2453 = vadd.f32 %v2423, %v2452
    %2454 = vdwg.mxu0
    %2455 = vmatpush.msra.mxu0 0.0
    %2456 = vmatpush.msra.mxu0 0.0
    %2457 = vmatpush.msra.mxu0 0.0
    %2458 = vmatpush.msra.mxu0 0.0
    %2459 = vmatpush.msra.mxu0 0.0
    %2460 = vmatpush.msra.mxu0 0.0
    %2461 = vmatpush.msra.mxu0 0.0
    %2462 = vmatpush.msra.mxu0 0.0
    %2463 = vmatpush.msra.mxu0 0.0
    %2464 = vmatpush.msra.mxu0 0.0
    %2465 = vmatpush.msra.mxu0 0.0
    %2466 = vmatpush.msra.mxu0 0.0
    %v2467 = vand.u32 %v570, 4294901760
    %2468 = vmatpush.msra.mxu0 %v2467
    %v2469 = vand.u32 %v569, 4294901760
    %2470 = vmatpush.msra.mxu0 %v2469
    %v2471 = vand.u32 %v568, 4294901760
    %2472 = vmatpush.msra.mxu0 %v2471
    %v2473 = vand.u32 %v567, 4294901760
    %2474 = vmatpush.msra.mxu0 %v2473
    %v2475 = vand.u32 %v2353, 4294901760
    %v2476 = vsub.f32 %v2353, %v2475
    %v2477 = vand.u32 %v2476, 4294901760
    %2478 = vmatmul.f32.gmra.mxu0 %v2477
    %v2479 = vpop.f32.mrf.mxu0
    %v2480 = vadd.f32 %v2453, %v2479
    %2481 = vdwg.mxu0
    %2482 = vmatpush.msra.mxu0 0.0
    %2483 = vmatpush.msra.mxu0 0.0
    %2484 = vmatpush.msra.mxu0 0.0
    %2485 = vmatpush.msra.mxu0 0.0
    %2486 = vmatpush.msra.mxu0 0.0
    %2487 = vmatpush.msra.mxu0 0.0
    %2488 = vmatpush.msra.mxu0 0.0
    %2489 = vmatpush.msra.mxu0 0.0
    %2490 = vmatpush.msra.mxu0 0.0
    %2491 = vmatpush.msra.mxu0 0.0
    %2492 = vmatpush.msra.mxu0 0.0
    %2493 = vmatpush.msra.mxu0 0.0
    %v2494 = vand.u32 %v570, 4294901760
    %v2495 = vsub.f32 %v570, %v2494
    %v2496 = vand.u32 %v2495, 4294901760
    %2497 = vmatpush.msra.mxu0 %v2496
    %v2498 = vand.u32 %v569, 4294901760
    %v2499 = vsub.f32 %v569, %v2498
    %v2500 = vand.u32 %v2499, 4294901760
    %2501 = vmatpush.msra.mxu0 %v2500
    %v2502 = vand.u32 %v568, 4294901760
    %v2503 = vsub.f32 %v568, %v2502
    %v2504 = vand.u32 %v2503, 4294901760
    %2505 = vmatpush.msra.mxu0 %v2504
    %v2506 = vand.u32 %v567, 4294901760
    %v2507 = vsub.f32 %v567, %v2506
    %v2508 = vand.u32 %v2507, 4294901760
    %2509 = vmatpush.msra.mxu0 %v2508
    %v2510 = vand.u32 %v2353, 4294901760
    %2511 = vmatmul.f32.gmra.mxu0 %v2510
    %v2512 = vpop.f32.mrf.mxu0
    %v2513 = vadd.f32 %v2480, %v2512
    %2514 = vdwg.mxu0
    %2515 = vmatpush.msra.mxu0 0.0
    %2516 = vmatpush.msra.mxu0 0.0
    %2517 = vmatpush.msra.mxu0 0.0
    %2518 = vmatpush.msra.mxu0 0.0
    %2519 = vmatpush.msra.mxu0 0.0
    %2520 = vmatpush.msra.mxu0 0.0
    %2521 = vmatpush.msra.mxu0 0.0
    %2522 = vmatpush.msra.mxu0 0.0
    %2523 = vmatpush.msra.mxu0 0.0
    %2524 = vmatpush.msra.mxu0 0.0
    %2525 = vmatpush.msra.mxu0 0.0
    %2526 = vmatpush.msra.mxu0 0.0
    %v2527 = vand.u32 %v570, 4294901760
    %2528 = vmatpush.msra.mxu0 %v2527
    %v2529 = vand.u32 %v569, 4294901760
    %2530 = vmatpush.msra.mxu0 %v2529
    %v2531 = vand.u32 %v568, 4294901760
    %2532 = vmatpush.msra.mxu0 %v2531
    %v2533 = vand.u32 %v567, 4294901760
    %2534 = vmatpush.msra.mxu0 %v2533
    %v2535 = vand.u32 %v2353, 4294901760
    %2536 = vmatmul.f32.gmra.mxu0 %v2535
    %v2537 = vpop.f32.mrf.mxu0
    %v2538 = vadd.f32 %v2513, %v2537
    %2539 = vdwg.mxu0
    %v2540 = vadd.f32 %v2349, %v2538
    %v2541 = vxor.u32 %v2540, 2147483648
    %v2542 = vmul.f32 %v2541, 1.442695
    %v2543 = vpow.pop %v2542
    %v2544 = vadd.f32 %v2543, 1.0
    %v2545 = vrcp.pop %v2544
    %v2546 = vmul.f32 %v2544, %v2545
    %v2547 = vsub.f32 1.0, %v2546
    %v2548 = vmul.f32 %v2545, %v2547
    %v2549 = vadd.f32 %v2545, %v2548
    %vm2550 = vweird.f32 %v2544
    %vm2551 = vweird.f32 %v2545
    %vm2552 = vmor %vm2550, %vm2551
    %v2553 = vsel %vm2552, %v2545, %v2549
    %v2554 = vand.u32 2147483647, %v2544
    %vm2555 = vcmp.eq.f32.partialorder %v2554, 8.507059e+37
    %v2556 = vand.u32 %v2544, 2147483648
    %v2557 = vor.u32 1.1754944e-38, %v2556
    %v2558 = vsel %vm2555, %v2557, %v2553
    %v2559 = vmul.f32 1.0, %v2558
    %v2560 = vtanh.pop %v2540
    %v2561 = vmul.f32 %v2559, %v2275
    %2563 = vrot.lane.b32.xlu0 %v2560, 64
    %v2564 = vpop.permute.xlu0 %2563
    %v2566 = vmul.f32 %v2559, %v2564
    %2568 = vrot.lane.b32.xlu0 %v2566, 32
    %v2569 = vpop.permute.xlu0 %2568
    %v2571 = vadd.f32 %v2561, %v2569
    %v2572 = vtanh.pop %v2571
    %2574 = vrot.lane.b32.xlu0 %v2572, 64
    %v2575 = vpop.permute.xlu0 %2574
    %v2577 = vmul.f32 %v2559, %v2575
    %s2578 = scalar_lea.vmem [#allocation3], 48
    %v2579 = vld [vmem:[%s2578] sm:$0xff]
    %v2580 = vmul.f32 %v2577, %v803
    %2582 = vrot.lane.b32.xlu0 %v2580, 32
    %v2583 = vpop.permute.xlu0 %2582
    %v2585 = vsel %vm87, %v2583, 0.0
    %2586 = vadd.xlane.f32.xlu0 %v2585
    %v2587 = vpop.xlane.xlu0 %2586
    %v2588 = vadd.f32 %v2579, %v2587
    %v2589 = vxor.u32 %v2588, 2147483648
    %v2590 = vmul.f32 %v2589, 1.442695
    %v2591 = vpow.pop %v2590
    %v2592 = vadd.f32 %v2591, 1.0
    %v2593 = vrcp.pop %v2592
    %v2594 = vmul.f32 %v2592, %v2593
    %v2595 = vsub.f32 1.0, %v2594
    %v2596 = vmul.f32 %v2593, %v2595
    %v2597 = vadd.f32 %v2593, %v2596
    %vm2598 = vweird.f32 %v2592
    %vm2599 = vweird.f32 %v2593
    %vm2600 = vmor %vm2598, %vm2599
    %v2601 = vsel %vm2600, %v2593, %v2597
    %v2602 = vand.u32 2147483647, %v2592
    %vm2603 = vcmp.eq.f32.partialorder %v2602, 8.507059e+37
    %v2604 = vand.u32 %v2592, 2147483648
    %v2605 = vor.u32 1.1754944e-38, %v2604
    %v2606 = vsel %vm2603, %v2605, %v2601
    %v2607 = vmul.f32 1.0, %v2606
    %v2608 = vmul.f32 %v2607, 1.442695
    %v2609 = vpow.pop %v2608
    %2611 = vset.pattern.permute.xlu0 0
    %2612 = vperm.xlu0 %2611, %v2609
    %v2613 = vpop.permute.xlu0 %2612
    %v2615 = vmul.f32 %v2613, %v2577
    %v2616 = vadd.f32 %v2320, %v2615
    %v2617 = vadd.f32 %v2321, %v2609
    %2619 = vset.pattern.permute.xlu0 0
    %2620 = vperm.xlu0 %2619, %v2617
    %v2621 = vpop.permute.xlu0 %2620
    %v2623 = vrcp.pop %v2621
    %v2624 = vmul.f32 %v2621, %v2623
    %v2625 = vsub.f32 1.0, %v2624
    %v2626 = vmul.f32 %v2623, %v2625
    %v2627 = vadd.f32 %v2623, %v2626
    %vm2628 = vweird.f32 %v2621
    %vm2629 = vweird.f32 %v2623
    %vm2630 = vmor %vm2628, %vm2629
    %v2631 = vsel %vm2630, %v2623, %v2627
    %v2632 = vand.u32 2147483647, %v2621
    %vm2633 = vcmp.eq.f32.partialorder %v2632, 8.507059e+37
    %v2634 = vand.u32 %v2621, 2147483648
    %v2635 = vor.u32 1.1754944e-38, %v2634
    %v2636 = vsel %vm2633, %v2635, %v2631
    %v2637 = vmul.f32 %v2616, %v2636
    %2639 = vrot.lane.b32.xlu0 %v2637, 32
    %v2640 = vpop.permute.xlu0 %2639
    %s2642 = scalar_lea.vmem [#allocation10], 48
    %2643 = vst.msk [vmem:[%s2642] sm:$0xff] %vm87, %v2640
    %s2644 = scalar_lea.vmem [#allocation2], 56
    %v2645 = vld [vmem:[%s2644] sm:$0xff]
    %2647 = vrot.lane.b32.xlu0 %v2577, 32
    %v2648 = vpop.permute.xlu0 %2647
    %v2649 = vsel %vm87, %v2648, 0
    %2651 = vmatpush.msra.mxu0 0.0
    %2652 = vmatpush.msra.mxu0 0.0
    %2653 = vmatpush.msra.mxu0 0.0
    %2654 = vmatpush.msra.mxu0 0.0
    %2655 = vmatpush.msra.mxu0 0.0
    %2656 = vmatpush.msra.mxu0 0.0
    %2657 = vmatpush.msra.mxu0 0.0
    %2658 = vmatpush.msra.mxu0 0.0
    %2659 = vmatpush.msra.mxu0 0.0
    %2660 = vmatpush.msra.mxu0 0.0
    %2661 = vmatpush.msra.mxu0 0.0
    %2662 = vmatpush.msra.mxu0 0.0
    %v2663 = vand.u32 %v570, 4294901760
    %2664 = vmatpush.msra.mxu0 %v2663
    %v2665 = vand.u32 %v569, 4294901760
    %2666 = vmatpush.msra.mxu0 %v2665
    %v2667 = vand.u32 %v568, 4294901760
    %2668 = vmatpush.msra.mxu0 %v2667
    %v2669 = vand.u32 %v567, 4294901760
    %2670 = vmatpush.msra.mxu0 %v2669
    %v2671 = vand.u32 %v2649, 4294901760
    %v2672 = vsub.f32 %v2649, %v2671
    %v2673 = vand.u32 %v2672, 4294901760
    %v2674 = vsub.f32 %v2672, %v2673
    %v2675 = vand.u32 %v2674, 4294901760
    %2676 = vmatmul.f32.gmra.mxu0 %v2675
    %v2677 = vpop.f32.mrf.mxu0
    %v2678 = vadd.f32 0.0, %v2677
    %2679 = vdwg.mxu0
    %2680 = vmatpush.msra.mxu0 0.0
    %2681 = vmatpush.msra.mxu0 0.0
    %2682 = vmatpush.msra.mxu0 0.0
    %2683 = vmatpush.msra.mxu0 0.0
    %2684 = vmatpush.msra.mxu0 0.0
    %2685 = vmatpush.msra.mxu0 0.0
    %2686 = vmatpush.msra.mxu0 0.0
    %2687 = vmatpush.msra.mxu0 0.0
    %2688 = vmatpush.msra.mxu0 0.0
    %2689 = vmatpush.msra.mxu0 0.0
    %2690 = vmatpush.msra.mxu0 0.0
    %2691 = vmatpush.msra.mxu0 0.0
    %v2692 = vand.u32 %v570, 4294901760
    %v2693 = vsub.f32 %v570, %v2692
    %v2694 = vand.u32 %v2693, 4294901760
    %v2695 = vsub.f32 %v2693, %v2694
    %v2696 = vand.u32 %v2695, 4294901760
    %2697 = vmatpush.msra.mxu0 %v2696
    %v2698 = vand.u32 %v569, 4294901760
    %v2699 = vsub.f32 %v569, %v2698
    %v2700 = vand.u32 %v2699, 4294901760
    %v2701 = vsub.f32 %v2699, %v2700
    %v2702 = vand.u32 %v2701, 4294901760
    %2703 = vmatpush.msra.mxu0 %v2702
    %v2704 = vand.u32 %v568, 4294901760
    %v2705 = vsub.f32 %v568, %v2704
    %v2706 = vand.u32 %v2705, 4294901760
    %v2707 = vsub.f32 %v2705, %v2706
    %v2708 = vand.u32 %v2707, 4294901760
    %2709 = vmatpush.msra.mxu0 %v2708
    %v2710 = vand.u32 %v567, 4294901760
    %v2711 = vsub.f32 %v567, %v2710
    %v2712 = vand.u32 %v2711, 4294901760
    %v2713 = vsub.f32 %v2711, %v2712
    %v2714 = vand.u32 %v2713, 4294901760
    %2715 = vmatpush.msra.mxu0 %v2714
    %v2716 = vand.u32 %v2649, 4294901760
    %2717 = vmatmul.f32.gmra.mxu0 %v2716
    %v2718 = vpop.f32.mrf.mxu0
    %v2719 = vadd.f32 %v2678, %v2718
    %2720 = vdwg.mxu0
    %2721 = vmatpush.msra.mxu0 0.0
    %2722 = vmatpush.msra.mxu0 0.0
    %2723 = vmatpush.msra.mxu0 0.0
    %2724 = vmatpush.msra.mxu0 0.0
    %2725 = vmatpush.msra.mxu0 0.0
    %2726 = vmatpush.msra.mxu0 0.0
    %2727 = vmatpush.msra.mxu0 0.0
    %2728 = vmatpush.msra.mxu0 0.0
    %2729 = vmatpush.msra.mxu0 0.0
    %2730 = vmatpush.msra.mxu0 0.0
    %2731 = vmatpush.msra.mxu0 0.0
    %2732 = vmatpush.msra.mxu0 0.0
    %v2733 = vand.u32 %v570, 4294901760
    %v2734 = vsub.f32 %v570, %v2733
    %2735 = vmatpush.msra.mxu0 %v2734
    %v2736 = vand.u32 %v569, 4294901760
    %v2737 = vsub.f32 %v569, %v2736
    %2738 = vmatpush.msra.mxu0 %v2737
    %v2739 = vand.u32 %v568, 4294901760
    %v2740 = vsub.f32 %v568, %v2739
    %2741 = vmatpush.msra.mxu0 %v2740
    %v2742 = vand.u32 %v567, 4294901760
    %v2743 = vsub.f32 %v567, %v2742
    %2744 = vmatpush.msra.mxu0 %v2743
    %v2745 = vand.u32 %v2649, 4294901760
    %v2746 = vsub.f32 %v2649, %v2745
    %2747 = vmatmul.f32.gmra.mxu0 %v2746
    %v2748 = vpop.f32.mrf.mxu0
    %v2749 = vadd.f32 %v2719, %v2748
    %2750 = vdwg.mxu0
    %2751 = vmatpush.msra.mxu0 0.0
    %2752 = vmatpush.msra.mxu0 0.0
    %2753 = vmatpush.msra.mxu0 0.0
    %2754 = vmatpush.msra.mxu0 0.0
    %2755 = vmatpush.msra.mxu0 0.0
    %2756 = vmatpush.msra.mxu0 0.0
    %2757 = vmatpush.msra.mxu0 0.0
    %2758 = vmatpush.msra.mxu0 0.0
    %2759 = vmatpush.msra.mxu0 0.0
    %2760 = vmatpush.msra.mxu0 0.0
    %2761 = vmatpush.msra.mxu0 0.0
    %2762 = vmatpush.msra.mxu0 0.0
    %v2763 = vand.u32 %v570, 4294901760
    %2764 = vmatpush.msra.mxu0 %v2763
    %v2765 = vand.u32 %v569, 4294901760
    %2766 = vmatpush.msra.mxu0 %v2765
    %v2767 = vand.u32 %v568, 4294901760
    %2768 = vmatpush.msra.mxu0 %v2767
    %v2769 = vand.u32 %v567, 4294901760
    %2770 = vmatpush.msra.mxu0 %v2769
    %v2771 = vand.u32 %v2649, 4294901760
    %v2772 = vsub.f32 %v2649, %v2771
    %v2773 = vand.u32 %v2772, 4294901760
    %2774 = vmatmul.f32.gmra.mxu0 %v2773
    %v2775 = vpop.f32.mrf.mxu0
    %v2776 = vadd.f32 %v2749, %v2775
    %2777 = vdwg.mxu0
    %2778 = vmatpush.msra.mxu0 0.0
    %2779 = vmatpush.msra.mxu0 0.0
    %2780 = vmatpush.msra.mxu0 0.0
    %2781 = vmatpush.msra.mxu0 0.0
    %2782 = vmatpush.msra.mxu0 0.0
    %2783 = vmatpush.msra.mxu0 0.0
    %2784 = vmatpush.msra.mxu0 0.0
    %2785 = vmatpush.msra.mxu0 0.0
    %2786 = vmatpush.msra.mxu0 0.0
    %2787 = vmatpush.msra.mxu0 0.0
    %2788 = vmatpush.msra.mxu0 0.0
    %2789 = vmatpush.msra.mxu0 0.0
    %v2790 = vand.u32 %v570, 4294901760
    %v2791 = vsub.f32 %v570, %v2790
    %v2792 = vand.u32 %v2791, 4294901760
    %2793 = vmatpush.msra.mxu0 %v2792
    %v2794 = vand.u32 %v569, 4294901760
    %v2795 = vsub.f32 %v569, %v2794
    %v2796 = vand.u32 %v2795, 4294901760
    %2797 = vmatpush.msra.mxu0 %v2796
    %v2798 = vand.u32 %v568, 4294901760
    %v2799 = vsub.f32 %v568, %v2798
    %v2800 = vand.u32 %v2799, 4294901760
    %2801 = vmatpush.msra.mxu0 %v2800
    %v2802 = vand.u32 %v567, 4294901760
    %v2803 = vsub.f32 %v567, %v2802
    %v2804 = vand.u32 %v2803, 4294901760
    %2805 = vmatpush.msra.mxu0 %v2804
    %v2806 = vand.u32 %v2649, 4294901760
    %2807 = vmatmul.f32.gmra.mxu0 %v2806
    %v2808 = vpop.f32.mrf.mxu0
    %v2809 = vadd.f32 %v2776, %v2808
    %2810 = vdwg.mxu0
    %2811 = vmatpush.msra.mxu0 0.0
    %2812 = vmatpush.msra.mxu0 0.0
    %2813 = vmatpush.msra.mxu0 0.0
    %2814 = vmatpush.msra.mxu0 0.0
    %2815 = vmatpush.msra.mxu0 0.0
    %2816 = vmatpush.msra.mxu0 0.0
    %2817 = vmatpush.msra.mxu0 0.0
    %2818 = vmatpush.msra.mxu0 0.0
    %2819 = vmatpush.msra.mxu0 0.0
    %2820 = vmatpush.msra.mxu0 0.0
    %2821 = vmatpush.msra.mxu0 0.0
    %2822 = vmatpush.msra.mxu0 0.0
    %v2823 = vand.u32 %v570, 4294901760
    %2824 = vmatpush.msra.mxu0 %v2823
    %v2825 = vand.u32 %v569, 4294901760
    %2826 = vmatpush.msra.mxu0 %v2825
    %v2827 = vand.u32 %v568, 4294901760
    %2828 = vmatpush.msra.mxu0 %v2827
    %v2829 = vand.u32 %v567, 4294901760
    %2830 = vmatpush.msra.mxu0 %v2829
    %v2831 = vand.u32 %v2649, 4294901760
    %2832 = vmatmul.f32.gmra.mxu0 %v2831
    %v2833 = vpop.f32.mrf.mxu0
    %v2834 = vadd.f32 %v2809, %v2833
    %2835 = vdwg.mxu0
    %v2836 = vadd.f32 %v2645, %v2834
    %v2837 = vxor.u32 %v2836, 2147483648
    %v2838 = vmul.f32 %v2837, 1.442695
    %v2839 = vpow.pop %v2838
    %v2840 = vadd.f32 %v2839, 1.0
    %v2841 = vrcp.pop %v2840
    %v2842 = vmul.f32 %v2840, %v2841
    %v2843 = vsub.f32 1.0, %v2842
    %v2844 = vmul.f32 %v2841, %v2843
    %v2845 = vadd.f32 %v2841, %v2844
    %vm2846 = vweird.f32 %v2840
    %vm2847 = vweird.f32 %v2841
    %vm2848 = vmor %vm2846, %vm2847
    %v2849 = vsel %vm2848, %v2841, %v2845
    %v2850 = vand.u32 2147483647, %v2840
    %vm2851 = vcmp.eq.f32.partialorder %v2850, 8.507059e+37
    %v2852 = vand.u32 %v2840, 2147483648
    %v2853 = vor.u32 1.1754944e-38, %v2852
    %v2854 = vsel %vm2851, %v2853, %v2849
    %v2855 = vmul.f32 1.0, %v2854
    %v2856 = vtanh.pop %v2836
    %v2857 = vmul.f32 %v2855, %v2571
    %2859 = vrot.lane.b32.xlu0 %v2856, 64
    %v2860 = vpop.permute.xlu0 %2859
    %v2862 = vmul.f32 %v2855, %v2860
    %2864 = vrot.lane.b32.xlu0 %v2862, 32
    %v2865 = vpop.permute.xlu0 %2864
    %v2867 = vadd.f32 %v2857, %v2865
    %v2868 = vtanh.pop %v2867
    %2870 = vrot.lane.b32.xlu0 %v2868, 64
    %v2871 = vpop.permute.xlu0 %2870
    %v2873 = vmul.f32 %v2855, %v2871
    %s2874 = scalar_lea.vmem [#allocation3], 56
    %v2875 = vld [vmem:[%s2874] sm:$0xff]
    %v2876 = vmul.f32 %v2873, %v803
    %2878 = vrot.lane.b32.xlu0 %v2876, 32
    %v2879 = vpop.permute.xlu0 %2878
    %v2881 = vsel %vm87, %v2879, 0.0
    %2882 = vadd.xlane.f32.xlu0 %v2881
    %v2883 = vpop.xlane.xlu0 %2882
    %v2884 = vadd.f32 %v2875, %v2883
    %v2885 = vxor.u32 %v2884, 2147483648
    %v2886 = vmul.f32 %v2885, 1.442695
    %v2887 = vpow.pop %v2886
    %v2888 = vadd.f32 %v2887, 1.0
    %v2889 = vrcp.pop %v2888
    %v2890 = vmul.f32 %v2888, %v2889
    %v2891 = vsub.f32 1.0, %v2890
    %v2892 = vmul.f32 %v2889, %v2891
    %v2893 = vadd.f32 %v2889, %v2892
    %vm2894 = vweird.f32 %v2888
    %vm2895 = vweird.f32 %v2889
    %vm2896 = vmor %vm2894, %vm2895
    %v2897 = vsel %vm2896, %v2889, %v2893
    %v2898 = vand.u32 2147483647, %v2888
    %vm2899 = vcmp.eq.f32.partialorder %v2898, 8.507059e+37
    %v2900 = vand.u32 %v2888, 2147483648
    %v2901 = vor.u32 1.1754944e-38, %v2900
    %v2902 = vsel %vm2899, %v2901, %v2897
    %v2903 = vmul.f32 1.0, %v2902
    %v2904 = vmul.f32 %v2903, 1.442695
    %v2905 = vpow.pop %v2904
    %2907 = vset.pattern.permute.xlu0 0
    %2908 = vperm.xlu0 %2907, %v2905
    %v2909 = vpop.permute.xlu0 %2908
    %v2911 = vmul.f32 %v2909, %v2873
    %v2912 = vadd.f32 %v2616, %v2911
    %v2913 = vadd.f32 %v2617, %v2905
    %2915 = vset.pattern.permute.xlu0 0
    %2916 = vperm.xlu0 %2915, %v2913
    %v2917 = vpop.permute.xlu0 %2916
    %v2919 = vrcp.pop %v2917
    %v2920 = vmul.f32 %v2917, %v2919
    %v2921 = vsub.f32 1.0, %v2920
    %v2922 = vmul.f32 %v2919, %v2921
    %v2923 = vadd.f32 %v2919, %v2922
    %vm2924 = vweird.f32 %v2917
    %vm2925 = vweird.f32 %v2919
    %vm2926 = vmor %vm2924, %vm2925
    %v2927 = vsel %vm2926, %v2919, %v2923
    %v2928 = vand.u32 2147483647, %v2917
    %vm2929 = vcmp.eq.f32.partialorder %v2928, 8.507059e+37
    %v2930 = vand.u32 %v2917, 2147483648
    %v2931 = vor.u32 1.1754944e-38, %v2930
    %v2932 = vsel %vm2929, %v2931, %v2927
    %v2933 = vmul.f32 %v2912, %v2932
    %2935 = vrot.lane.b32.xlu0 %v2933, 32
    %v2936 = vpop.permute.xlu0 %2935
    %s2938 = scalar_lea.vmem [#allocation10], 56
    %2939 = vst.msk [vmem:[%s2938] sm:$0xff] %vm87, %v2936
    // Predicated region
    $region38: #{tpu_custom_call.1} parent=1 // pred_check
      _
    $region39: #{tpu_custom_call.1} parent=1 // pred_check_branch
      %2941 = sbr.rel (0) target = $region41
    $region40: #{tpu_custom_call.1} parent=1 // pred_region
      %2943 = vsyncadd [#allocation6], 0
      %s2944 = sshll.u32 [#allocation10], 4
      %s2945 = int_to_ptr.vmem [resolvable:$true] %s2944
      %s2946 = sshll.u32 %s6, 4
      %s2947 = int_to_ptr.hbm [resolvable:$true] %s2946
      %2952 = dma.vmem_to_hbm [thread:$0]  %s2945, 1024, %s2947, [#allocation6], 128, 128, 8
    $region41: #{tpu_custom_call.1} parent=1 // pred_fallthru
      _
    // Predicated region
    $region42: #{tpu_custom_call.1} parent=1 // pred_check
      _
    $region43: #{tpu_custom_call.1} parent=1 // pred_check_branch
      %2954 = sbr.rel (0) target = $region45
    $region44: #{tpu_custom_call.1} parent=1 // pred_region
      %2956 = dma.done [#allocation6], 1024
    $region45: #{tpu_custom_call.1} parent=1 // pred_fallthru
      _
    %2957 = vsyncpa [#allocation5], 1
    %2958 = vsyncpa [#allocation8], 1
    %2959 = vsyncpa [#allocation6], 1

</llo_original>
